<compile_context>
chip_gen: v5e
topology: v5e:2x2
jax: 0.10.0
libtpu: 0.0.40
codegen_flags: <defaults>
</compile_context>

<pallas_src>
import functools
import math

import jax
import jax.numpy as jnp
from jax.experimental import pallas as pl
from jax.experimental.pallas import tpu as pltpu


# ---------------------------------------------------------------------------
# Fused all-layers Decoder kernel (grid = (batch, layer))
# ---------------------------------------------------------------------------
def decoder_layers_kernel(
    trg_ref, enc_ref, tbias_ref, sbias_ref,
    wqkv_ref, bqkv_ref, wo1_ref, bo1_ref,
    wq2_ref, bq2_ref, wkv2_ref, bkv2_ref, wo2_ref, bo2_ref,
    w1_ref, b1_ref, w2_ref, b2_ref,
    g1_ref, be1_ref, g2_ref, be2_ref, g3_ref, be3_ref,
    out_ref, attn_ref,
    *, heads: int, d_k: int,
):
    layer = pl.program_id(1)

    # Layer 0: seed the resident (carried) activation from the embedded input.
    @pl.when(layer == 0)
    def _():
        out_ref[...] = trg_ref[...]

    x = out_ref[0]            # (S, D) f32, activation carried across layers
    enc = enc_ref[0]          # (Se, D) f32
    tbias = tbias_ref[0]      # (S, S) additive self-attn mask bias (0 / -1e9)
    sbias = sbias_ref[0]      # (1, Se) additive cross-attn mask bias

    D = x.shape[-1]
    scale = 1.0 / math.sqrt(d_k)

    def matmul(a, w_ref, b_ref):
        # bf16 MXU matmul with f32 accumulation; bias add stays in f32.
        return jnp.dot(a.astype(jnp.bfloat16), w_ref[0],
                       preferred_element_type=jnp.float32) + b_ref[0]

    def layernorm(t, g_ref, b_ref):
        mu = jnp.mean(t, axis=-1, keepdims=True)
        var = jnp.mean((t - mu) ** 2, axis=-1, keepdims=True)
        return (t - mu) * jax.lax.rsqrt(var + 1e-5) * g_ref[0] + b_ref[0]

    def attention(q, k, v, bias):
        # q: (Sq, D), k/v: (Sk, D).  Heads handled by one batched einsum pair.
        Sq, Sk = q.shape[0], k.shape[0]
        qh = q.reshape(Sq, heads, d_k).astype(jnp.bfloat16)
        kh = k.reshape(Sk, heads, d_k).astype(jnp.bfloat16)
        vh = v.reshape(Sk, heads, d_k).astype(jnp.bfloat16)
        s = jnp.einsum("qhd,khd->hqk", qh, kh,
                       preferred_element_type=jnp.float32) * scale + bias
        s = s - jnp.max(s, axis=-1, keepdims=True)          # f32 softmax
        p = jnp.exp(s)
        p = p * pl.reciprocal(jnp.sum(p, axis=-1, keepdims=True), approx=True)
        ctx = jnp.einsum("hqk,khd->qhd", p.astype(jnp.bfloat16), vh,
                         preferred_element_type=jnp.float32)
        return ctx.reshape(Sq, heads * d_k), p

    # ---- masked self-attention (fused QKV) + residual + LN1 ----------------
    qkv = matmul(x, wqkv_ref, bqkv_ref)                      # (S, 3D)
    ctx, _ = attention(qkv[:, :D], qkv[:, D:2 * D], qkv[:, 2 * D:], tbias)
    x = layernorm(x + matmul(ctx, wo1_ref, bo1_ref), g1_ref, be1_ref)

    # ---- encoder-decoder cross-attention (fused KV) + residual + LN2 -------
    q = matmul(x, wq2_ref, bq2_ref)                          # (S, D)
    kv = matmul(enc, wkv2_ref, bkv2_ref)                     # (Se, 2D)
    ctx, probs = attention(q, kv[:, :D], kv[:, D:], sbias)
    attn_ref[0] = probs        # last layer's write survives -> returned attention
    x = layernorm(x + matmul(ctx, wo2_ref, bo2_ref), g2_ref, be2_ref)

    # ---- position-wise FFN + residual + LN3 ---------------------------------
    h = jnp.maximum(matmul(x, w1_ref, b1_ref), 0.0)          # ReLU
    x = layernorm(x + matmul(h, w2_ref, b2_ref), g3_ref, be3_ref)

    # TODO(synk): all dropout layers are identity here (eval-mode semantics).
    out_ref[0] = x


_WEIGHT_ORDER = ("wqkv", "bqkv", "wo1", "bo1", "wq2", "bq2", "wkv2", "bkv2",
                 "wo2", "bo2", "w1", "b1", "w2", "b2",
                 "g1", "be1", "g2", "be2", "g3", "be3")


def decoder_layers_pallas(x, enc_src, tbias, sbias, params, *, heads: int):
    """All N decoder layers fused into a single gridded pallas_call."""
    B, S, D = x.shape
    Se = enc_src.shape[1]
    N = params["wqkv"].shape[0]
    F = params["w1"].shape[-1]
    d_k = D // heads

    def batch_spec(shape):            # activation block: one batch, all layers
        nd = len(shape)
        return pl.BlockSpec((1,) + tuple(shape[1:]),
                            lambda b, l: (b,) + (0,) * (nd - 1))

    def layer_spec(arr):              # stacked per-layer weights
        nd = arr.ndim
        return pl.BlockSpec((1,) + tuple(arr.shape[1:]),
                            lambda b, l: (l,) + (0,) * (nd - 1))

    weights = [params[k] for k in _WEIGHT_ORDER]
    in_specs = ([batch_spec(x.shape), batch_spec(enc_src.shape),
                 batch_spec(tbias.shape), batch_spec(sbias.shape)]
                + [layer_spec(w) for w in weights])
    out_shape = (jax.ShapeDtypeStruct((B, S, D), jnp.float32),
                 jax.ShapeDtypeStruct((B, heads, S, Se), jnp.float32))
    out_specs = (batch_spec((B, S, D)), batch_spec((B, heads, S, Se)))

    # Advisory cost estimate (helps XLA schedule the custom call).
    mm = 2 * (S * D * 3 * D + 2 * S * S * D + S * D * D                 # self
              + S * D * D + Se * D * 2 * D + 2 * S * Se * D + S * D * D  # cross
              + 2 * S * D * F)                                           # ffn
    flops = int(B * N * mm)
    transcendentals = int(B * N * (heads * S * S + heads * S * Se + 3 * S))
    bytes_accessed = int(
        (x.size + enc_src.size + tbias.size + sbias.size) * 4
        + sum(int(w.size) * w.dtype.itemsize for w in weights)
        + (B * S * D + B * heads * S * Se) * 4)

    return pl.pallas_call(
        functools.partial(decoder_layers_kernel, heads=heads, d_k=d_k),
        grid_spec=pltpu.PrefetchScalarGridSpec(
            num_scalar_prefetch=0,
            grid=(B, N),                       # batch parallel, layers carried
            in_specs=in_specs,
            out_specs=out_specs,
        ),
        out_shape=out_shape,
        compiler_params=pltpu.CompilerParams(
            dimension_semantics=("parallel", "arbitrary"),
            vmem_limit_bytes=32 * 1024 * 1024,
        ),
        cost_estimate=pl.CostEstimate(
            flops=flops, transcendentals=transcendentals,
            bytes_accessed=bytes_accessed),
    )(x, enc_src, tbias, sbias, *weights)


# ---------------------------------------------------------------------------
# Parameter construction (deterministic, synthetic) and positional encoding
# ---------------------------------------------------------------------------
def make_decoder_params(key, n_layers, d_model, d_ff):
    def lin(k, din, dout):
        w = jax.random.normal(k, (n_layers, din, dout), jnp.float32) * 0.02
        return w.astype(jnp.bfloat16), jnp.zeros((n_layers, 1, dout), jnp.float32)

    ks = jax.random.split(key, 7)
    wqkv, bqkv = lin(ks[0], d_model, 3 * d_model)        # fused Q/K/V (self)
    wo1, bo1 = lin(ks[1], d_model, d_model)
    wq2, bq2 = lin(ks[2], d_model, d_model)              # cross-attn Q
    wkv2, bkv2 = lin(ks[3], d_model, 2 * d_model)        # fused K/V (cross)
    wo2, bo2 = lin(ks[4], d_model, d_model)
    w1, b1 = lin(ks[5], d_model, d_ff)
    w2, b2 = lin(ks[6], d_ff, d_model)
    ones = jnp.ones((n_layers, 1, d_model), jnp.float32)
    zeros = jnp.zeros((n_layers, 1, d_model), jnp.float32)
    return dict(wqkv=wqkv, bqkv=bqkv, wo1=wo1, bo1=bo1,
                wq2=wq2, bq2=bq2, wkv2=wkv2, bkv2=bkv2,
                wo2=wo2, bo2=bo2, w1=w1, b1=b1, w2=w2, b2=b2,
                g1=ones, be1=zeros, g2=ones, be2=zeros, g3=ones, be3=zeros)


def make_positional_encoding(max_len, d_model):
    position = jnp.arange(max_len, dtype=jnp.float32)[:, None]
    two_i = jnp.arange(0, d_model, 2, dtype=jnp.float32)
    div_term = jnp.power(10000.0, two_i / d_model)
    pe = jnp.zeros((max_len, d_model), jnp.float32)
    pe = pe.at[:, 0::2].set(jnp.sin(position / div_term))
    pe = pe.at[:, 1::2].set(jnp.cos(position / div_term))
    return pe                                            # (max_len, d_model)


# ---------------------------------------------------------------------------
# Full Decoder forward
# ---------------------------------------------------------------------------
def decoder_forward(trg_tokens, enc_src, trg_mask, src_mask,
                    tok_embedding, pe, params, *, d_model: int, heads: int):
    B, S = trg_tokens.shape
    Se = enc_src.shape[1]
    # Glue: embedding gather, sqrt(d_model) scale, positional-encoding add.
    x = tok_embedding[trg_tokens] * math.sqrt(d_model)
    x = x + pe[None, :S, :]
    # Precompute additive mask biases once: 0 where attend, -1e9 where masked.
    tbias = (trg_mask.astype(jnp.float32).reshape(B, S, S) - 1.0) * 1e9
    sbias = (src_mask.astype(jnp.float32).reshape(B, 1, Se) - 1.0) * 1e9
    return decoder_layers_pallas(x, enc_src, tbias, sbias, params, heads=heads)


if __name__ == "__main__":
    # Small config consistent with the module.
    OUTPUT_DIM = 50    # target vocab size
    D_MODEL = 32
    N_LAYERS = 2
    HEADS = 4
    D_FF = 64
    B, S_TRG, S_SRC = 2, 8, 8

    key = jax.random.PRNGKey(0)
    k_emb, k_tok, k_enc, k_par = jax.random.split(key, 4)

    tok_embedding = jax.random.normal(k_emb, (OUTPUT_DIM, D_MODEL), jnp.float32)
    pe = make_positional_encoding(64, D_MODEL)
    params = make_decoder_params(k_par, N_LAYERS, D_MODEL, D_FF)

    trg = jax.random.randint(k_tok, (B, S_TRG), 0, OUTPUT_DIM, dtype=jnp.int32)
    enc_src = jax.random.normal(k_enc, (B, S_SRC, D_MODEL), jnp.float32)

    # Causal look-ahead mask for target self-attention: (B, 1, S, S).
    trg_mask = jnp.broadcast_to(
        jnp.tril(jnp.ones((S_TRG, S_TRG), jnp.float32)), (B, 1, S_TRG, S_TRG))
    # Source padding mask: (B, 1, 1, Se); last source token of batch 1 masked.
    src_mask = jnp.ones((B, 1, 1, S_SRC), jnp.float32).at[1, 0, 0, S_SRC - 1].set(0.0)

    out, attention = decoder_forward(trg, enc_src, trg_mask, src_mask,
                                     tok_embedding, pe, params,
                                     d_model=D_MODEL, heads=HEADS)
    out = jax.block_until_ready(out)
    attention = jax.block_until_ready(attention)

    assert out.shape == (B, S_TRG, D_MODEL) and out.dtype == jnp.float32
    assert attention.shape == (B, HEADS, S_TRG, S_SRC)
    assert bool(jnp.all(jnp.isfinite(out)))
    assert bool(jnp.all(jnp.isfinite(attention)))
    print("KERNEL_OK")
</pallas_src>

<mosaic_0001>
module attributes {stable_mosaic.version = 11 : i64} {
  func.func @decoder_layers_kernel(%arg0: i32, %arg1: i32, %arg2: memref<1x8x32xf32, #tpu.memory_space<vmem>>, %arg3: memref<1x8x32xf32, #tpu.memory_space<vmem>>, %arg4: memref<1x8x8xf32, #tpu.memory_space<vmem>>, %arg5: memref<1x1x8xf32, #tpu.memory_space<vmem>>, %arg6: memref<1x32x96xbf16, #tpu.memory_space<vmem>>, %arg7: memref<1x1x96xf32, #tpu.memory_space<vmem>>, %arg8: memref<1x32x32xbf16, #tpu.memory_space<vmem>>, %arg9: memref<1x1x32xf32, #tpu.memory_space<vmem>>, %arg10: memref<1x32x32xbf16, #tpu.memory_space<vmem>>, %arg11: memref<1x1x32xf32, #tpu.memory_space<vmem>>, %arg12: memref<1x32x64xbf16, #tpu.memory_space<vmem>>, %arg13: memref<1x1x64xf32, #tpu.memory_space<vmem>>, %arg14: memref<1x32x32xbf16, #tpu.memory_space<vmem>>, %arg15: memref<1x1x32xf32, #tpu.memory_space<vmem>>, %arg16: memref<1x32x64xbf16, #tpu.memory_space<vmem>>, %arg17: memref<1x1x64xf32, #tpu.memory_space<vmem>>, %arg18: memref<1x64x32xbf16, #tpu.memory_space<vmem>>, %arg19: memref<1x1x32xf32, #tpu.memory_space<vmem>>, %arg20: memref<1x1x32xf32, #tpu.memory_space<vmem>>, %arg21: memref<1x1x32xf32, #tpu.memory_space<vmem>>, %arg22: memref<1x1x32xf32, #tpu.memory_space<vmem>>, %arg23: memref<1x1x32xf32, #tpu.memory_space<vmem>>, %arg24: memref<1x1x32xf32, #tpu.memory_space<vmem>>, %arg25: memref<1x1x32xf32, #tpu.memory_space<vmem>>, %arg26: memref<1x8x32xf32, #tpu.memory_space<vmem>>, %arg27: memref<1x4x8x8xf32, #tpu.memory_space<vmem>>) attributes {dimension_semantics = [#tpu.dimension_semantics<parallel>, #tpu.dimension_semantics<arbitrary>], iteration_bounds = array<i64: 2, 2>, scalar_prefetch = 0 : i64, scratch_operands = 0 : i64, tpu.core_type = #tpu.core_type<tc>, window_params = [{transform_indices = @transform_0, window_bounds = array<i64: 1, 8, 32>}, {transform_indices = @transform_1, window_bounds = array<i64: 1, 8, 32>}, {transform_indices = @transform_2, window_bounds = array<i64: 1, 8, 8>}, {transform_indices = @transform_3, window_bounds = array<i64: 1, 1, 8>}, {transform_indices = @transform_4, window_bounds = array<i64: 1, 32, 96>}, {transform_indices = @transform_5, window_bounds = array<i64: 1, 1, 96>}, {transform_indices = @transform_6, window_bounds = array<i64: 1, 32, 32>}, {transform_indices = @transform_7, window_bounds = array<i64: 1, 1, 32>}, {transform_indices = @transform_8, window_bounds = array<i64: 1, 32, 32>}, {transform_indices = @transform_9, window_bounds = array<i64: 1, 1, 32>}, {transform_indices = @transform_10, window_bounds = array<i64: 1, 32, 64>}, {transform_indices = @transform_11, window_bounds = array<i64: 1, 1, 64>}, {transform_indices = @transform_12, window_bounds = array<i64: 1, 32, 32>}, {transform_indices = @transform_13, window_bounds = array<i64: 1, 1, 32>}, {transform_indices = @transform_14, window_bounds = array<i64: 1, 32, 64>}, {transform_indices = @transform_15, window_bounds = array<i64: 1, 1, 64>}, {transform_indices = @transform_16, window_bounds = array<i64: 1, 64, 32>}, {transform_indices = @transform_17, window_bounds = array<i64: 1, 1, 32>}, {transform_indices = @transform_18, window_bounds = array<i64: 1, 1, 32>}, {transform_indices = @transform_19, window_bounds = array<i64: 1, 1, 32>}, {transform_indices = @transform_20, window_bounds = array<i64: 1, 1, 32>}, {transform_indices = @transform_21, window_bounds = array<i64: 1, 1, 32>}, {transform_indices = @transform_22, window_bounds = array<i64: 1, 1, 32>}, {transform_indices = @transform_23, window_bounds = array<i64: 1, 1, 32>}, {transform_indices = @transform_24, window_bounds = array<i64: 1, 8, 32>}, {transform_indices = @transform_25, window_bounds = array<i64: 1, 4, 8, 8>}]} {
    %c0_i32 = arith.constant 0 : i32
    %0 = arith.cmpi eq, %arg1, %c0_i32 : i32
    %1 = arith.extui %0 : i1 to i32
    %c0_i32_0 = arith.constant 0 : i32
    %2 = arith.cmpi ne, %1, %c0_i32_0 : i32
    scf.if %2 {
      %c0_111 = arith.constant 0 : index
      %c0_112 = arith.constant 0 : index
      %c0_113 = arith.constant 0 : index
      %213 = vector.load %arg2[%c0_111, %c0_112, %c0_113] : memref<1x8x32xf32, #tpu.memory_space<vmem>>, vector<1x8x32xf32>
      %c0_114 = arith.constant 0 : index
      %c0_115 = arith.constant 0 : index
      %c0_116 = arith.constant 0 : index
      %214 = vector.load %arg26[%c0_114, %c0_115, %c0_116] : memref<1x8x32xf32, #tpu.memory_space<vmem>>, vector<1x8x32xf32>
      tpu.vector_store %arg26[%c0_114, %c0_115, %c0_116], %213 {strides = array<i32>} : memref<1x8x32xf32, #tpu.memory_space<vmem>>, vector<1x8x32xf32>,
    } else {
    }
    %c0 = arith.constant 0 : index
    %c0_1 = arith.constant 0 : index
    %c0_2 = arith.constant 0 : index
    %3 = vector.load %arg26[%c0, %c0_1, %c0_2] : memref<1x8x32xf32, #tpu.memory_space<vmem>>, vector<1x8x32xf32>
    %4 = vector.shape_cast %3 : vector<1x8x32xf32> to vector<8x32xf32>
    %c0_3 = arith.constant 0 : index
    %c0_4 = arith.constant 0 : index
    %c0_5 = arith.constant 0 : index
    %5 = vector.load %arg3[%c0_3, %c0_4, %c0_5] : memref<1x8x32xf32, #tpu.memory_space<vmem>>, vector<1x8x32xf32>
    %6 = vector.shape_cast %5 : vector<1x8x32xf32> to vector<8x32xf32>
    %c0_6 = arith.constant 0 : index
    %c0_7 = arith.constant 0 : index
    %c0_8 = arith.constant 0 : index
    %7 = vector.load %arg4[%c0_6, %c0_7, %c0_8] : memref<1x8x8xf32, #tpu.memory_space<vmem>>, vector<1x8x8xf32>
    %8 = vector.shape_cast %7 : vector<1x8x8xf32> to vector<8x8xf32>
    %c0_9 = arith.constant 0 : index
    %c0_10 = arith.constant 0 : index
    %c0_11 = arith.constant 0 : index
    %9 = vector.load %arg5[%c0_9, %c0_10, %c0_11] : memref<1x1x8xf32, #tpu.memory_space<vmem>>, vector<1x1x8xf32>
    %10 = vector.shape_cast %9 : vector<1x1x8xf32> to vector<1x8xf32>
    %11 = arith.truncf %4 : vector<8x32xf32> to vector<8x32xbf16>
    %c0_12 = arith.constant 0 : index
    %c0_13 = arith.constant 0 : index
    %c0_14 = arith.constant 0 : index
    %12 = vector.load %arg6[%c0_12, %c0_13, %c0_14] : memref<1x32x96xbf16, #tpu.memory_space<vmem>>, vector<1x32x96xbf16>
    %13 = vector.shape_cast %12 : vector<1x32x96xbf16> to vector<32x96xbf16>
    %cst = arith.constant dense<0.000000e+00> : vector<8x96xf32>
    %14 = tpu.matmul %11, %13, %cst {dimension_numbers = #tpu.dot_dimension_numbers<[1], [0], [0], [1], [0, 0, 1, 1], [], []>} : vector<8x32xbf16>, vector<32x96xbf16>, vector<8x96xf32> -> vector<8x96xf32>
    %c0_15 = arith.constant 0 : index
    %c0_16 = arith.constant 0 : index
    %c0_17 = arith.constant 0 : index
    %15 = vector.load %arg7[%c0_15, %c0_16, %c0_17] : memref<1x1x96xf32, #tpu.memory_space<vmem>>, vector<1x1x96xf32>
    %16 = vector.shape_cast %15 : vector<1x1x96xf32> to vector<1x96xf32>
    %17 = vector.broadcast %16 : vector<1x96xf32> to vector<8x96xf32>
    %18 = arith.addf %14, %17 : vector<8x96xf32>
    %19 = vector.extract_strided_slice %18 {offsets = [0, 0], sizes = [8, 32], strides = [1, 1]} : vector<8x96xf32> to vector<8x32xf32>
    %20 = vector.extract_strided_slice %18 {offsets = [0, 32], sizes = [8, 32], strides = [1, 1]} : vector<8x96xf32> to vector<8x32xf32>
    %21 = vector.extract_strided_slice %18 {offsets = [0, 64], sizes = [8, 32], strides = [1, 1]} : vector<8x96xf32> to vector<8x32xf32>
    %22 = vector.shape_cast %19 : vector<8x32xf32> to vector<8x4x8xf32>
    %23 = arith.truncf %22 : vector<8x4x8xf32> to vector<8x4x8xbf16>
    %24 = vector.shape_cast %20 : vector<8x32xf32> to vector<8x4x8xf32>
    %25 = arith.truncf %24 : vector<8x4x8xf32> to vector<8x4x8xbf16>
    %26 = vector.shape_cast %21 : vector<8x32xf32> to vector<8x4x8xf32>
    %27 = arith.truncf %26 : vector<8x4x8xf32> to vector<8x4x8xbf16>
    "tpu.trace_start"() <{level = 10 : i32, message = "qhd,khd->hqk"}> : () -> ()
    %cst_18 = arith.constant dense<0.000000e+00> : vector<4x8x8xf32>
    %28 = tpu.matmul %23, %25, %cst_18 {dimension_numbers = #tpu.dot_dimension_numbers<[2], [2], [0], [0], [0, 1, 0, 0, 1, 0], [1], [1]>} : vector<8x4x8xbf16>, vector<8x4x8xbf16>, vector<4x8x8xf32> -> vector<4x8x8xf32>
    "tpu.trace_stop"() : () -> ()
    %cst_19 = arith.constant 0.353553385 : f32
    %29 = vector.broadcast %cst_19 : f32 to vector<4x8x8xf32>
    %30 = arith.mulf %28, %29 : vector<4x8x8xf32>
    %31 = vector.shape_cast %8 : vector<8x8xf32> to vector<1x8x8xf32>
    %32 = vector.broadcast %31 : vector<1x8x8xf32> to vector<4x8x8xf32>
    %33 = arith.addf %30, %32 : vector<4x8x8xf32>
    %cst_20 = arith.constant dense<0xFF800000> : vector<4x8xf32>
    %34 = vector.multi_reduction <maximumf>, %33, %cst_20 [2] : vector<4x8x8xf32> to vector<4x8xf32>
    %35 = vector.shape_cast %34 : vector<4x8xf32> to vector<4x8x1xf32>
    %36 = vector.broadcast %35 : vector<4x8x1xf32> to vector<4x8x8xf32>
    %37 = arith.subf %33, %36 : vector<4x8x8xf32>
    %38 = math.exp %37 : vector<4x8x8xf32>
    %cst_21 = arith.constant dense<0.000000e+00> : vector<4x8xf32>
    %39 = vector.multi_reduction <add>, %38, %cst_21 [2] : vector<4x8x8xf32> to vector<4x8xf32>
    %40 = vector.shape_cast %39 : vector<4x8xf32> to vector<4x8x1xf32>
    %41 = tpu.reciprocal %40 {approx = true} : vector<4x8x1xf32> -> vector<4x8x1xf32>
    %42 = vector.broadcast %41 : vector<4x8x1xf32> to vector<4x8x8xf32>
    %43 = arith.mulf %38, %42 : vector<4x8x8xf32>
    %44 = arith.truncf %43 : vector<4x8x8xf32> to vector<4x8x8xbf16>
    "tpu.trace_start"() <{level = 10 : i32, message = "hqk,khd->qhd"}> : () -> ()
    %cst_22 = arith.constant dense<0.000000e+00> : vector<4x8x8xf32>
    %45 = tpu.matmul %27, %44, %cst_22 {dimension_numbers = #tpu.dot_dimension_numbers<[0], [2], [2], [1], [0, 1, 0, 2, 1, 1], [1], [0]>} : vector<8x4x8xbf16>, vector<4x8x8xbf16>, vector<4x8x8xf32> -> vector<4x8x8xf32>
    %46 = tpu.transpose %45, [2, 0, 1] : vector<4x8x8xf32> -> vector<8x4x8xf32>
    "tpu.trace_stop"() : () -> ()
    %47 = vector.shape_cast %46 : vector<8x4x8xf32> to vector<8x32xf32>
    %48 = arith.truncf %47 : vector<8x32xf32> to vector<8x32xbf16>
    %c0_23 = arith.constant 0 : index
    %c0_24 = arith.constant 0 : index
    %c0_25 = arith.constant 0 : index
    %49 = vector.load %arg8[%c0_23, %c0_24, %c0_25] : memref<1x32x32xbf16, #tpu.memory_space<vmem>>, vector<1x32x32xbf16>
    %50 = vector.shape_cast %49 : vector<1x32x32xbf16> to vector<32x32xbf16>
    %cst_26 = arith.constant dense<0.000000e+00> : vector<8x32xf32>
    %51 = tpu.matmul %48, %50, %cst_26 {dimension_numbers = #tpu.dot_dimension_numbers<[1], [0], [0], [1], [0, 0, 1, 1], [], []>} : vector<8x32xbf16>, vector<32x32xbf16>, vector<8x32xf32> -> vector<8x32xf32>
    %c0_27 = arith.constant 0 : index
    %c0_28 = arith.constant 0 : index
    %c0_29 = arith.constant 0 : index
    %52 = vector.load %arg9[%c0_27, %c0_28, %c0_29] : memref<1x1x32xf32, #tpu.memory_space<vmem>>, vector<1x1x32xf32>
    %53 = vector.shape_cast %52 : vector<1x1x32xf32> to vector<1x32xf32>
    %54 = vector.broadcast %53 : vector<1x32xf32> to vector<8x32xf32>
    %55 = arith.addf %51, %54 : vector<8x32xf32>
    %56 = arith.addf %4, %55 : vector<8x32xf32>
    %cst_30 = arith.constant dense<0.000000e+00> : vector<8xf32>
    %57 = vector.multi_reduction <add>, %56, %cst_30 [1] : vector<8x32xf32> to vector<8xf32>
    %58 = vector.shape_cast %57 : vector<8xf32> to vector<8x1xf32>
    %cst_31 = arith.constant 3.200000e+01 : f32
    %59 = vector.broadcast %cst_31 : f32 to vector<8x1xf32>
    %60 = arith.divf %58, %59 : vector<8x1xf32>
    %61 = vector.broadcast %60 : vector<8x1xf32> to vector<8x32xf32>
    %62 = arith.subf %56, %61 : vector<8x32xf32>
    %63 = arith.mulf %62, %62 : vector<8x32xf32>
    %cst_32 = arith.constant dense<0.000000e+00> : vector<8xf32>
    %64 = vector.multi_reduction <add>, %63, %cst_32 [1] : vector<8x32xf32> to vector<8xf32>
    %65 = vector.shape_cast %64 : vector<8xf32> to vector<8x1xf32>
    %cst_33 = arith.constant 3.200000e+01 : f32
    %66 = vector.broadcast %cst_33 : f32 to vector<8x1xf32>
    %67 = arith.divf %65, %66 : vector<8x1xf32>
    %68 = vector.broadcast %60 : vector<8x1xf32> to vector<8x32xf32>
    %69 = arith.subf %56, %68 : vector<8x32xf32>
    %cst_34 = arith.constant 9.99999974E-6 : f32
    %70 = vector.broadcast %cst_34 : f32 to vector<8x1xf32>
    %71 = arith.addf %67, %70 : vector<8x1xf32>
    %72 = math.rsqrt %71 : vector<8x1xf32>
    %73 = vector.broadcast %72 : vector<8x1xf32> to vector<8x32xf32>
    %74 = arith.mulf %69, %73 : vector<8x32xf32>
    %c0_35 = arith.constant 0 : index
    %c0_36 = arith.constant 0 : index
    %c0_37 = arith.constant 0 : index
    %75 = vector.load %arg20[%c0_35, %c0_36, %c0_37] : memref<1x1x32xf32, #tpu.memory_space<vmem>>, vector<1x1x32xf32>
    %76 = vector.shape_cast %75 : vector<1x1x32xf32> to vector<1x32xf32>
    %77 = vector.broadcast %76 : vector<1x32xf32> to vector<8x32xf32>
    %78 = arith.mulf %74, %77 : vector<8x32xf32>
    %c0_38 = arith.constant 0 : index
    %c0_39 = arith.constant 0 : index
    %c0_40 = arith.constant 0 : index
    %79 = vector.load %arg21[%c0_38, %c0_39, %c0_40] : memref<1x1x32xf32, #tpu.memory_space<vmem>>, vector<1x1x32xf32>
    %80 = vector.shape_cast %79 : vector<1x1x32xf32> to vector<1x32xf32>
    %81 = vector.broadcast %80 : vector<1x32xf32> to vector<8x32xf32>
    %82 = arith.addf %78, %81 : vector<8x32xf32>
    %83 = arith.truncf %82 : vector<8x32xf32> to vector<8x32xbf16>
    %c0_41 = arith.constant 0 : index
    %c0_42 = arith.constant 0 : index
    %c0_43 = arith.constant 0 : index
    %84 = vector.load %arg10[%c0_41, %c0_42, %c0_43] : memref<1x32x32xbf16, #tpu.memory_space<vmem>>, vector<1x32x32xbf16>
    %85 = vector.shape_cast %84 : vector<1x32x32xbf16> to vector<32x32xbf16>
    %cst_44 = arith.constant dense<0.000000e+00> : vector<8x32xf32>
    %86 = tpu.matmul %83, %85, %cst_44 {dimension_numbers = #tpu.dot_dimension_numbers<[1], [0], [0], [1], [0, 0, 1, 1], [], []>} : vector<8x32xbf16>, vector<32x32xbf16>, vector<8x32xf32> -> vector<8x32xf32>
    %c0_45 = arith.constant 0 : index
    %c0_46 = arith.constant 0 : index
    %c0_47 = arith.constant 0 : index
    %87 = vector.load %arg11[%c0_45, %c0_46, %c0_47] : memref<1x1x32xf32, #tpu.memory_space<vmem>>, vector<1x1x32xf32>
    %88 = vector.shape_cast %87 : vector<1x1x32xf32> to vector<1x32xf32>
    %89 = vector.broadcast %88 : vector<1x32xf32> to vector<8x32xf32>
    %90 = arith.addf %86, %89 : vector<8x32xf32>
    %91 = arith.truncf %6 : vector<8x32xf32> to vector<8x32xbf16>
    %c0_48 = arith.constant 0 : index
    %c0_49 = arith.constant 0 : index
    %c0_50 = arith.constant 0 : index
    %92 = vector.load %arg12[%c0_48, %c0_49, %c0_50] : memref<1x32x64xbf16, #tpu.memory_space<vmem>>, vector<1x32x64xbf16>
    %93 = vector.shape_cast %92 : vector<1x32x64xbf16> to vector<32x64xbf16>
    %cst_51 = arith.constant dense<0.000000e+00> : vector<8x64xf32>
    %94 = tpu.matmul %91, %93, %cst_51 {dimension_numbers = #tpu.dot_dimension_numbers<[1], [0], [0], [1], [0, 0, 1, 1], [], []>} : vector<8x32xbf16>, vector<32x64xbf16>, vector<8x64xf32> -> vector<8x64xf32>
    %c0_52 = arith.constant 0 : index
    %c0_53 = arith.constant 0 : index
    %c0_54 = arith.constant 0 : index
    %95 = vector.load %arg13[%c0_52, %c0_53, %c0_54] : memref<1x1x64xf32, #tpu.memory_space<vmem>>, vector<1x1x64xf32>
    %96 = vector.shape_cast %95 : vector<1x1x64xf32> to vector<1x64xf32>
    %97 = vector.broadcast %96 : vector<1x64xf32> to vector<8x64xf32>
    %98 = arith.addf %94, %97 : vector<8x64xf32>
    %99 = vector.extract_strided_slice %98 {offsets = [0, 0], sizes = [8, 32], strides = [1, 1]} : vector<8x64xf32> to vector<8x32xf32>
    %100 = vector.extract_strided_slice %98 {offsets = [0, 32], sizes = [8, 32], strides = [1, 1]} : vector<8x64xf32> to vector<8x32xf32>
    %101 = vector.shape_cast %90 : vector<8x32xf32> to vector<8x4x8xf32>
    %102 = arith.truncf %101 : vector<8x4x8xf32> to vector<8x4x8xbf16>
    %103 = vector.shape_cast %99 : vector<8x32xf32> to vector<8x4x8xf32>
    %104 = arith.truncf %103 : vector<8x4x8xf32> to vector<8x4x8xbf16>
    %105 = vector.shape_cast %100 : vector<8x32xf32> to vector<8x4x8xf32>
    %106 = arith.truncf %105 : vector<8x4x8xf32> to vector<8x4x8xbf16>
    "tpu.trace_start"() <{level = 10 : i32, message = "qhd,khd->hqk"}> : () -> ()
    %cst_55 = arith.constant dense<0.000000e+00> : vector<4x8x8xf32>
    %107 = tpu.matmul %102, %104, %cst_55 {dimension_numbers = #tpu.dot_dimension_numbers<[2], [2], [0], [0], [0, 1, 0, 0, 1, 0], [1], [1]>} : vector<8x4x8xbf16>, vector<8x4x8xbf16>, vector<4x8x8xf32> -> vector<4x8x8xf32>
    "tpu.trace_stop"() : () -> ()
    %cst_56 = arith.constant 0.353553385 : f32
    %108 = vector.broadcast %cst_56 : f32 to vector<4x8x8xf32>
    %109 = arith.mulf %107, %108 : vector<4x8x8xf32>
    %110 = vector.shape_cast %10 : vector<1x8xf32> to vector<1x1x8xf32>
    %111 = vector.broadcast %110 : vector<1x1x8xf32> to vector<4x8x8xf32>
    %112 = arith.addf %109, %111 : vector<4x8x8xf32>
    %cst_57 = arith.constant dense<0xFF800000> : vector<4x8xf32>
    %113 = vector.multi_reduction <maximumf>, %112, %cst_57 [2] : vector<4x8x8xf32> to vector<4x8xf32>
    %114 = vector.shape_cast %113 : vector<4x8xf32> to vector<4x8x1xf32>
    %115 = vector.broadcast %114 : vector<4x8x1xf32> to vector<4x8x8xf32>
    %116 = arith.subf %112, %115 : vector<4x8x8xf32>
    %117 = math.exp %116 : vector<4x8x8xf32>
    %cst_58 = arith.constant dense<0.000000e+00> : vector<4x8xf32>
    %118 = vector.multi_reduction <add>, %117, %cst_58 [2] : vector<4x8x8xf32> to vector<4x8xf32>
    %119 = vector.shape_cast %118 : vector<4x8xf32> to vector<4x8x1xf32>
    %120 = tpu.reciprocal %119 {approx = true} : vector<4x8x1xf32> -> vector<4x8x1xf32>
    %121 = vector.broadcast %120 : vector<4x8x1xf32> to vector<4x8x8xf32>
    %122 = arith.mulf %117, %121 : vector<4x8x8xf32>
    %123 = arith.truncf %122 : vector<4x8x8xf32> to vector<4x8x8xbf16>
    "tpu.trace_start"() <{level = 10 : i32, message = "hqk,khd->qhd"}> : () -> ()
    %cst_59 = arith.constant dense<0.000000e+00> : vector<4x8x8xf32>
    %124 = tpu.matmul %106, %123, %cst_59 {dimension_numbers = #tpu.dot_dimension_numbers<[0], [2], [2], [1], [0, 1, 0, 2, 1, 1], [1], [0]>} : vector<8x4x8xbf16>, vector<4x8x8xbf16>, vector<4x8x8xf32> -> vector<4x8x8xf32>
    %125 = tpu.transpose %124, [2, 0, 1] : vector<4x8x8xf32> -> vector<8x4x8xf32>
    "tpu.trace_stop"() : () -> ()
    %126 = vector.shape_cast %125 : vector<8x4x8xf32> to vector<8x32xf32>
    %c0_60 = arith.constant 0 : index
    %c0_61 = arith.constant 0 : index
    %c0_62 = arith.constant 0 : index
    %c0_63 = arith.constant 0 : index
    %127 = vector.load %arg27[%c0_60, %c0_61, %c0_62, %c0_63] : memref<1x4x8x8xf32, #tpu.memory_space<vmem>>, vector<1x4x8x8xf32>
    %128 = vector.shape_cast %127 : vector<1x4x8x8xf32> to vector<4x8x8xf32>
    %129 = vector.shape_cast %122 : vector<4x8x8xf32> to vector<1x4x8x8xf32>
    tpu.vector_store %arg27[%c0_60, %c0_61, %c0_62, %c0_63], %129 {strides = array<i32>} : memref<1x4x8x8xf32, #tpu.memory_space<vmem>>, vector<1x4x8x8xf32>,
    %130 = arith.truncf %126 : vector<8x32xf32> to vector<8x32xbf16>
    %c0_64 = arith.constant 0 : index
    %c0_65 = arith.constant 0 : index
    %c0_66 = arith.constant 0 : index
    %131 = vector.load %arg14[%c0_64, %c0_65, %c0_66] : memref<1x32x32xbf16, #tpu.memory_space<vmem>>, vector<1x32x32xbf16>
    %132 = vector.shape_cast %131 : vector<1x32x32xbf16> to vector<32x32xbf16>
    %cst_67 = arith.constant dense<0.000000e+00> : vector<8x32xf32>
    %133 = tpu.matmul %130, %132, %cst_67 {dimension_numbers = #tpu.dot_dimension_numbers<[1], [0], [0], [1], [0, 0, 1, 1], [], []>} : vector<8x32xbf16>, vector<32x32xbf16>, vector<8x32xf32> -> vector<8x32xf32>
    %c0_68 = arith.constant 0 : index
    %c0_69 = arith.constant 0 : index
    %c0_70 = arith.constant 0 : index
    %134 = vector.load %arg15[%c0_68, %c0_69, %c0_70] : memref<1x1x32xf32, #tpu.memory_space<vmem>>, vector<1x1x32xf32>
    %135 = vector.shape_cast %134 : vector<1x1x32xf32> to vector<1x32xf32>
    %136 = vector.broadcast %135 : vector<1x32xf32> to vector<8x32xf32>
    %137 = arith.addf %133, %136 : vector<8x32xf32>
    %138 = arith.addf %82, %137 : vector<8x32xf32>
    %cst_71 = arith.constant dense<0.000000e+00> : vector<8xf32>
    %139 = vector.multi_reduction <add>, %138, %cst_71 [1] : vector<8x32xf32> to vector<8xf32>
    %140 = vector.shape_cast %139 : vector<8xf32> to vector<8x1xf32>
    %cst_72 = arith.constant 3.200000e+01 : f32
    %141 = vector.broadcast %cst_72 : f32 to vector<8x1xf32>
    %142 = arith.divf %140, %141 : vector<8x1xf32>
    %143 = vector.broadcast %142 : vector<8x1xf32> to vector<8x32xf32>
    %144 = arith.subf %138, %143 : vector<8x32xf32>
    %145 = arith.mulf %144, %144 : vector<8x32xf32>
    %cst_73 = arith.constant dense<0.000000e+00> : vector<8xf32>
    %146 = vector.multi_reduction <add>, %145, %cst_73 [1] : vector<8x32xf32> to vector<8xf32>
    %147 = vector.shape_cast %146 : vector<8xf32> to vector<8x1xf32>
    %cst_74 = arith.constant 3.200000e+01 : f32
    %148 = vector.broadcast %cst_74 : f32 to vector<8x1xf32>
    %149 = arith.divf %147, %148 : vector<8x1xf32>
    %150 = vector.broadcast %142 : vector<8x1xf32> to vector<8x32xf32>
    %151 = arith.subf %138, %150 : vector<8x32xf32>
    %cst_75 = arith.constant 9.99999974E-6 : f32
    %152 = vector.broadcast %cst_75 : f32 to vector<8x1xf32>
    %153 = arith.addf %149, %152 : vector<8x1xf32>
    %154 = math.rsqrt %153 : vector<8x1xf32>
    %155 = vector.broadcast %154 : vector<8x1xf32> to vector<8x32xf32>
    %156 = arith.mulf %151, %155 : vector<8x32xf32>
    %c0_76 = arith.constant 0 : index
    %c0_77 = arith.constant 0 : index
    %c0_78 = arith.constant 0 : index
    %157 = vector.load %arg22[%c0_76, %c0_77, %c0_78] : memref<1x1x32xf32, #tpu.memory_space<vmem>>, vector<1x1x32xf32>
    %158 = vector.shape_cast %157 : vector<1x1x32xf32> to vector<1x32xf32>
    %159 = vector.broadcast %158 : vector<1x32xf32> to vector<8x32xf32>
    %160 = arith.mulf %156, %159 : vector<8x32xf32>
    %c0_79 = arith.constant 0 : index
    %c0_80 = arith.constant 0 : index
    %c0_81 = arith.constant 0 : index
    %161 = vector.load %arg23[%c0_79, %c0_80, %c0_81] : memref<1x1x32xf32, #tpu.memory_space<vmem>>, vector<1x1x32xf32>
    %162 = vector.shape_cast %161 : vector<1x1x32xf32> to vector<1x32xf32>
    %163 = vector.broadcast %162 : vector<1x32xf32> to vector<8x32xf32>
    %164 = arith.addf %160, %163 : vector<8x32xf32>
    %165 = arith.truncf %164 : vector<8x32xf32> to vector<8x32xbf16>
    %c0_82 = arith.constant 0 : index
    %c0_83 = arith.constant 0 : index
    %c0_84 = arith.constant 0 : index
    %166 = vector.load %arg16[%c0_82, %c0_83, %c0_84] : memref<1x32x64xbf16, #tpu.memory_space<vmem>>, vector<1x32x64xbf16>
    %167 = vector.shape_cast %166 : vector<1x32x64xbf16> to vector<32x64xbf16>
    %cst_85 = arith.constant dense<0.000000e+00> : vector<8x64xf32>
    %168 = tpu.matmul %165, %167, %cst_85 {dimension_numbers = #tpu.dot_dimension_numbers<[1], [0], [0], [1], [0, 0, 1, 1], [], []>} : vector<8x32xbf16>, vector<32x64xbf16>, vector<8x64xf32> -> vector<8x64xf32>
    %c0_86 = arith.constant 0 : index
    %c0_87 = arith.constant 0 : index
    %c0_88 = arith.constant 0 : index
    %169 = vector.load %arg17[%c0_86, %c0_87, %c0_88] : memref<1x1x64xf32, #tpu.memory_space<vmem>>, vector<1x1x64xf32>
    %170 = vector.shape_cast %169 : vector<1x1x64xf32> to vector<1x64xf32>
    %171 = vector.broadcast %170 : vector<1x64xf32> to vector<8x64xf32>
    %172 = arith.addf %168, %171 : vector<8x64xf32>
    %cst_89 = arith.constant 0.000000e+00 : f32
    %173 = vector.broadcast %cst_89 : f32 to vector<8x64xf32>
    %174 = arith.maximumf %172, %173 : vector<8x64xf32>
    %175 = arith.truncf %174 : vector<8x64xf32> to vector<8x64xbf16>
    %c0_90 = arith.constant 0 : index
    %c0_91 = arith.constant 0 : index
    %c0_92 = arith.constant 0 : index
    %176 = vector.load %arg18[%c0_90, %c0_91, %c0_92] : memref<1x64x32xbf16, #tpu.memory_space<vmem>>, vector<1x64x32xbf16>
    %177 = vector.shape_cast %176 : vector<1x64x32xbf16> to vector<64x32xbf16>
    %cst_93 = arith.constant dense<0.000000e+00> : vector<8x32xf32>
    %178 = tpu.matmul %175, %177, %cst_93 {dimension_numbers = #tpu.dot_dimension_numbers<[1], [0], [0], [1], [0, 0, 1, 1], [], []>} : vector<8x64xbf16>, vector<64x32xbf16>, vector<8x32xf32> -> vector<8x32xf32>
    %c0_94 = arith.constant 0 : index
    %c0_95 = arith.constant 0 : index
    %c0_96 = arith.constant 0 : index
    %179 = vector.load %arg19[%c0_94, %c0_95, %c0_96] : memref<1x1x32xf32, #tpu.memory_space<vmem>>, vector<1x1x32xf32>
    %180 = vector.shape_cast %179 : vector<1x1x32xf32> to vector<1x32xf32>
    %181 = vector.broadcast %180 : vector<1x32xf32> to vector<8x32xf32>
    %182 = arith.addf %178, %181 : vector<8x32xf32>
    %183 = arith.addf %164, %182 : vector<8x32xf32>
    %cst_97 = arith.constant dense<0.000000e+00> : vector<8xf32>
    %184 = vector.multi_reduction <add>, %183, %cst_97 [1] : vector<8x32xf32> to vector<8xf32>
    %185 = vector.shape_cast %184 : vector<8xf32> to vector<8x1xf32>
    %cst_98 = arith.constant 3.200000e+01 : f32
    %186 = vector.broadcast %cst_98 : f32 to vector<8x1xf32>
    %187 = arith.divf %185, %186 : vector<8x1xf32>
    %188 = vector.broadcast %187 : vector<8x1xf32> to vector<8x32xf32>
    %189 = arith.subf %183, %188 : vector<8x32xf32>
    %190 = arith.mulf %189, %189 : vector<8x32xf32>
    %cst_99 = arith.constant dense<0.000000e+00> : vector<8xf32>
    %191 = vector.multi_reduction <add>, %190, %cst_99 [1] : vector<8x32xf32> to vector<8xf32>
    %192 = vector.shape_cast %191 : vector<8xf32> to vector<8x1xf32>
    %cst_100 = arith.constant 3.200000e+01 : f32
    %193 = vector.broadcast %cst_100 : f32 to vector<8x1xf32>
    %194 = arith.divf %192, %193 : vector<8x1xf32>
    %195 = vector.broadcast %187 : vector<8x1xf32> to vector<8x32xf32>
    %196 = arith.subf %183, %195 : vector<8x32xf32>
    %cst_101 = arith.constant 9.99999974E-6 : f32
    %197 = vector.broadcast %cst_101 : f32 to vector<8x1xf32>
    %198 = arith.addf %194, %197 : vector<8x1xf32>
    %199 = math.rsqrt %198 : vector<8x1xf32>
    %200 = vector.broadcast %199 : vector<8x1xf32> to vector<8x32xf32>
    %201 = arith.mulf %196, %200 : vector<8x32xf32>
    %c0_102 = arith.constant 0 : index
    %c0_103 = arith.constant 0 : index
    %c0_104 = arith.constant 0 : index
    %202 = vector.load %arg24[%c0_102, %c0_103, %c0_104] : memref<1x1x32xf32, #tpu.memory_space<vmem>>, vector<1x1x32xf32>
    %203 = vector.shape_cast %202 : vector<1x1x32xf32> to vector<1x32xf32>
    %204 = vector.broadcast %203 : vector<1x32xf32> to vector<8x32xf32>
    %205 = arith.mulf %201, %204 : vector<8x32xf32>
    %c0_105 = arith.constant 0 : index
    %c0_106 = arith.constant 0 : index
    %c0_107 = arith.constant 0 : index
    %206 = vector.load %arg25[%c0_105, %c0_106, %c0_107] : memref<1x1x32xf32, #tpu.memory_space<vmem>>, vector<1x1x32xf32>
    %207 = vector.shape_cast %206 : vector<1x1x32xf32> to vector<1x32xf32>
    %208 = vector.broadcast %207 : vector<1x32xf32> to vector<8x32xf32>
    %209 = arith.addf %205, %208 : vector<8x32xf32>
    %c0_108 = arith.constant 0 : index
    %c0_109 = arith.constant 0 : index
    %c0_110 = arith.constant 0 : index
    %210 = vector.load %arg26[%c0_108, %c0_109, %c0_110] : memref<1x8x32xf32, #tpu.memory_space<vmem>>, vector<1x8x32xf32>
    %211 = vector.shape_cast %210 : vector<1x8x32xf32> to vector<8x32xf32>
    %212 = vector.shape_cast %209 : vector<8x32xf32> to vector<1x8x32xf32>
    tpu.vector_store %arg26[%c0_108, %c0_109, %c0_110], %212 {strides = array<i32>} : memref<1x8x32xf32, #tpu.memory_space<vmem>>, vector<1x8x32xf32>,
    return
  }
  func.func @transform_0(%arg0: i32, %arg1: i32) -> (i32, i32, i32) {
    %c0_i32 = arith.constant 0 : i32
    %c0_i32_0 = arith.constant 0 : i32
    %c0_i32_1 = arith.constant 0 : i32
    return %arg0, %c0_i32, %c0_i32_0 : i32, i32, i32
  }
  func.func @transform_1(%arg0: i32, %arg1: i32) -> (i32, i32, i32) {
    %c0_i32 = arith.constant 0 : i32
    %c0_i32_0 = arith.constant 0 : i32
    %c0_i32_1 = arith.constant 0 : i32
    return %arg0, %c0_i32, %c0_i32_0 : i32, i32, i32
  }
  func.func @transform_2(%arg0: i32, %arg1: i32) -> (i32, i32, i32) {
    %c0_i32 = arith.constant 0 : i32
    %c0_i32_0 = arith.constant 0 : i32
    %c0_i32_1 = arith.constant 0 : i32
    return %arg0, %c0_i32, %c0_i32_0 : i32, i32, i32
  }
  func.func @transform_3(%arg0: i32, %arg1: i32) -> (i32, i32, i32) {
    %c0_i32 = arith.constant 0 : i32
    %c0_i32_0 = arith.constant 0 : i32
    %c0_i32_1 = arith.constant 0 : i32
    return %arg0, %c0_i32, %c0_i32_0 : i32, i32, i32
  }
  func.func @transform_4(%arg0: i32, %arg1: i32) -> (i32, i32, i32) {
    %c0_i32 = arith.constant 0 : i32
    %c0_i32_0 = arith.constant 0 : i32
    %c0_i32_1 = arith.constant 0 : i32
    return %arg1, %c0_i32, %c0_i32_0 : i32, i32, i32
  }
  func.func @transform_5(%arg0: i32, %arg1: i32) -> (i32, i32, i32) {
    %c0_i32 = arith.constant 0 : i32
    %c0_i32_0 = arith.constant 0 : i32
    %c0_i32_1 = arith.constant 0 : i32
    return %arg1, %c0_i32, %c0_i32_0 : i32, i32, i32
  }
  func.func @transform_6(%arg0: i32, %arg1: i32) -> (i32, i32, i32) {
    %c0_i32 = arith.constant 0 : i32
    %c0_i32_0 = arith.constant 0 : i32
    %c0_i32_1 = arith.constant 0 : i32
    return %arg1, %c0_i32, %c0_i32_0 : i32, i32, i32
  }
  func.func @transform_7(%arg0: i32, %arg1: i32) -> (i32, i32, i32) {
    %c0_i32 = arith.constant 0 : i32
    %c0_i32_0 = arith.constant 0 : i32
    %c0_i32_1 = arith.constant 0 : i32
    return %arg1, %c0_i32, %c0_i32_0 : i32, i32, i32
  }
  func.func @transform_8(%arg0: i32, %arg1: i32) -> (i32, i32, i32) {
    %c0_i32 = arith.constant 0 : i32
    %c0_i32_0 = arith.constant 0 : i32
    %c0_i32_1 = arith.constant 0 : i32
    return %arg1, %c0_i32, %c0_i32_0 : i32, i32, i32
  }
  func.func @transform_9(%arg0: i32, %arg1: i32) -> (i32, i32, i32) {
    %c0_i32 = arith.constant 0 : i32
    %c0_i32_0 = arith.constant 0 : i32
    %c0_i32_1 = arith.constant 0 : i32
    return %arg1, %c0_i32, %c0_i32_0 : i32, i32, i32
  }
  func.func @transform_10(%arg0: i32, %arg1: i32) -> (i32, i32, i32) {
    %c0_i32 = arith.constant 0 : i32
    %c0_i32_0 = arith.constant 0 : i32
    %c0_i32_1 = arith.constant 0 : i32
    return %arg1, %c0_i32, %c0_i32_0 : i32, i32, i32
  }
  func.func @transform_11(%arg0: i32, %arg1: i32) -> (i32, i32, i32) {
    %c0_i32 = arith.constant 0 : i32
    %c0_i32_0 = arith.constant 0 : i32
    %c0_i32_1 = arith.constant 0 : i32
    return %arg1, %c0_i32, %c0_i32_0 : i32, i32, i32
  }
  func.func @transform_12(%arg0: i32, %arg1: i32) -> (i32, i32, i32) {
    %c0_i32 = arith.constant 0 : i32
    %c0_i32_0 = arith.constant 0 : i32
    %c0_i32_1 = arith.constant 0 : i32
    return %arg1, %c0_i32, %c0_i32_0 : i32, i32, i32
  }
  func.func @transform_13(%arg0: i32, %arg1: i32) -> (i32, i32, i32) {
    %c0_i32 = arith.constant 0 : i32
    %c0_i32_0 = arith.constant 0 : i32
    %c0_i32_1 = arith.constant 0 : i32
    return %arg1, %c0_i32, %c0_i32_0 : i32, i32, i32
  }
  func.func @transform_14(%arg0: i32, %arg1: i32) -> (i32, i32, i32) {
    %c0_i32 = arith.constant 0 : i32
    %c0_i32_0 = arith.constant 0 : i32
    %c0_i32_1 = arith.constant 0 : i32
    return %arg1, %c0_i32, %c0_i32_0 : i32, i32, i32
  }
  func.func @transform_15(%arg0: i32, %arg1: i32) -> (i32, i32, i32) {
    %c0_i32 = arith.constant 0 : i32
    %c0_i32_0 = arith.constant 0 : i32
    %c0_i32_1 = arith.constant 0 : i32
    return %arg1, %c0_i32, %c0_i32_0 : i32, i32, i32
  }
  func.func @transform_16(%arg0: i32, %arg1: i32) -> (i32, i32, i32) {
    %c0_i32 = arith.constant 0 : i32
    %c0_i32_0 = arith.constant 0 : i32
    %c0_i32_1 = arith.constant 0 : i32
    return %arg1, %c0_i32, %c0_i32_0 : i32, i32, i32
  }
  func.func @transform_17(%arg0: i32, %arg1: i32) -> (i32, i32, i32) {
    %c0_i32 = arith.constant 0 : i32
    %c0_i32_0 = arith.constant 0 : i32
    %c0_i32_1 = arith.constant 0 : i32
    return %arg1, %c0_i32, %c0_i32_0 : i32, i32, i32
  }
  func.func @transform_18(%arg0: i32, %arg1: i32) -> (i32, i32, i32) {
    %c0_i32 = arith.constant 0 : i32
    %c0_i32_0 = arith.constant 0 : i32
    %c0_i32_1 = arith.constant 0 : i32
    return %arg1, %c0_i32, %c0_i32_0 : i32, i32, i32
  }
  func.func @transform_19(%arg0: i32, %arg1: i32) -> (i32, i32, i32) {
    %c0_i32 = arith.constant 0 : i32
    %c0_i32_0 = arith.constant 0 : i32
    %c0_i32_1 = arith.constant 0 : i32
    return %arg1, %c0_i32, %c0_i32_0 : i32, i32, i32
  }
  func.func @transform_20(%arg0: i32, %arg1: i32) -> (i32, i32, i32) {
    %c0_i32 = arith.constant 0 : i32
    %c0_i32_0 = arith.constant 0 : i32
    %c0_i32_1 = arith.constant 0 : i32
    return %arg1, %c0_i32, %c0_i32_0 : i32, i32, i32
  }
  func.func @transform_21(%arg0: i32, %arg1: i32) -> (i32, i32, i32) {
    %c0_i32 = arith.constant 0 : i32
    %c0_i32_0 = arith.constant 0 : i32
    %c0_i32_1 = arith.constant 0 : i32
    return %arg1, %c0_i32, %c0_i32_0 : i32, i32, i32
  }
  func.func @transform_22(%arg0: i32, %arg1: i32) -> (i32, i32, i32) {
    %c0_i32 = arith.constant 0 : i32
    %c0_i32_0 = arith.constant 0 : i32
    %c0_i32_1 = arith.constant 0 : i32
    return %arg1, %c0_i32, %c0_i32_0 : i32, i32, i32
  }
  func.func @transform_23(%arg0: i32, %arg1: i32) -> (i32, i32, i32) {
    %c0_i32 = arith.constant 0 : i32
    %c0_i32_0 = arith.constant 0 : i32
    %c0_i32_1 = arith.constant 0 : i32
    return %arg1, %c0_i32, %c0_i32_0 : i32, i32, i32
  }
  func.func @transform_24(%arg0: i32, %arg1: i32) -> (i32, i32, i32) {
    %c0_i32 = arith.constant 0 : i32
    %c0_i32_0 = arith.constant 0 : i32
    %c0_i32_1 = arith.constant 0 : i32
    return %arg0, %c0_i32, %c0_i32_0 : i32, i32, i32
  }
  func.func @transform_25(%arg0: i32, %arg1: i32) -> (i32, i32, i32, i32) {
    %c0_i32 = arith.constant 0 : i32
    %c0_i32_0 = arith.constant 0 : i32
    %c0_i32_1 = arith.constant 0 : i32
    %c0_i32_2 = arith.constant 0 : i32
    return %arg0, %c0_i32, %c0_i32_0, %c0_i32_1 : i32, i32, i32, i32
  }
}

</mosaic_0001>

<llo_original>
// kernel: tpu_custom_call.1
$region0: #{tpu_custom_call.1}
  #allocation0 [shape = 'u32[]', space=smem, size = 0x4, offset = 0x4, fixed_abs, tag = 'smem constant byte address 0x4 - core index']
  #allocation1 [shape = 'u32[72,128]{1,0:T(1,128)}', space=vmem, size = 0x9000, scoped, tag = 'internal scratch']
  %s0 = inlined_call_operand.hbm [shape: f32[2,8,32], index: 0, kind: input, shape index: {}]
  %s1 = inlined_call_operand.hbm [shape: f32[2,8,32], index: 1, kind: input, shape index: {}]
  %s2 = inlined_call_operand.hbm [shape: f32[2,8,8], index: 2, kind: input, shape index: {}]
  %s3 = inlined_call_operand.hbm [shape: f32[2,1,8], index: 3, kind: input, shape index: {}]
  %s4 = inlined_call_operand.vmem [shape: bf16[2,32,96], index: 4, kind: input, shape index: {}]
  %s5 = inlined_call_operand.vmem [shape: f32[2,1,96], index: 5, kind: input, shape index: {}]
  %s6 = inlined_call_operand.vmem [shape: bf16[2,32,32], index: 6, kind: input, shape index: {}]
  %s7 = inlined_call_operand.vmem [shape: f32[2,1,32], index: 7, kind: input, shape index: {}]
  %s8 = inlined_call_operand.vmem [shape: bf16[2,32,32], index: 8, kind: input, shape index: {}]
  %s9 = inlined_call_operand.vmem [shape: f32[2,1,32], index: 9, kind: input, shape index: {}]
  %s10 = inlined_call_operand.hbm [shape: bf16[2,32,64], index: 10, kind: input, shape index: {}]
  %s11 = inlined_call_operand.vmem [shape: f32[2,1,64], index: 11, kind: input, shape index: {}]
  %s12 = inlined_call_operand.hbm [shape: bf16[2,32,32], index: 12, kind: input, shape index: {}]
  %s13 = inlined_call_operand.vmem [shape: f32[2,1,32], index: 13, kind: input, shape index: {}]
  %s14 = inlined_call_operand.hbm [shape: bf16[2,32,64], index: 14, kind: input, shape index: {}]
  %s15 = inlined_call_operand.vmem [shape: f32[2,1,64], index: 15, kind: input, shape index: {}]
  %s16 = inlined_call_operand.vmem [shape: bf16[2,64,32], index: 16, kind: input, shape index: {}]
  %s17 = inlined_call_operand.vmem [shape: f32[2,1,32], index: 17, kind: input, shape index: {}]
  %s18 = inlined_call_operand.vmem [shape: f32[2,1,32], index: 18, kind: input, shape index: {}]
  %s19 = inlined_call_operand.hbm [shape: f32[2,1,32], index: 19, kind: input, shape index: {}]
  %s20 = inlined_call_operand.vmem [shape: f32[2,1,32], index: 20, kind: input, shape index: {}]
  %s21 = inlined_call_operand.hbm [shape: f32[2,1,32], index: 21, kind: input, shape index: {}]
  %s22 = inlined_call_operand.vmem [shape: f32[2,1,32], index: 22, kind: input, shape index: {}]
  %s23 = inlined_call_operand.hbm [shape: f32[2,1,32], index: 23, kind: input, shape index: {}]
  %s24 = inlined_call_operand.hbm [shape: f32[2,8,32], index: 24, kind: output, shape index: {0}]
  %s25 = inlined_call_operand.hbm [shape: f32[2,4,8,8], index: 25, kind: output, shape index: {1}]
  %26 = xla_tuple %s24, %s25
  %s27 = sld [smem:[#allocation0]]
  $region181: #{tpu_custom_call.1} parent=0
    _
  %s29 = ssub.s32 1, %s27
  %s30 = scalar_select 0, %s29, %s27
  $region1: #{tpu_custom_call.1} parent=0
    #allocation2 [shape = 'u8[8192]{0}', space=vmem, size = 0x2000, scoped, tag = 'input window, operand 0']
    #allocation3 [shape = 's32[2]{0}', space=sflag, size = 0x8, scoped, tag = 'scoped memory for tpu_custom_call.1']
    #allocation4 [shape = 's32[2]{0}', space=sflag, size = 0x8, scoped, tag = 'scoped memory for tpu_custom_call.1']
    #allocation5 [shape = 'u8[8192]{0}', space=vmem, size = 0x2000, scoped, tag = 'input window, operand 1']
    #allocation6 [shape = 's32[2]{0}', space=sflag, size = 0x8, scoped, tag = 'scoped memory for tpu_custom_call.1']
    #allocation7 [shape = 'u8[8192]{0}', space=vmem, size = 0x2000, scoped, tag = 'input window, operand 2']
    #allocation8 [shape = 'u8[1024]{0}', space=vmem, size = 0x400, scoped, tag = 'input window, operand 3']
    #allocation9 [shape = 's32[2]{0}', space=sflag, size = 0x8, scoped, tag = 'scoped memory for tpu_custom_call.1']
    #allocation10 [shape = 'u8[16384]{0}', space=vmem, size = 0x4000, scoped, tag = 'input window, operand 10']
    #allocation11 [shape = 'u8[16384]{0}', space=vmem, size = 0x4000, scoped, tag = 'input window, operand 12']
    #allocation12 [shape = 's32[2]{0}', space=sflag, size = 0x8, scoped, tag = 'scoped memory for tpu_custom_call.1']
    #allocation13 [shape = 'u8[16384]{0}', space=vmem, size = 0x4000, scoped, tag = 'input window, operand 14']
    #allocation14 [shape = 'u8[1024]{0}', space=vmem, size = 0x400, scoped, tag = 'input window, operand 19']
    #allocation15 [shape = 's32[2]{0}', space=sflag, size = 0x8, scoped, tag = 'scoped memory for tpu_custom_call.1']
    #allocation16 [shape = 'u8[1024]{0}', space=vmem, size = 0x400, scoped, tag = 'input window, operand 21']
    #allocation17 [shape = 'u8[1024]{0}', space=vmem, size = 0x400, scoped, tag = 'input window, operand 23']
    #allocation18 [shape = 's32[2]{0}', space=sflag, size = 0x8, scoped, tag = 'scoped memory for tpu_custom_call.1']
    #allocation19 [shape = 'u8[8192]{0}', space=vmem, size = 0x2000, scoped, tag = 'output window, operand 0']
    #allocation20 [shape = 'u8[32768]{0}', space=vmem, size = 0x8000, scoped, tag = 'output window, operand 1']
    #allocation21 [shape = 's32[2]{0}', space=sflag, size = 0x8, scoped, tag = 'scoped memory for tpu_custom_call.1']
    %31 = vsyncpa [#allocation3], 0
    %s32 = scalar_lea.sflag [#allocation3], 1
    %33 = vsyncpa %s32, 0
    %34 = vsyncpa [#allocation6], 0
    %s35 = scalar_lea.sflag [#allocation6], 1
    %36 = vsyncpa %s35, 0
    %37 = vsyncpa [#allocation9], 0
    %s38 = scalar_lea.sflag [#allocation9], 1
    %39 = vsyncpa %s38, 0
    %40 = vsyncpa [#allocation12], 0
    %s41 = scalar_lea.sflag [#allocation12], 1
    %42 = vsyncpa %s41, 0
    %43 = vsyncpa [#allocation15], 0
    %s44 = scalar_lea.sflag [#allocation15], 1
    %45 = vsyncpa %s44, 0
    %46 = vsyncpa [#allocation18], 0
    %s47 = scalar_lea.sflag [#allocation18], 1
    %48 = vsyncpa %s47, 0
    %49 = vsyncpa [#allocation4], 0
    %s50 = scalar_lea.sflag [#allocation4], 1
    %51 = vsyncpa %s50, 0
    %52 = vsyncpa [#allocation21], 0
    %s53 = scalar_lea.sflag [#allocation21], 1
    %54 = vsyncpa %s53, 0
    loop: start=0, step=1, limit=6
    $region2: #{tpu_custom_call.1} parent=1 // loop_pre_header
      _
    $region3: #{tpu_custom_call.1} parent=1 // loop_header
      %s56 = sphi 0, %s60
      %p57 = scmp.ge.s32.totalorder %s56, 6
      %s63 = sphi 0, %s75
      %s64 = sphi 0, %s71
      %s65 = sphi 0, %s63
      %s66 = sphi 0, %s64
      %s67 = sphi 0, %s65
      %s68 = sphi 0, %s66
      %s78 = sphi 0, %s80
      %s81 = sphi 0, %s78
      %s82 = sphi 0, %s81
      %s98 = sphi 0, %s82
      %s104 = sphi 0, %s106
      %s107 = sphi 0, %s104
      %s108 = sphi 0, %s107
      %s124 = sphi 0, %s108
      %s130 = sphi 0, %s132
      %s133 = sphi 0, %s130
      %s134 = sphi 0, %s133
      %s150 = sphi 0, %s134
      %s156 = sphi 0, %s158
      %s159 = sphi 0, %s156
      %s160 = sphi 0, %s159
      %s176 = sphi 0, %s160
      %s182 = sphi 0, %s184
      %s185 = sphi 0, %s182
      %s186 = sphi 0, %s185
      %s202 = sphi 0, %s186
      %s208 = sphi 0, %s210
      %s211 = sphi 0, %s208
      %s212 = sphi 0, %s211
      %s228 = sphi 0, %s212
      %s234 = sphi 0, %s236
      %s237 = sphi 0, %s234
      %s238 = sphi 0, %s237
      %s254 = sphi 0, %s238
      %s260 = sphi 0, %s262
      %s263 = sphi 0, %s260
      %s264 = sphi 0, %s263
      %s280 = sphi 0, %s264
      %s286 = sphi 0, %s288
      %s289 = sphi 0, %s286
      %s290 = sphi 0, %s289
      %s306 = sphi 0, %s290
      %s312 = sphi 0, %s314
      %s315 = sphi 0, %s312
      %s316 = sphi 0, %s315
      %s332 = sphi 0, %s316
      %s338 = sphi 0, %s340
      %s341 = sphi 0, %s338
      %s342 = sphi 0, %s341
      %s358 = sphi 0, %s342
      %s364 = sphi 0, %s366
      %s367 = sphi 0, %s364
      %s368 = sphi 0, %s367
      %s384 = sphi 0, %s368
      %s390 = sphi 0, %s392
      %s393 = sphi 0, %s390
      %s394 = sphi 0, %s393
      %s410 = sphi 0, %s394
      %s416 = sphi 0, %s418
      %s419 = sphi 0, %s416
      %s420 = sphi 0, %s419
      %s436 = sphi 0, %s420
      %s442 = sphi 0, %s444
      %s445 = sphi 0, %s442
      %s446 = sphi 0, %s445
      %s462 = sphi 0, %s446
      %s468 = sphi 0, %s470
      %s471 = sphi 0, %s468
      %s472 = sphi 0, %s471
      %s488 = sphi 0, %s472
      %s494 = sphi 0, %s496
      %s497 = sphi 0, %s494
      %s498 = sphi 0, %s497
      %s514 = sphi 0, %s498
      %s520 = sphi 0, %s522
      %s523 = sphi 0, %s520
      %s524 = sphi 0, %s523
      %s540 = sphi 0, %s524
      %s546 = sphi 0, %s548
      %s549 = sphi 0, %s546
      %s550 = sphi 0, %s549
      %s566 = sphi 0, %s550
      %s572 = sphi 0, %s574
      %s575 = sphi 0, %s572
      %s576 = sphi 0, %s575
      %s592 = sphi 0, %s576
      %s598 = sphi 0, %s600
      %s601 = sphi 0, %s598
      %s602 = sphi 0, %s601
      %s618 = sphi 0, %s602
      %s624 = sphi 0, %s626
      %s627 = sphi 0, %s624
      %s628 = sphi 0, %s627
      %s644 = sphi 0, %s628
      %s650 = sphi 0, %s652
      %s653 = sphi 0, %s650
      %s654 = sphi 0, %s653
      %s670 = sphi 0, %s654
      %s676 = sphi 0, %s678
      %s679 = sphi 0, %s676
      %s680 = sphi 0, %s679
      %s696 = sphi 0, %s680
      %s702 = sphi 0, %s704
      %s705 = sphi 0, %s702
      %s706 = sphi 0, %s705
      %s722 = sphi 0, %s706
      %s728 = sphi 0, %s730
      %s731 = sphi 0, %s728
      %s732 = sphi 0, %s731
      %s748 = sphi 0, %s732
    $region4: #{tpu_custom_call.1} parent=1 // loop_header_branch
      %59 = sbr.rel (%p57) target = $region8
    $region5: #{tpu_custom_call.1} parent=1 // loop_body
      %s61 = ssub.s32 %s56, 1
      %s62 = ssub.s32 %s56, 2
      %s69 = sadd.s32 1, %s64
      %p70 = scmp.ge.s32.totalorder %s69, 2
      %s71 = scalar_select %p70, 0, %s69
      %s72 = sadd.s32 1, %s63
      %s73 = scalar_select %p70, %s72, %s63
      %p74 = scmp.ge.s32.totalorder %s73, 2
      %s75 = scalar_select %p74, 0, %s73
      %s76 = ssub.s32 %s63, %s75
      %p77 = scmp.eq.s32.totalorder %s76, 0
      %s79 = sadd.s32 %s78, 1
      %s80 = scalar_select %p77, %s78, %s79
      %p83 = pneg %p77
      %p84 = scmp.eq.s32.totalorder %s56, 3
      %p85 = por %p83, %p84
      %p86 = scmp.ne.s32.totalorder %s78, %s81
      %p87 = scmp.eq.s32.totalorder %s56, 0
      %p88 = por %p86, %p87
      %p89 = scmp.ne.s32.totalorder %s78, %s81
      %p90 = scmp.eq.s32.totalorder %s61, 3
      %p91 = por %p89, %p90
      %p92 = scmp.ne.s32.totalorder %s81, %s82
      %p93 = scmp.eq.s32.totalorder %s61, 0
      %p94 = por %p92, %p93
      %p95 = scmp.ne.s32.totalorder %s81, %s82
      %p96 = scmp.eq.s32.totalorder %s62, 3
      %p97 = por %p95, %p96
      %p99 = scmp.ne.s32.totalorder %s82, %s98
      %p100 = scmp.eq.s32.totalorder %s62, 0
      %p101 = por %p99, %p100
      %s102 = ssub.s32 %s63, %s75
      %p103 = scmp.eq.s32.totalorder %s102, 0
      %s105 = sadd.s32 %s104, 1
      %s106 = scalar_select %p103, %s104, %s105
      %p109 = pneg %p103
      %p110 = scmp.eq.s32.totalorder %s56, 3
      %p111 = por %p109, %p110
      %p112 = scmp.ne.s32.totalorder %s104, %s107
      %p113 = scmp.eq.s32.totalorder %s56, 0
      %p114 = por %p112, %p113
      %p115 = scmp.ne.s32.totalorder %s104, %s107
      %p116 = scmp.eq.s32.totalorder %s61, 3
      %p117 = por %p115, %p116
      %p118 = scmp.ne.s32.totalorder %s107, %s108
      %p119 = scmp.eq.s32.totalorder %s61, 0
      %p120 = por %p118, %p119
      %p121 = scmp.ne.s32.totalorder %s107, %s108
      %p122 = scmp.eq.s32.totalorder %s62, 3
      %p123 = por %p121, %p122
      %p125 = scmp.ne.s32.totalorder %s108, %s124
      %p126 = scmp.eq.s32.totalorder %s62, 0
      %p127 = por %p125, %p126
      %s128 = ssub.s32 %s63, %s75
      %p129 = scmp.eq.s32.totalorder %s128, 0
      %s131 = sadd.s32 %s130, 1
      %s132 = scalar_select %p129, %s130, %s131
      %p135 = pneg %p129
      %p136 = scmp.eq.s32.totalorder %s56, 3
      %p137 = por %p135, %p136
      %p138 = scmp.ne.s32.totalorder %s130, %s133
      %p139 = scmp.eq.s32.totalorder %s56, 0
      %p140 = por %p138, %p139
      %p141 = scmp.ne.s32.totalorder %s130, %s133
      %p142 = scmp.eq.s32.totalorder %s61, 3
      %p143 = por %p141, %p142
      %p144 = scmp.ne.s32.totalorder %s133, %s134
      %p145 = scmp.eq.s32.totalorder %s61, 0
      %p146 = por %p144, %p145
      %p147 = scmp.ne.s32.totalorder %s133, %s134
      %p148 = scmp.eq.s32.totalorder %s62, 3
      %p149 = por %p147, %p148
      %p151 = scmp.ne.s32.totalorder %s134, %s150
      %p152 = scmp.eq.s32.totalorder %s62, 0
      %p153 = por %p151, %p152
      %s154 = ssub.s32 %s63, %s75
      %p155 = scmp.eq.s32.totalorder %s154, 0
      %s157 = sadd.s32 %s156, 1
      %s158 = scalar_select %p155, %s156, %s157
      %p161 = pneg %p155
      %p162 = scmp.eq.s32.totalorder %s56, 3
      %p163 = por %p161, %p162
      %p164 = scmp.ne.s32.totalorder %s156, %s159
      %p165 = scmp.eq.s32.totalorder %s56, 0
      %p166 = por %p164, %p165
      %p167 = scmp.ne.s32.totalorder %s156, %s159
      %p168 = scmp.eq.s32.totalorder %s61, 3
      %p169 = por %p167, %p168
      %p170 = scmp.ne.s32.totalorder %s159, %s160
      %p171 = scmp.eq.s32.totalorder %s61, 0
      %p172 = por %p170, %p171
      %p173 = scmp.ne.s32.totalorder %s159, %s160
      %p174 = scmp.eq.s32.totalorder %s62, 3
      %p175 = por %p173, %p174
      %p177 = scmp.ne.s32.totalorder %s160, %s176
      %p178 = scmp.eq.s32.totalorder %s62, 0
      %p179 = por %p177, %p178
      %s180 = ssub.s32 %s64, %s71
      %p181 = scmp.eq.s32.totalorder %s180, 0
      %s183 = sadd.s32 %s182, 1
      %s184 = scalar_select %p181, %s182, %s183
      %p187 = pneg %p181
      %p188 = scmp.eq.s32.totalorder %s56, 3
      %p189 = por %p187, %p188
      %p190 = scmp.ne.s32.totalorder %s182, %s185
      %p191 = scmp.eq.s32.totalorder %s56, 0
      %p192 = por %p190, %p191
      %p193 = scmp.ne.s32.totalorder %s182, %s185
      %p194 = scmp.eq.s32.totalorder %s61, 3
      %p195 = por %p193, %p194
      %p196 = scmp.ne.s32.totalorder %s185, %s186
      %p197 = scmp.eq.s32.totalorder %s61, 0
      %p198 = por %p196, %p197
      %p199 = scmp.ne.s32.totalorder %s185, %s186
      %p200 = scmp.eq.s32.totalorder %s62, 3
      %p201 = por %p199, %p200
      %p203 = scmp.ne.s32.totalorder %s186, %s202
      %p204 = scmp.eq.s32.totalorder %s62, 0
      %p205 = por %p203, %p204
      %s206 = ssub.s32 %s64, %s71
      %p207 = scmp.eq.s32.totalorder %s206, 0
      %s209 = sadd.s32 %s208, 1
      %s210 = scalar_select %p207, %s208, %s209
      %p213 = pneg %p207
      %p214 = scmp.eq.s32.totalorder %s56, 3
      %p215 = por %p213, %p214
      %p216 = scmp.ne.s32.totalorder %s208, %s211
      %p217 = scmp.eq.s32.totalorder %s56, 0
      %p218 = por %p216, %p217
      %p219 = scmp.ne.s32.totalorder %s208, %s211
      %p220 = scmp.eq.s32.totalorder %s61, 3
      %p221 = por %p219, %p220
      %p222 = scmp.ne.s32.totalorder %s211, %s212
      %p223 = scmp.eq.s32.totalorder %s61, 0
      %p224 = por %p222, %p223
      %p225 = scmp.ne.s32.totalorder %s211, %s212
      %p226 = scmp.eq.s32.totalorder %s62, 3
      %p227 = por %p225, %p226
      %p229 = scmp.ne.s32.totalorder %s212, %s228
      %p230 = scmp.eq.s32.totalorder %s62, 0
      %p231 = por %p229, %p230
      %s232 = ssub.s32 %s64, %s71
      %p233 = scmp.eq.s32.totalorder %s232, 0
      %s235 = sadd.s32 %s234, 1
      %s236 = scalar_select %p233, %s234, %s235
      %p239 = pneg %p233
      %p240 = scmp.eq.s32.totalorder %s56, 3
      %p241 = por %p239, %p240
      %p242 = scmp.ne.s32.totalorder %s234, %s237
      %p243 = scmp.eq.s32.totalorder %s56, 0
      %p244 = por %p242, %p243
      %p245 = scmp.ne.s32.totalorder %s234, %s237
      %p246 = scmp.eq.s32.totalorder %s61, 3
      %p247 = por %p245, %p246
      %p248 = scmp.ne.s32.totalorder %s237, %s238
      %p249 = scmp.eq.s32.totalorder %s61, 0
      %p250 = por %p248, %p249
      %p251 = scmp.ne.s32.totalorder %s237, %s238
      %p252 = scmp.eq.s32.totalorder %s62, 3
      %p253 = por %p251, %p252
      %p255 = scmp.ne.s32.totalorder %s238, %s254
      %p256 = scmp.eq.s32.totalorder %s62, 0
      %p257 = por %p255, %p256
      %s258 = ssub.s32 %s64, %s71
      %p259 = scmp.eq.s32.totalorder %s258, 0
      %s261 = sadd.s32 %s260, 1
      %s262 = scalar_select %p259, %s260, %s261
      %p265 = pneg %p259
      %p266 = scmp.eq.s32.totalorder %s56, 3
      %p267 = por %p265, %p266
      %p268 = scmp.ne.s32.totalorder %s260, %s263
      %p269 = scmp.eq.s32.totalorder %s56, 0
      %p270 = por %p268, %p269
      %p271 = scmp.ne.s32.totalorder %s260, %s263
      %p272 = scmp.eq.s32.totalorder %s61, 3
      %p273 = por %p271, %p272
      %p274 = scmp.ne.s32.totalorder %s263, %s264
      %p275 = scmp.eq.s32.totalorder %s61, 0
      %p276 = por %p274, %p275
      %p277 = scmp.ne.s32.totalorder %s263, %s264
      %p278 = scmp.eq.s32.totalorder %s62, 3
      %p279 = por %p277, %p278
      %p281 = scmp.ne.s32.totalorder %s264, %s280
      %p282 = scmp.eq.s32.totalorder %s62, 0
      %p283 = por %p281, %p282
      %s284 = ssub.s32 %s64, %s71
      %p285 = scmp.eq.s32.totalorder %s284, 0
      %s287 = sadd.s32 %s286, 1
      %s288 = scalar_select %p285, %s286, %s287
      %p291 = pneg %p285
      %p292 = scmp.eq.s32.totalorder %s56, 3
      %p293 = por %p291, %p292
      %p294 = scmp.ne.s32.totalorder %s286, %s289
      %p295 = scmp.eq.s32.totalorder %s56, 0
      %p296 = por %p294, %p295
      %p297 = scmp.ne.s32.totalorder %s286, %s289
      %p298 = scmp.eq.s32.totalorder %s61, 3
      %p299 = por %p297, %p298
      %p300 = scmp.ne.s32.totalorder %s289, %s290
      %p301 = scmp.eq.s32.totalorder %s61, 0
      %p302 = por %p300, %p301
      %p303 = scmp.ne.s32.totalorder %s289, %s290
      %p304 = scmp.eq.s32.totalorder %s62, 3
      %p305 = por %p303, %p304
      %p307 = scmp.ne.s32.totalorder %s290, %s306
      %p308 = scmp.eq.s32.totalorder %s62, 0
      %p309 = por %p307, %p308
      %s310 = ssub.s32 %s64, %s71
      %p311 = scmp.eq.s32.totalorder %s310, 0
      %s313 = sadd.s32 %s312, 1
      %s314 = scalar_select %p311, %s312, %s313
      %p317 = pneg %p311
      %p318 = scmp.eq.s32.totalorder %s56, 3
      %p319 = por %p317, %p318
      %p320 = scmp.ne.s32.totalorder %s312, %s315
      %p321 = scmp.eq.s32.totalorder %s56, 0
      %p322 = por %p320, %p321
      %p323 = scmp.ne.s32.totalorder %s312, %s315
      %p324 = scmp.eq.s32.totalorder %s61, 3
      %p325 = por %p323, %p324
      %p326 = scmp.ne.s32.totalorder %s315, %s316
      %p327 = scmp.eq.s32.totalorder %s61, 0
      %p328 = por %p326, %p327
      %p329 = scmp.ne.s32.totalorder %s315, %s316
      %p330 = scmp.eq.s32.totalorder %s62, 3
      %p331 = por %p329, %p330
      %p333 = scmp.ne.s32.totalorder %s316, %s332
      %p334 = scmp.eq.s32.totalorder %s62, 0
      %p335 = por %p333, %p334
      %s336 = ssub.s32 %s64, %s71
      %p337 = scmp.eq.s32.totalorder %s336, 0
      %s339 = sadd.s32 %s338, 1
      %s340 = scalar_select %p337, %s338, %s339
      %p343 = pneg %p337
      %p344 = scmp.eq.s32.totalorder %s56, 3
      %p345 = por %p343, %p344
      %p346 = scmp.ne.s32.totalorder %s338, %s341
      %p347 = scmp.eq.s32.totalorder %s56, 0
      %p348 = por %p346, %p347
      %p349 = scmp.ne.s32.totalorder %s338, %s341
      %p350 = scmp.eq.s32.totalorder %s61, 3
      %p351 = por %p349, %p350
      %p352 = scmp.ne.s32.totalorder %s341, %s342
      %p353 = scmp.eq.s32.totalorder %s61, 0
      %p354 = por %p352, %p353
      %p355 = scmp.ne.s32.totalorder %s341, %s342
      %p356 = scmp.eq.s32.totalorder %s62, 3
      %p357 = por %p355, %p356
      %p359 = scmp.ne.s32.totalorder %s342, %s358
      %p360 = scmp.eq.s32.totalorder %s62, 0
      %p361 = por %p359, %p360
      %s362 = ssub.s32 %s64, %s71
      %p363 = scmp.eq.s32.totalorder %s362, 0
      %s365 = sadd.s32 %s364, 1
      %s366 = scalar_select %p363, %s364, %s365
      %p369 = pneg %p363
      %p370 = scmp.eq.s32.totalorder %s56, 3
      %p371 = por %p369, %p370
      %p372 = scmp.ne.s32.totalorder %s364, %s367
      %p373 = scmp.eq.s32.totalorder %s56, 0
      %p374 = por %p372, %p373
      %p375 = scmp.ne.s32.totalorder %s364, %s367
      %p376 = scmp.eq.s32.totalorder %s61, 3
      %p377 = por %p375, %p376
      %p378 = scmp.ne.s32.totalorder %s367, %s368
      %p379 = scmp.eq.s32.totalorder %s61, 0
      %p380 = por %p378, %p379
      %p381 = scmp.ne.s32.totalorder %s367, %s368
      %p382 = scmp.eq.s32.totalorder %s62, 3
      %p383 = por %p381, %p382
      %p385 = scmp.ne.s32.totalorder %s368, %s384
      %p386 = scmp.eq.s32.totalorder %s62, 0
      %p387 = por %p385, %p386
      %s388 = ssub.s32 %s64, %s71
      %p389 = scmp.eq.s32.totalorder %s388, 0
      %s391 = sadd.s32 %s390, 1
      %s392 = scalar_select %p389, %s390, %s391
      %p395 = pneg %p389
      %p396 = scmp.eq.s32.totalorder %s56, 3
      %p397 = por %p395, %p396
      %p398 = scmp.ne.s32.totalorder %s390, %s393
      %p399 = scmp.eq.s32.totalorder %s56, 0
      %p400 = por %p398, %p399
      %p401 = scmp.ne.s32.totalorder %s390, %s393
      %p402 = scmp.eq.s32.totalorder %s61, 3
      %p403 = por %p401, %p402
      %p404 = scmp.ne.s32.totalorder %s393, %s394
      %p405 = scmp.eq.s32.totalorder %s61, 0
      %p406 = por %p404, %p405
      %p407 = scmp.ne.s32.totalorder %s393, %s394
      %p408 = scmp.eq.s32.totalorder %s62, 3
      %p409 = por %p407, %p408
      %p411 = scmp.ne.s32.totalorder %s394, %s410
      %p412 = scmp.eq.s32.totalorder %s62, 0
      %p413 = por %p411, %p412
      %s414 = ssub.s32 %s64, %s71
      %p415 = scmp.eq.s32.totalorder %s414, 0
      %s417 = sadd.s32 %s416, 1
      %s418 = scalar_select %p415, %s416, %s417
      %p421 = pneg %p415
      %p422 = scmp.eq.s32.totalorder %s56, 3
      %p423 = por %p421, %p422
      %p424 = scmp.ne.s32.totalorder %s416, %s419
      %p425 = scmp.eq.s32.totalorder %s56, 0
      %p426 = por %p424, %p425
      %p427 = scmp.ne.s32.totalorder %s416, %s419
      %p428 = scmp.eq.s32.totalorder %s61, 3
      %p429 = por %p427, %p428
      %p430 = scmp.ne.s32.totalorder %s419, %s420
      %p431 = scmp.eq.s32.totalorder %s61, 0
      %p432 = por %p430, %p431
      %p433 = scmp.ne.s32.totalorder %s419, %s420
      %p434 = scmp.eq.s32.totalorder %s62, 3
      %p435 = por %p433, %p434
      %p437 = scmp.ne.s32.totalorder %s420, %s436
      %p438 = scmp.eq.s32.totalorder %s62, 0
      %p439 = por %p437, %p438
      %s440 = ssub.s32 %s64, %s71
      %p441 = scmp.eq.s32.totalorder %s440, 0
      %s443 = sadd.s32 %s442, 1
      %s444 = scalar_select %p441, %s442, %s443
      %p447 = pneg %p441
      %p448 = scmp.eq.s32.totalorder %s56, 3
      %p449 = por %p447, %p448
      %p450 = scmp.ne.s32.totalorder %s442, %s445
      %p451 = scmp.eq.s32.totalorder %s56, 0
      %p452 = por %p450, %p451
      %p453 = scmp.ne.s32.totalorder %s442, %s445
      %p454 = scmp.eq.s32.totalorder %s61, 3
      %p455 = por %p453, %p454
      %p456 = scmp.ne.s32.totalorder %s445, %s446
      %p457 = scmp.eq.s32.totalorder %s61, 0
      %p458 = por %p456, %p457
      %p459 = scmp.ne.s32.totalorder %s445, %s446
      %p460 = scmp.eq.s32.totalorder %s62, 3
      %p461 = por %p459, %p460
      %p463 = scmp.ne.s32.totalorder %s446, %s462
      %p464 = scmp.eq.s32.totalorder %s62, 0
      %p465 = por %p463, %p464
      %s466 = ssub.s32 %s64, %s71
      %p467 = scmp.eq.s32.totalorder %s466, 0
      %s469 = sadd.s32 %s468, 1
      %s470 = scalar_select %p467, %s468, %s469
      %p473 = pneg %p467
      %p474 = scmp.eq.s32.totalorder %s56, 3
      %p475 = por %p473, %p474
      %p476 = scmp.ne.s32.totalorder %s468, %s471
      %p477 = scmp.eq.s32.totalorder %s56, 0
      %p478 = por %p476, %p477
      %p479 = scmp.ne.s32.totalorder %s468, %s471
      %p480 = scmp.eq.s32.totalorder %s61, 3
      %p481 = por %p479, %p480
      %p482 = scmp.ne.s32.totalorder %s471, %s472
      %p483 = scmp.eq.s32.totalorder %s61, 0
      %p484 = por %p482, %p483
      %p485 = scmp.ne.s32.totalorder %s471, %s472
      %p486 = scmp.eq.s32.totalorder %s62, 3
      %p487 = por %p485, %p486
      %p489 = scmp.ne.s32.totalorder %s472, %s488
      %p490 = scmp.eq.s32.totalorder %s62, 0
      %p491 = por %p489, %p490
      %s492 = ssub.s32 %s64, %s71
      %p493 = scmp.eq.s32.totalorder %s492, 0
      %s495 = sadd.s32 %s494, 1
      %s496 = scalar_select %p493, %s494, %s495
      %p499 = pneg %p493
      %p500 = scmp.eq.s32.totalorder %s56, 3
      %p501 = por %p499, %p500
      %p502 = scmp.ne.s32.totalorder %s494, %s497
      %p503 = scmp.eq.s32.totalorder %s56, 0
      %p504 = por %p502, %p503
      %p505 = scmp.ne.s32.totalorder %s494, %s497
      %p506 = scmp.eq.s32.totalorder %s61, 3
      %p507 = por %p505, %p506
      %p508 = scmp.ne.s32.totalorder %s497, %s498
      %p509 = scmp.eq.s32.totalorder %s61, 0
      %p510 = por %p508, %p509
      %p511 = scmp.ne.s32.totalorder %s497, %s498
      %p512 = scmp.eq.s32.totalorder %s62, 3
      %p513 = por %p511, %p512
      %p515 = scmp.ne.s32.totalorder %s498, %s514
      %p516 = scmp.eq.s32.totalorder %s62, 0
      %p517 = por %p515, %p516
      %s518 = ssub.s32 %s64, %s71
      %p519 = scmp.eq.s32.totalorder %s518, 0
      %s521 = sadd.s32 %s520, 1
      %s522 = scalar_select %p519, %s520, %s521
      %p525 = pneg %p519
      %p526 = scmp.eq.s32.totalorder %s56, 3
      %p527 = por %p525, %p526
      %p528 = scmp.ne.s32.totalorder %s520, %s523
      %p529 = scmp.eq.s32.totalorder %s56, 0
      %p530 = por %p528, %p529
      %p531 = scmp.ne.s32.totalorder %s520, %s523
      %p532 = scmp.eq.s32.totalorder %s61, 3
      %p533 = por %p531, %p532
      %p534 = scmp.ne.s32.totalorder %s523, %s524
      %p535 = scmp.eq.s32.totalorder %s61, 0
      %p536 = por %p534, %p535
      %p537 = scmp.ne.s32.totalorder %s523, %s524
      %p538 = scmp.eq.s32.totalorder %s62, 3
      %p539 = por %p537, %p538
      %p541 = scmp.ne.s32.totalorder %s524, %s540
      %p542 = scmp.eq.s32.totalorder %s62, 0
      %p543 = por %p541, %p542
      %s544 = ssub.s32 %s64, %s71
      %p545 = scmp.eq.s32.totalorder %s544, 0
      %s547 = sadd.s32 %s546, 1
      %s548 = scalar_select %p545, %s546, %s547
      %p551 = pneg %p545
      %p552 = scmp.eq.s32.totalorder %s56, 3
      %p553 = por %p551, %p552
      %p554 = scmp.ne.s32.totalorder %s546, %s549
      %p555 = scmp.eq.s32.totalorder %s56, 0
      %p556 = por %p554, %p555
      %p557 = scmp.ne.s32.totalorder %s546, %s549
      %p558 = scmp.eq.s32.totalorder %s61, 3
      %p559 = por %p557, %p558
      %p560 = scmp.ne.s32.totalorder %s549, %s550
      %p561 = scmp.eq.s32.totalorder %s61, 0
      %p562 = por %p560, %p561
      %p563 = scmp.ne.s32.totalorder %s549, %s550
      %p564 = scmp.eq.s32.totalorder %s62, 3
      %p565 = por %p563, %p564
      %p567 = scmp.ne.s32.totalorder %s550, %s566
      %p568 = scmp.eq.s32.totalorder %s62, 0
      %p569 = por %p567, %p568
      %s570 = ssub.s32 %s64, %s71
      %p571 = scmp.eq.s32.totalorder %s570, 0
      %s573 = sadd.s32 %s572, 1
      %s574 = scalar_select %p571, %s572, %s573
      %p577 = pneg %p571
      %p578 = scmp.eq.s32.totalorder %s56, 3
      %p579 = por %p577, %p578
      %p580 = scmp.ne.s32.totalorder %s572, %s575
      %p581 = scmp.eq.s32.totalorder %s56, 0
      %p582 = por %p580, %p581
      %p583 = scmp.ne.s32.totalorder %s572, %s575
      %p584 = scmp.eq.s32.totalorder %s61, 3
      %p585 = por %p583, %p584
      %p586 = scmp.ne.s32.totalorder %s575, %s576
      %p587 = scmp.eq.s32.totalorder %s61, 0
      %p588 = por %p586, %p587
      %p589 = scmp.ne.s32.totalorder %s575, %s576
      %p590 = scmp.eq.s32.totalorder %s62, 3
      %p591 = por %p589, %p590
      %p593 = scmp.ne.s32.totalorder %s576, %s592
      %p594 = scmp.eq.s32.totalorder %s62, 0
      %p595 = por %p593, %p594
      %s596 = ssub.s32 %s64, %s71
      %p597 = scmp.eq.s32.totalorder %s596, 0
      %s599 = sadd.s32 %s598, 1
      %s600 = scalar_select %p597, %s598, %s599
      %p603 = pneg %p597
      %p604 = scmp.eq.s32.totalorder %s56, 3
      %p605 = por %p603, %p604
      %p606 = scmp.ne.s32.totalorder %s598, %s601
      %p607 = scmp.eq.s32.totalorder %s56, 0
      %p608 = por %p606, %p607
      %p609 = scmp.ne.s32.totalorder %s598, %s601
      %p610 = scmp.eq.s32.totalorder %s61, 3
      %p611 = por %p609, %p610
      %p612 = scmp.ne.s32.totalorder %s601, %s602
      %p613 = scmp.eq.s32.totalorder %s61, 0
      %p614 = por %p612, %p613
      %p615 = scmp.ne.s32.totalorder %s601, %s602
      %p616 = scmp.eq.s32.totalorder %s62, 3
      %p617 = por %p615, %p616
      %p619 = scmp.ne.s32.totalorder %s602, %s618
      %p620 = scmp.eq.s32.totalorder %s62, 0
      %p621 = por %p619, %p620
      %s622 = ssub.s32 %s64, %s71
      %p623 = scmp.eq.s32.totalorder %s622, 0
      %s625 = sadd.s32 %s624, 1
      %s626 = scalar_select %p623, %s624, %s625
      %p629 = pneg %p623
      %p630 = scmp.eq.s32.totalorder %s56, 3
      %p631 = por %p629, %p630
      %p632 = scmp.ne.s32.totalorder %s624, %s627
      %p633 = scmp.eq.s32.totalorder %s56, 0
      %p634 = por %p632, %p633
      %p635 = scmp.ne.s32.totalorder %s624, %s627
      %p636 = scmp.eq.s32.totalorder %s61, 3
      %p637 = por %p635, %p636
      %p638 = scmp.ne.s32.totalorder %s627, %s628
      %p639 = scmp.eq.s32.totalorder %s61, 0
      %p640 = por %p638, %p639
      %p641 = scmp.ne.s32.totalorder %s627, %s628
      %p642 = scmp.eq.s32.totalorder %s62, 3
      %p643 = por %p641, %p642
      %p645 = scmp.ne.s32.totalorder %s628, %s644
      %p646 = scmp.eq.s32.totalorder %s62, 0
      %p647 = por %p645, %p646
      %s648 = ssub.s32 %s64, %s71
      %p649 = scmp.eq.s32.totalorder %s648, 0
      %s651 = sadd.s32 %s650, 1
      %s652 = scalar_select %p649, %s650, %s651
      %p655 = pneg %p649
      %p656 = scmp.eq.s32.totalorder %s56, 3
      %p657 = por %p655, %p656
      %p658 = scmp.ne.s32.totalorder %s650, %s653
      %p659 = scmp.eq.s32.totalorder %s56, 0
      %p660 = por %p658, %p659
      %p661 = scmp.ne.s32.totalorder %s650, %s653
      %p662 = scmp.eq.s32.totalorder %s61, 3
      %p663 = por %p661, %p662
      %p664 = scmp.ne.s32.totalorder %s653, %s654
      %p665 = scmp.eq.s32.totalorder %s61, 0
      %p666 = por %p664, %p665
      %p667 = scmp.ne.s32.totalorder %s653, %s654
      %p668 = scmp.eq.s32.totalorder %s62, 3
      %p669 = por %p667, %p668
      %p671 = scmp.ne.s32.totalorder %s654, %s670
      %p672 = scmp.eq.s32.totalorder %s62, 0
      %p673 = por %p671, %p672
      %s674 = ssub.s32 %s64, %s71
      %p675 = scmp.eq.s32.totalorder %s674, 0
      %s677 = sadd.s32 %s676, 1
      %s678 = scalar_select %p675, %s676, %s677
      %p681 = pneg %p675
      %p682 = scmp.eq.s32.totalorder %s56, 3
      %p683 = por %p681, %p682
      %p684 = scmp.ne.s32.totalorder %s676, %s679
      %p685 = scmp.eq.s32.totalorder %s56, 0
      %p686 = por %p684, %p685
      %p687 = scmp.ne.s32.totalorder %s676, %s679
      %p688 = scmp.eq.s32.totalorder %s61, 3
      %p689 = por %p687, %p688
      %p690 = scmp.ne.s32.totalorder %s679, %s680
      %p691 = scmp.eq.s32.totalorder %s61, 0
      %p692 = por %p690, %p691
      %p693 = scmp.ne.s32.totalorder %s679, %s680
      %p694 = scmp.eq.s32.totalorder %s62, 3
      %p695 = por %p693, %p694
      %p697 = scmp.ne.s32.totalorder %s680, %s696
      %p698 = scmp.eq.s32.totalorder %s62, 0
      %p699 = por %p697, %p698
      %s700 = ssub.s32 %s63, %s75
      %p701 = scmp.eq.s32.totalorder %s700, 0
      %s703 = sadd.s32 %s702, 1
      %s704 = scalar_select %p701, %s702, %s703
      %p707 = pneg %p701
      %p708 = scmp.eq.s32.totalorder %s56, 3
      %p709 = por %p707, %p708
      %p710 = scmp.ne.s32.totalorder %s702, %s705
      %p711 = scmp.eq.s32.totalorder %s56, 0
      %p712 = por %p710, %p711
      %p713 = scmp.ne.s32.totalorder %s702, %s705
      %p714 = scmp.eq.s32.totalorder %s61, 3
      %p715 = por %p713, %p714
      %p716 = scmp.ne.s32.totalorder %s705, %s706
      %p717 = scmp.eq.s32.totalorder %s61, 0
      %p718 = por %p716, %p717
      %p719 = scmp.ne.s32.totalorder %s705, %s706
      %p720 = scmp.eq.s32.totalorder %s62, 3
      %p721 = por %p719, %p720
      %p723 = scmp.ne.s32.totalorder %s706, %s722
      %p724 = scmp.eq.s32.totalorder %s62, 0
      %p725 = por %p723, %p724
      %s726 = ssub.s32 %s63, %s75
      %p727 = scmp.eq.s32.totalorder %s726, 0
      %s729 = sadd.s32 %s728, 1
      %s730 = scalar_select %p727, %s728, %s729
      %p733 = pneg %p727
      %p734 = scmp.eq.s32.totalorder %s56, 3
      %p735 = por %p733, %p734
      %p736 = scmp.ne.s32.totalorder %s728, %s731
      %p737 = scmp.eq.s32.totalorder %s56, 0
      %p738 = por %p736, %p737
      %p739 = scmp.ne.s32.totalorder %s728, %s731
      %p740 = scmp.eq.s32.totalorder %s61, 3
      %p741 = por %p739, %p740
      %p742 = scmp.ne.s32.totalorder %s731, %s732
      %p743 = scmp.eq.s32.totalorder %s61, 0
      %p744 = por %p742, %p743
      %p745 = scmp.ne.s32.totalorder %s731, %s732
      %p746 = scmp.eq.s32.totalorder %s62, 3
      %p747 = por %p745, %p746
      %p749 = scmp.ne.s32.totalorder %s732, %s748
      %p750 = scmp.eq.s32.totalorder %s62, 0
      %p751 = por %p749, %p750
      %p752 = scmp.le.s32.totalorder 1, %s56
      %p753 = scmp.lt.s32.totalorder %s56, 5
      %p754 = pnand %p752, %p753
      %p755 = pneg %p754
      // Predicated region
      $region9: #{tpu_custom_call.1} parent=5 // pred_check
        _
      $region10: #{tpu_custom_call.1} parent=5 // pred_check_branch
        %757 = sbr.rel (%p754) target = $region12
      $region11: #{tpu_custom_call.1} parent=5 // pred_region
        %s758 = ssub.s32 %s56, 1
      $region12: #{tpu_custom_call.1} parent=5 // pred_fallthru
        _
      %p759 = scmp.lt.s32.totalorder %s56, 4
      // Predicated region
      $region13: #{tpu_custom_call.1} parent=5 // pred_check
        %p760 = pneg %p759
      $region14: #{tpu_custom_call.1} parent=5 // pred_check_branch
        %762 = sbr.rel (%p760) target = $region16
      $region15: #{tpu_custom_call.1} parent=5 // pred_region
        // Predicated region
        $region17: #{tpu_custom_call.1} parent=15 // pred_check
          %p763 = pneg %p88
        $region18: #{tpu_custom_call.1} parent=15 // pred_check_branch
          %765 = sbr.rel (%p763) target = $region20
        $region19: #{tpu_custom_call.1} parent=15 // pred_region
          %s766 = sand.u32 %s78, 1
          %s767 = scalar_lea.sflag [#allocation3], %s766
          %s768 = sand.u32 %s78, 1
          %s769 = smul.addr %s768, 8
          %s770 = scalar_lea.vmem [#allocation2], %s769
          %772 = vsyncadd %s767, 0
          %s773 = smul.addr %s63, 8
          %s774 = scalar_lea.hbm %s0, %s773
          %s776 = sshll.u32 %s774, 4
          %s777 = int_to_ptr.hbm [resolvable:$true] %s776
          %s778 = sshll.u32 %s770, 4
          %s779 = int_to_ptr.vmem [resolvable:$true] %s778
          %781 = dma.hbm_to_vmem [thread:$0]  %s777, 128, %s779, %s767
        $region20: #{tpu_custom_call.1} parent=15 // pred_fallthru
          _
        // Predicated region
        $region21: #{tpu_custom_call.1} parent=15 // pred_check
          %p782 = pneg %p114
        $region22: #{tpu_custom_call.1} parent=15 // pred_check_branch
          %784 = sbr.rel (%p782) target = $region24
        $region23: #{tpu_custom_call.1} parent=15 // pred_region
          %s785 = sand.u32 %s56, 1
          %s786 = scalar_lea.sflag [#allocation6], %s785
          %s787 = sand.u32 %s104, 1
          %s788 = smul.addr %s787, 8
          %s789 = scalar_lea.vmem [#allocation5], %s788
          %791 = vsyncadd %s786, 0
          %s792 = smul.addr %s63, 8
          %s793 = scalar_lea.hbm %s1, %s792
          %s795 = sshll.u32 %s793, 4
          %s796 = int_to_ptr.hbm [resolvable:$true] %s795
          %s797 = sshll.u32 %s789, 4
          %s798 = int_to_ptr.vmem [resolvable:$true] %s797
          %800 = dma.hbm_to_vmem [thread:$0]  %s796, 128, %s798, %s786
        $region24: #{tpu_custom_call.1} parent=15 // pred_fallthru
          _
        // Predicated region
        $region25: #{tpu_custom_call.1} parent=15 // pred_check
          %p801 = pneg %p140
        $region26: #{tpu_custom_call.1} parent=15 // pred_check_branch
          %803 = sbr.rel (%p801) target = $region28
        $region27: #{tpu_custom_call.1} parent=15 // pred_region
          %s804 = sand.u32 %s56, 1
          %s805 = scalar_lea.sflag [#allocation6], %s804
          %s806 = sand.u32 %s130, 1
          %s807 = smul.addr %s806, 8
          %s808 = scalar_lea.vmem [#allocation7], %s807
          %810 = vsyncadd %s805, 0
          %s811 = smul.addr %s63, 8
          %s812 = scalar_lea.hbm %s2, %s811
          %s814 = sshll.u32 %s812, 4
          %s815 = int_to_ptr.hbm [resolvable:$true] %s814
          %s816 = sshll.u32 %s808, 4
          %s817 = int_to_ptr.vmem [resolvable:$true] %s816
          %819 = dma.hbm_to_vmem [thread:$0]  %s815, 128, %s817, %s805
        $region28: #{tpu_custom_call.1} parent=15 // pred_fallthru
          _
        // Predicated region
        $region29: #{tpu_custom_call.1} parent=15 // pred_check
          %p820 = pneg %p166
        $region30: #{tpu_custom_call.1} parent=15 // pred_check_branch
          %822 = sbr.rel (%p820) target = $region32
        $region31: #{tpu_custom_call.1} parent=15 // pred_region
          %s823 = sand.u32 %s56, 1
          %s824 = scalar_lea.sflag [#allocation9], %s823
          %s825 = sand.u32 %s156, 1
          %s826 = scalar_lea.vmem [#allocation8], %s825
          %828 = vsyncadd %s824, 0
          %s829 = scalar_lea.hbm %s3, %s63
          %s831 = sshll.u32 %s829, 4
          %s832 = int_to_ptr.hbm [resolvable:$true] %s831
          %s833 = sshll.u32 %s826, 4
          %s834 = int_to_ptr.vmem [resolvable:$true] %s833
          %836 = dma.hbm_to_vmem [thread:$0]  %s832, 16, %s834, %s824
        $region32: #{tpu_custom_call.1} parent=15 // pred_fallthru
          _
        // Predicated region
        $region33: #{tpu_custom_call.1} parent=15 // pred_check
          %p837 = pneg %p192
        $region34: #{tpu_custom_call.1} parent=15 // pred_check_branch
          %839 = sbr.rel (%p837) target = $region36
        $region35: #{tpu_custom_call.1} parent=15 // pred_region
          %p840 = scmp.lt.s32.totalorder %s64, 1
          %s841 = scalar_select %p840, %s64, 1
          %s842 = smul.addr %s841, 4
          %s843 = smul.addr %s842, 4
          %s844 = scalar_lea.vmem %s4, %s843
        $region36: #{tpu_custom_call.1} parent=15 // pred_fallthru
          _
        // Predicated region
        $region37: #{tpu_custom_call.1} parent=15 // pred_check
          %p845 = pneg %p218
        $region38: #{tpu_custom_call.1} parent=15 // pred_check_branch
          %847 = sbr.rel (%p845) target = $region40
        $region39: #{tpu_custom_call.1} parent=15 // pred_region
          %p848 = scmp.lt.s32.totalorder %s64, 1
          %s849 = scalar_select %p848, %s64, 1
          %s850 = scalar_lea.vmem %s5, %s849
        $region40: #{tpu_custom_call.1} parent=15 // pred_fallthru
          _
        // Predicated region
        $region41: #{tpu_custom_call.1} parent=15 // pred_check
          %p851 = pneg %p244
        $region42: #{tpu_custom_call.1} parent=15 // pred_check_branch
          %853 = sbr.rel (%p851) target = $region44
        $region43: #{tpu_custom_call.1} parent=15 // pred_region
          %p854 = scmp.lt.s32.totalorder %s64, 1
          %s855 = scalar_select %p854, %s64, 1
          %s856 = smul.addr %s855, 4
          %s857 = smul.addr %s856, 4
          %s858 = scalar_lea.vmem %s6, %s857
        $region44: #{tpu_custom_call.1} parent=15 // pred_fallthru
          _
        // Predicated region
        $region45: #{tpu_custom_call.1} parent=15 // pred_check
          %p859 = pneg %p270
        $region46: #{tpu_custom_call.1} parent=15 // pred_check_branch
          %861 = sbr.rel (%p859) target = $region48
        $region47: #{tpu_custom_call.1} parent=15 // pred_region
          %p862 = scmp.lt.s32.totalorder %s64, 1
          %s863 = scalar_select %p862, %s64, 1
          %s864 = scalar_lea.vmem %s7, %s863
        $region48: #{tpu_custom_call.1} parent=15 // pred_fallthru
          _
        // Predicated region
        $region49: #{tpu_custom_call.1} parent=15 // pred_check
          %p865 = pneg %p296
        $region50: #{tpu_custom_call.1} parent=15 // pred_check_branch
          %867 = sbr.rel (%p865) target = $region52
        $region51: #{tpu_custom_call.1} parent=15 // pred_region
          %p868 = scmp.lt.s32.totalorder %s64, 1
          %s869 = scalar_select %p868, %s64, 1
          %s870 = smul.addr %s869, 4
          %s871 = smul.addr %s870, 4
          %s872 = scalar_lea.vmem %s8, %s871
        $region52: #{tpu_custom_call.1} parent=15 // pred_fallthru
          _
        // Predicated region
        $region53: #{tpu_custom_call.1} parent=15 // pred_check
          %p873 = pneg %p322
        $region54: #{tpu_custom_call.1} parent=15 // pred_check_branch
          %875 = sbr.rel (%p873) target = $region56
        $region55: #{tpu_custom_call.1} parent=15 // pred_region
          %p876 = scmp.lt.s32.totalorder %s64, 1
          %s877 = scalar_select %p876, %s64, 1
          %s878 = scalar_lea.vmem %s9, %s877
        $region56: #{tpu_custom_call.1} parent=15 // pred_fallthru
          _
        // Predicated region
        $region57: #{tpu_custom_call.1} parent=15 // pred_check
          %p879 = pneg %p348
        $region58: #{tpu_custom_call.1} parent=15 // pred_check_branch
          %881 = sbr.rel (%p879) target = $region60
        $region59: #{tpu_custom_call.1} parent=15 // pred_region
          %s882 = sand.u32 %s56, 1
          %s883 = scalar_lea.sflag [#allocation9], %s882
          %s884 = sand.u32 %s338, 1
          %s885 = smul.addr %s884, 16
          %s886 = scalar_lea.vmem [#allocation10], %s885
          %888 = vsyncadd %s883, 0
          %s889 = smul.addr %s64, 4
          %s890 = smul.addr %s889, 4
          %s891 = scalar_lea.hbm %s10, %s890
          %s892 = sshll.u32 %s891, 4
          %s893 = int_to_ptr.hbm [resolvable:$true] %s892
          %s894 = sshll.u32 %s886, 4
          %s895 = int_to_ptr.vmem [resolvable:$true] %s894
          %900 = dma.hbm_to_vmem [thread:$0]  %s893, 256, %s895, %s883, 64, 64, 4
        $region60: #{tpu_custom_call.1} parent=15 // pred_fallthru
          _
        // Predicated region
        $region61: #{tpu_custom_call.1} parent=15 // pred_check
          %p901 = pneg %p374
        $region62: #{tpu_custom_call.1} parent=15 // pred_check_branch
          %903 = sbr.rel (%p901) target = $region64
        $region63: #{tpu_custom_call.1} parent=15 // pred_region
          %p904 = scmp.lt.s32.totalorder %s64, 1
          %s905 = scalar_select %p904, %s64, 1
          %s906 = scalar_lea.vmem %s11, %s905
        $region64: #{tpu_custom_call.1} parent=15 // pred_fallthru
          _
        // Predicated region
        $region65: #{tpu_custom_call.1} parent=15 // pred_check
          %p907 = pneg %p400
        $region66: #{tpu_custom_call.1} parent=15 // pred_check_branch
          %909 = sbr.rel (%p907) target = $region68
        $region67: #{tpu_custom_call.1} parent=15 // pred_region
          %s910 = sand.u32 %s56, 1
          %s911 = scalar_lea.sflag [#allocation12], %s910
          %s912 = sand.u32 %s390, 1
          %s913 = smul.addr %s912, 16
          %s914 = scalar_lea.vmem [#allocation11], %s913
          %916 = vsyncadd %s911, 0
          %s917 = smul.addr %s64, 4
          %s918 = smul.addr %s917, 4
          %s919 = scalar_lea.hbm %s12, %s918
          %s920 = sshll.u32 %s919, 4
          %s921 = int_to_ptr.hbm [resolvable:$true] %s920
          %s922 = sshll.u32 %s914, 4
          %s923 = int_to_ptr.vmem [resolvable:$true] %s922
          %928 = dma.hbm_to_vmem [thread:$0]  %s921, 256, %s923, %s911, 64, 64, 4
        $region68: #{tpu_custom_call.1} parent=15 // pred_fallthru
          _
        // Predicated region
        $region69: #{tpu_custom_call.1} parent=15 // pred_check
          %p929 = pneg %p426
        $region70: #{tpu_custom_call.1} parent=15 // pred_check_branch
          %931 = sbr.rel (%p929) target = $region72
        $region71: #{tpu_custom_call.1} parent=15 // pred_region
          %p932 = scmp.lt.s32.totalorder %s64, 1
          %s933 = scalar_select %p932, %s64, 1
          %s934 = scalar_lea.vmem %s13, %s933
        $region72: #{tpu_custom_call.1} parent=15 // pred_fallthru
          _
        // Predicated region
        $region73: #{tpu_custom_call.1} parent=15 // pred_check
          %p935 = pneg %p452
        $region74: #{tpu_custom_call.1} parent=15 // pred_check_branch
          %937 = sbr.rel (%p935) target = $region76
        $region75: #{tpu_custom_call.1} parent=15 // pred_region
          %s938 = sand.u32 %s56, 1
          %s939 = scalar_lea.sflag [#allocation12], %s938
          %s940 = sand.u32 %s442, 1
          %s941 = smul.addr %s940, 16
          %s942 = scalar_lea.vmem [#allocation13], %s941
          %944 = vsyncadd %s939, 0
          %s945 = smul.addr %s64, 4
          %s946 = smul.addr %s945, 4
          %s947 = scalar_lea.hbm %s14, %s946
          %s948 = sshll.u32 %s947, 4
          %s949 = int_to_ptr.hbm [resolvable:$true] %s948
          %s950 = sshll.u32 %s942, 4
          %s951 = int_to_ptr.vmem [resolvable:$true] %s950
          %956 = dma.hbm_to_vmem [thread:$0]  %s949, 256, %s951, %s939, 64, 64, 4
        $region76: #{tpu_custom_call.1} parent=15 // pred_fallthru
          _
        // Predicated region
        $region77: #{tpu_custom_call.1} parent=15 // pred_check
          %p957 = pneg %p478
        $region78: #{tpu_custom_call.1} parent=15 // pred_check_branch
          %959 = sbr.rel (%p957) target = $region80
        $region79: #{tpu_custom_call.1} parent=15 // pred_region
          %p960 = scmp.lt.s32.totalorder %s64, 1
          %s961 = scalar_select %p960, %s64, 1
          %s962 = scalar_lea.vmem %s15, %s961
        $region80: #{tpu_custom_call.1} parent=15 // pred_fallthru
          _
        // Predicated region
        $region81: #{tpu_custom_call.1} parent=15 // pred_check
          %p963 = pneg %p504
        $region82: #{tpu_custom_call.1} parent=15 // pred_check_branch
          %965 = sbr.rel (%p963) target = $region84
        $region83: #{tpu_custom_call.1} parent=15 // pred_region
          %p966 = scmp.lt.s32.totalorder %s64, 1
          %s967 = scalar_select %p966, %s64, 1
          %s968 = smul.addr %s967, 8
          %s969 = smul.addr %s968, 4
          %s970 = scalar_lea.vmem %s16, %s969
        $region84: #{tpu_custom_call.1} parent=15 // pred_fallthru
          _
        // Predicated region
        $region85: #{tpu_custom_call.1} parent=15 // pred_check
          %p971 = pneg %p530
        $region86: #{tpu_custom_call.1} parent=15 // pred_check_branch
          %973 = sbr.rel (%p971) target = $region88
        $region87: #{tpu_custom_call.1} parent=15 // pred_region
          %p974 = scmp.lt.s32.totalorder %s64, 1
          %s975 = scalar_select %p974, %s64, 1
          %s976 = scalar_lea.vmem %s17, %s975
        $region88: #{tpu_custom_call.1} parent=15 // pred_fallthru
          _
        // Predicated region
        $region89: #{tpu_custom_call.1} parent=15 // pred_check
          %p977 = pneg %p556
        $region90: #{tpu_custom_call.1} parent=15 // pred_check_branch
          %979 = sbr.rel (%p977) target = $region92
        $region91: #{tpu_custom_call.1} parent=15 // pred_region
          %p980 = scmp.lt.s32.totalorder %s64, 1
          %s981 = scalar_select %p980, %s64, 1
          %s982 = scalar_lea.vmem %s18, %s981
        $region92: #{tpu_custom_call.1} parent=15 // pred_fallthru
          _
        // Predicated region
        $region93: #{tpu_custom_call.1} parent=15 // pred_check
          %p983 = pneg %p582
        $region94: #{tpu_custom_call.1} parent=15 // pred_check_branch
          %985 = sbr.rel (%p983) target = $region96
        $region95: #{tpu_custom_call.1} parent=15 // pred_region
          %s986 = sand.u32 %s56, 1
          %s987 = scalar_lea.sflag [#allocation15], %s986
          %s988 = sand.u32 %s572, 1
          %s989 = scalar_lea.vmem [#allocation14], %s988
          %991 = vsyncadd %s987, 0
          %s992 = scalar_lea.hbm %s19, %s64
          %s994 = sshll.u32 %s992, 4
          %s995 = int_to_ptr.hbm [resolvable:$true] %s994
          %s996 = sshll.u32 %s989, 4
          %s997 = int_to_ptr.vmem [resolvable:$true] %s996
          %999 = dma.hbm_to_vmem [thread:$0]  %s995, 16, %s997, %s987
        $region96: #{tpu_custom_call.1} parent=15 // pred_fallthru
          _
        // Predicated region
        $region97: #{tpu_custom_call.1} parent=15 // pred_check
          %p1000 = pneg %p608
        $region98: #{tpu_custom_call.1} parent=15 // pred_check_branch
          %1002 = sbr.rel (%p1000) target = $region100
        $region99: #{tpu_custom_call.1} parent=15 // pred_region
          %p1003 = scmp.lt.s32.totalorder %s64, 1
          %s1004 = scalar_select %p1003, %s64, 1
          %s1005 = scalar_lea.vmem %s20, %s1004
        $region100: #{tpu_custom_call.1} parent=15 // pred_fallthru
          _
        // Predicated region
        $region101: #{tpu_custom_call.1} parent=15 // pred_check
          %p1006 = pneg %p634
        $region102: #{tpu_custom_call.1} parent=15 // pred_check_branch
          %1008 = sbr.rel (%p1006) target = $region104
        $region103: #{tpu_custom_call.1} parent=15 // pred_region
          %s1009 = sand.u32 %s56, 1
          %s1010 = scalar_lea.sflag [#allocation15], %s1009
          %s1011 = sand.u32 %s624, 1
          %s1012 = scalar_lea.vmem [#allocation16], %s1011
          %1014 = vsyncadd %s1010, 0
          %s1015 = scalar_lea.hbm %s21, %s64
          %s1017 = sshll.u32 %s1015, 4
          %s1018 = int_to_ptr.hbm [resolvable:$true] %s1017
          %s1019 = sshll.u32 %s1012, 4
          %s1020 = int_to_ptr.vmem [resolvable:$true] %s1019
          %1022 = dma.hbm_to_vmem [thread:$0]  %s1018, 16, %s1020, %s1010
        $region104: #{tpu_custom_call.1} parent=15 // pred_fallthru
          _
        // Predicated region
        $region105: #{tpu_custom_call.1} parent=15 // pred_check
          %p1023 = pneg %p660
        $region106: #{tpu_custom_call.1} parent=15 // pred_check_branch
          %1025 = sbr.rel (%p1023) target = $region108
        $region107: #{tpu_custom_call.1} parent=15 // pred_region
          %p1026 = scmp.lt.s32.totalorder %s64, 1
          %s1027 = scalar_select %p1026, %s64, 1
          %s1028 = scalar_lea.vmem %s22, %s1027
        $region108: #{tpu_custom_call.1} parent=15 // pred_fallthru
          _
        // Predicated region
        $region109: #{tpu_custom_call.1} parent=15 // pred_check
          %p1029 = pneg %p686
        $region110: #{tpu_custom_call.1} parent=15 // pred_check_branch
          %1031 = sbr.rel (%p1029) target = $region112
        $region111: #{tpu_custom_call.1} parent=15 // pred_region
          %s1032 = sand.u32 %s676, 1
          %s1033 = scalar_lea.sflag [#allocation18], %s1032
          %s1034 = sand.u32 %s676, 1
          %s1035 = scalar_lea.vmem [#allocation17], %s1034
          %1037 = vsyncadd %s1033, 0
          %s1038 = scalar_lea.hbm %s23, %s64
          %s1040 = sshll.u32 %s1038, 4
          %s1041 = int_to_ptr.hbm [resolvable:$true] %s1040
          %s1042 = sshll.u32 %s1035, 4
          %s1043 = int_to_ptr.vmem [resolvable:$true] %s1042
          %1045 = dma.hbm_to_vmem [thread:$0]  %s1041, 16, %s1043, %s1033
        $region112: #{tpu_custom_call.1} parent=15 // pred_fallthru
          _
      $region16: #{tpu_custom_call.1} parent=5 // pred_fallthru
        _
      %p1046 = scmp.le.s32.totalorder 1, %s56
      %p1047 = scmp.lt.s32.totalorder %s56, 5
      %p1048 = pnand %p1046, %p1047
      %p1049 = pneg %p1048
      // Predicated region
      $region113: #{tpu_custom_call.1} parent=5 // pred_check
        _
      $region114: #{tpu_custom_call.1} parent=5 // pred_check_branch
        %1051 = sbr.rel (%p1048) target = $region116
      $region115: #{tpu_custom_call.1} parent=5 // pred_region
        %s1052 = ssub.s32 %s56, 1
        %s1053 = sand.u32 %s81, 1
        %s1054 = scalar_lea.sflag [#allocation3], %s1053
        %s1055 = sand.u32 %s81, 1
        %s1056 = smul.addr %s1055, 8
        %s1057 = scalar_lea.vmem [#allocation2], %s1056
        // Predicated region
        $region117: #{tpu_custom_call.1} parent=115 // pred_check
          %p1058 = pneg %p94
        $region118: #{tpu_custom_call.1} parent=115 // pred_check_branch
          %1060 = sbr.rel (%p1058) target = $region120
        $region119: #{tpu_custom_call.1} parent=115 // pred_region
          %1062 = dma.done %s1054, 128
        $region120: #{tpu_custom_call.1} parent=115 // pred_fallthru
          _
        %s1063 = sand.u32 %s61, 1
        %s1064 = scalar_lea.sflag [#allocation6], %s1063
        %s1065 = sand.u32 %s107, 1
        %s1066 = smul.addr %s1065, 8
        %s1067 = scalar_lea.vmem [#allocation5], %s1066
        // Predicated region
        $region121: #{tpu_custom_call.1} parent=115 // pred_check
          %p1068 = pneg %p120
        $region122: #{tpu_custom_call.1} parent=115 // pred_check_branch
          %1070 = sbr.rel (%p1068) target = $region124
        $region123: #{tpu_custom_call.1} parent=115 // pred_region
          %1072 = dma.done %s1064, 128
        $region124: #{tpu_custom_call.1} parent=115 // pred_fallthru
          _
        %s1073 = sand.u32 %s61, 1
        %s1074 = scalar_lea.sflag [#allocation6], %s1073
        %s1075 = sand.u32 %s133, 1
        %s1076 = smul.addr %s1075, 8
        %s1077 = scalar_lea.vmem [#allocation7], %s1076
        // Predicated region
        $region125: #{tpu_custom_call.1} parent=115 // pred_check
          %p1078 = pneg %p146
        $region126: #{tpu_custom_call.1} parent=115 // pred_check_branch
          %1080 = sbr.rel (%p1078) target = $region128
        $region127: #{tpu_custom_call.1} parent=115 // pred_region
          %1082 = dma.done %s1074, 128
        $region128: #{tpu_custom_call.1} parent=115 // pred_fallthru
          _
        %s1083 = sand.u32 %s61, 1
        %s1084 = scalar_lea.sflag [#allocation9], %s1083
        %s1085 = sand.u32 %s159, 1
        %s1086 = scalar_lea.vmem [#allocation8], %s1085
        // Predicated region
        $region129: #{tpu_custom_call.1} parent=115 // pred_check
          %p1087 = pneg %p172
        $region130: #{tpu_custom_call.1} parent=115 // pred_check_branch
          %1089 = sbr.rel (%p1087) target = $region132
        $region131: #{tpu_custom_call.1} parent=115 // pred_region
          %1091 = dma.done %s1084, 16
        $region132: #{tpu_custom_call.1} parent=115 // pred_fallthru
          _
        %s1092 = sand.u32 %s61, 1
        %s1093 = scalar_lea.sflag [#allocation9], %s1092
        %s1094 = sand.u32 %s341, 1
        %s1095 = smul.addr %s1094, 16
        %s1096 = scalar_lea.vmem [#allocation10], %s1095
        // Predicated region
        $region133: #{tpu_custom_call.1} parent=115 // pred_check
          %p1097 = pneg %p354
        $region134: #{tpu_custom_call.1} parent=115 // pred_check_branch
          %1099 = sbr.rel (%p1097) target = $region136
        $region135: #{tpu_custom_call.1} parent=115 // pred_region
          %1101 = dma.done %s1093, 256
        $region136: #{tpu_custom_call.1} parent=115 // pred_fallthru
          _
        %s1102 = sand.u32 %s61, 1
        %s1103 = scalar_lea.sflag [#allocation12], %s1102
        %s1104 = sand.u32 %s393, 1
        %s1105 = smul.addr %s1104, 16
        %s1106 = scalar_lea.vmem [#allocation11], %s1105
        // Predicated region
        $region137: #{tpu_custom_call.1} parent=115 // pred_check
          %p1107 = pneg %p406
        $region138: #{tpu_custom_call.1} parent=115 // pred_check_branch
          %1109 = sbr.rel (%p1107) target = $region140
        $region139: #{tpu_custom_call.1} parent=115 // pred_region
          %1111 = dma.done %s1103, 256
        $region140: #{tpu_custom_call.1} parent=115 // pred_fallthru
          _
        %s1112 = sand.u32 %s61, 1
        %s1113 = scalar_lea.sflag [#allocation12], %s1112
        %s1114 = sand.u32 %s445, 1
        %s1115 = smul.addr %s1114, 16
        %s1116 = scalar_lea.vmem [#allocation13], %s1115
        // Predicated region
        $region141: #{tpu_custom_call.1} parent=115 // pred_check
          %p1117 = pneg %p458
        $region142: #{tpu_custom_call.1} parent=115 // pred_check_branch
          %1119 = sbr.rel (%p1117) target = $region144
        $region143: #{tpu_custom_call.1} parent=115 // pred_region
          %1121 = dma.done %s1113, 256
        $region144: #{tpu_custom_call.1} parent=115 // pred_fallthru
          _
        %s1122 = sand.u32 %s61, 1
        %s1123 = scalar_lea.sflag [#allocation15], %s1122
        %s1124 = sand.u32 %s575, 1
        %s1125 = scalar_lea.vmem [#allocation14], %s1124
        // Predicated region
        $region145: #{tpu_custom_call.1} parent=115 // pred_check
          %p1126 = pneg %p588
        $region146: #{tpu_custom_call.1} parent=115 // pred_check_branch
          %1128 = sbr.rel (%p1126) target = $region148
        $region147: #{tpu_custom_call.1} parent=115 // pred_region
          %1130 = dma.done %s1123, 16
        $region148: #{tpu_custom_call.1} parent=115 // pred_fallthru
          _
        %s1131 = sand.u32 %s61, 1
        %s1132 = scalar_lea.sflag [#allocation15], %s1131
        %s1133 = sand.u32 %s627, 1
        %s1134 = scalar_lea.vmem [#allocation16], %s1133
        // Predicated region
        $region149: #{tpu_custom_call.1} parent=115 // pred_check
          %p1135 = pneg %p640
        $region150: #{tpu_custom_call.1} parent=115 // pred_check_branch
          %1137 = sbr.rel (%p1135) target = $region152
        $region151: #{tpu_custom_call.1} parent=115 // pred_region
          %1139 = dma.done %s1132, 16
        $region152: #{tpu_custom_call.1} parent=115 // pred_fallthru
          _
        %s1140 = sand.u32 %s679, 1
        %s1141 = scalar_lea.sflag [#allocation18], %s1140
        %s1142 = sand.u32 %s679, 1
        %s1143 = scalar_lea.vmem [#allocation17], %s1142
        // Predicated region
        $region153: #{tpu_custom_call.1} parent=115 // pred_check
          %p1144 = pneg %p692
        $region154: #{tpu_custom_call.1} parent=115 // pred_check_branch
          %1146 = sbr.rel (%p1144) target = $region156
        $region155: #{tpu_custom_call.1} parent=115 // pred_region
          %1148 = dma.done %s1141, 16
        $region156: #{tpu_custom_call.1} parent=115 // pred_fallthru
          _
        %s1149 = sand.u32 %s81, 1
        %s1150 = scalar_lea.sflag [#allocation3], %s1149
        %s1151 = sand.u32 %s81, 1
        %s1152 = smul.addr %s1151, 8
        %s1153 = scalar_lea.vmem [#allocation2], %s1152
        %p1154 = pneg %p94
        %p1155 = pneg %p91
        %s1156 = sand.u32 %s61, 1
        %s1157 = scalar_lea.sflag [#allocation6], %s1156
        %s1158 = sand.u32 %s107, 1
        %s1159 = smul.addr %s1158, 8
        %s1160 = scalar_lea.vmem [#allocation5], %s1159
        %p1161 = pneg %p120
        %p1162 = pneg %p117
        %s1163 = sand.u32 %s61, 1
        %s1164 = scalar_lea.sflag [#allocation6], %s1163
        %s1165 = sand.u32 %s133, 1
        %s1166 = smul.addr %s1165, 8
        %s1167 = scalar_lea.vmem [#allocation7], %s1166
        %p1168 = pneg %p146
        %p1169 = pneg %p143
        %s1170 = sand.u32 %s61, 1
        %s1171 = scalar_lea.sflag [#allocation9], %s1170
        %s1172 = sand.u32 %s159, 1
        %s1173 = scalar_lea.vmem [#allocation8], %s1172
        %p1174 = pneg %p172
        %p1175 = pneg %p169
        %p1176 = scmp.lt.s32.totalorder %s66, 1
        %s1177 = scalar_select %p1176, %s66, 1
        %s1178 = smul.addr %s1177, 4
        %s1179 = smul.addr %s1178, 4
        %s1180 = scalar_lea.vmem %s4, %s1179
        %p1181 = pneg %p198
        %p1182 = pneg %p195
        %p1183 = scmp.lt.s32.totalorder %s66, 1
        %s1184 = scalar_select %p1183, %s66, 1
        %s1185 = scalar_lea.vmem %s5, %s1184
        %p1186 = pneg %p224
        %p1187 = pneg %p221
        %p1188 = scmp.lt.s32.totalorder %s66, 1
        %s1189 = scalar_select %p1188, %s66, 1
        %s1190 = smul.addr %s1189, 4
        %s1191 = smul.addr %s1190, 4
        %s1192 = scalar_lea.vmem %s6, %s1191
        %p1193 = pneg %p250
        %p1194 = pneg %p247
        %p1195 = scmp.lt.s32.totalorder %s66, 1
        %s1196 = scalar_select %p1195, %s66, 1
        %s1197 = scalar_lea.vmem %s7, %s1196
        %p1198 = pneg %p276
        %p1199 = pneg %p273
        %p1200 = scmp.lt.s32.totalorder %s66, 1
        %s1201 = scalar_select %p1200, %s66, 1
        %s1202 = smul.addr %s1201, 4
        %s1203 = smul.addr %s1202, 4
        %s1204 = scalar_lea.vmem %s8, %s1203
        %p1205 = pneg %p302
        %p1206 = pneg %p299
        %p1207 = scmp.lt.s32.totalorder %s66, 1
        %s1208 = scalar_select %p1207, %s66, 1
        %s1209 = scalar_lea.vmem %s9, %s1208
        %p1210 = pneg %p328
        %p1211 = pneg %p325
        %s1212 = sand.u32 %s61, 1
        %s1213 = scalar_lea.sflag [#allocation9], %s1212
        %s1214 = sand.u32 %s341, 1
        %s1215 = smul.addr %s1214, 16
        %s1216 = scalar_lea.vmem [#allocation10], %s1215
        %p1217 = pneg %p354
        %p1218 = pneg %p351
        %p1219 = scmp.lt.s32.totalorder %s66, 1
        %s1220 = scalar_select %p1219, %s66, 1
        %s1221 = scalar_lea.vmem %s11, %s1220
        %p1222 = pneg %p380
        %p1223 = pneg %p377
        %s1224 = sand.u32 %s61, 1
        %s1225 = scalar_lea.sflag [#allocation12], %s1224
        %s1226 = sand.u32 %s393, 1
        %s1227 = smul.addr %s1226, 16
        %s1228 = scalar_lea.vmem [#allocation11], %s1227
        %p1229 = pneg %p406
        %p1230 = pneg %p403
        %p1231 = scmp.lt.s32.totalorder %s66, 1
        %s1232 = scalar_select %p1231, %s66, 1
        %s1233 = scalar_lea.vmem %s13, %s1232
        %p1234 = pneg %p432
        %p1235 = pneg %p429
        %s1236 = sand.u32 %s61, 1
        %s1237 = scalar_lea.sflag [#allocation12], %s1236
        %s1238 = sand.u32 %s445, 1
        %s1239 = smul.addr %s1238, 16
        %s1240 = scalar_lea.vmem [#allocation13], %s1239
        %p1241 = pneg %p458
        %p1242 = pneg %p455
        %p1243 = scmp.lt.s32.totalorder %s66, 1
        %s1244 = scalar_select %p1243, %s66, 1
        %s1245 = scalar_lea.vmem %s15, %s1244
        %p1246 = pneg %p484
        %p1247 = pneg %p481
        %p1248 = scmp.lt.s32.totalorder %s66, 1
        %s1249 = scalar_select %p1248, %s66, 1
        %s1250 = smul.addr %s1249, 8
        %s1251 = smul.addr %s1250, 4
        %s1252 = scalar_lea.vmem %s16, %s1251
        %p1253 = pneg %p510
        %p1254 = pneg %p507
        %p1255 = scmp.lt.s32.totalorder %s66, 1
        %s1256 = scalar_select %p1255, %s66, 1
        %s1257 = scalar_lea.vmem %s17, %s1256
        %p1258 = pneg %p536
        %p1259 = pneg %p533
        %p1260 = scmp.lt.s32.totalorder %s66, 1
        %s1261 = scalar_select %p1260, %s66, 1
        %s1262 = scalar_lea.vmem %s18, %s1261
        %p1263 = pneg %p562
        %p1264 = pneg %p559
        %s1265 = sand.u32 %s61, 1
        %s1266 = scalar_lea.sflag [#allocation15], %s1265
        %s1267 = sand.u32 %s575, 1
        %s1268 = scalar_lea.vmem [#allocation14], %s1267
        %p1269 = pneg %p588
        %p1270 = pneg %p585
        %p1271 = scmp.lt.s32.totalorder %s66, 1
        %s1272 = scalar_select %p1271, %s66, 1
        %s1273 = scalar_lea.vmem %s20, %s1272
        %p1274 = pneg %p614
        %p1275 = pneg %p611
        %s1276 = sand.u32 %s61, 1
        %s1277 = scalar_lea.sflag [#allocation15], %s1276
        %s1278 = sand.u32 %s627, 1
        %s1279 = scalar_lea.vmem [#allocation16], %s1278
        %p1280 = pneg %p640
        %p1281 = pneg %p637
        %p1282 = scmp.lt.s32.totalorder %s66, 1
        %s1283 = scalar_select %p1282, %s66, 1
        %s1284 = scalar_lea.vmem %s22, %s1283
        %p1285 = pneg %p666
        %p1286 = pneg %p663
        %s1287 = sand.u32 %s679, 1
        %s1288 = scalar_lea.sflag [#allocation18], %s1287
        %s1289 = sand.u32 %s679, 1
        %s1290 = scalar_lea.vmem [#allocation17], %s1289
        %p1291 = pneg %p692
        %p1292 = pneg %p689
        %p1293 = pneg %p718
        %p1294 = pneg %p715
        %s1295 = sand.u32 %s705, 1
        %s1296 = scalar_lea.sflag [#allocation4], %s1295
        %s1297 = sand.u32 %s705, 1
        %s1298 = smul.addr %s1297, 8
        %s1299 = scalar_lea.vmem [#allocation19], %s1298
        %p1300 = pneg %p744
        %p1301 = pneg %p741
        %s1302 = sand.u32 %s731, 1
        %s1303 = scalar_lea.sflag [#allocation21], %s1302
        %s1304 = sand.u32 %s731, 1
        %s1305 = smul.addr %s1304, 32
        %s1306 = scalar_lea.vmem [#allocation20], %s1305
        %p1307 = scmp.lt.s32.totalorder %s66, 1
        %s1308 = scalar_select %p1307, %s66, 1
        %s1309 = smul.addr %s1308, 4
        %s1310 = smul.addr %s1309, 4
        %s1311 = scalar_lea.vmem %s4, %s1310
        %p1312 = scmp.lt.s32.totalorder %s66, 1
        %s1313 = scalar_select %p1312, %s66, 1
        %s1314 = scalar_lea.vmem %s5, %s1313
        %p1315 = scmp.lt.s32.totalorder %s66, 1
        %s1316 = scalar_select %p1315, %s66, 1
        %s1317 = smul.addr %s1316, 4
        %s1318 = smul.addr %s1317, 4
        %s1319 = scalar_lea.vmem %s6, %s1318
        %p1320 = scmp.lt.s32.totalorder %s66, 1
        %s1321 = scalar_select %p1320, %s66, 1
        %s1322 = scalar_lea.vmem %s7, %s1321
        %p1323 = scmp.lt.s32.totalorder %s66, 1
        %s1324 = scalar_select %p1323, %s66, 1
        %s1325 = smul.addr %s1324, 4
        %s1326 = smul.addr %s1325, 4
        %s1327 = scalar_lea.vmem %s8, %s1326
        %p1328 = scmp.lt.s32.totalorder %s66, 1
        %s1329 = scalar_select %p1328, %s66, 1
        %s1330 = scalar_lea.vmem %s9, %s1329
        %p1331 = scmp.lt.s32.totalorder %s66, 1
        %s1332 = scalar_select %p1331, %s66, 1
        %s1333 = scalar_lea.vmem %s11, %s1332
        %p1334 = scmp.lt.s32.totalorder %s66, 1
        %s1335 = scalar_select %p1334, %s66, 1
        %s1336 = scalar_lea.vmem %s13, %s1335
        %p1337 = scmp.lt.s32.totalorder %s66, 1
        %s1338 = scalar_select %p1337, %s66, 1
        %s1339 = scalar_lea.vmem %s15, %s1338
        %p1340 = scmp.lt.s32.totalorder %s66, 1
        %s1341 = scalar_select %p1340, %s66, 1
        %s1342 = smul.addr %s1341, 8
        %s1343 = smul.addr %s1342, 4
        %s1344 = scalar_lea.vmem %s16, %s1343
        %p1345 = scmp.lt.s32.totalorder %s66, 1
        %s1346 = scalar_select %p1345, %s66, 1
        %s1347 = scalar_lea.vmem %s17, %s1346
        %p1348 = scmp.lt.s32.totalorder %s66, 1
        %s1349 = scalar_select %p1348, %s66, 1
        %s1350 = scalar_lea.vmem %s18, %s1349
        %p1351 = scmp.lt.s32.totalorder %s66, 1
        %s1352 = scalar_select %p1351, %s66, 1
        %s1353 = scalar_lea.vmem %s20, %s1352
        %p1354 = scmp.lt.s32.totalorder %s66, 1
        %s1355 = scalar_select %p1354, %s66, 1
        %s1356 = scalar_lea.vmem %s22, %s1355
        %p1358 = scmp.eq.s32.totalorder %s66, 0
        // Predicated region
        $region157: #{tpu_custom_call.1} parent=115 // pred_check
          %p1359 = pneg %p1358
        $region158: #{tpu_custom_call.1} parent=115 // pred_check_branch
          %1361 = sbr.rel (%p1359) target = $region160
        $region159: #{tpu_custom_call.1} parent=115 // pred_region
          %v1362 = vld [vmem:[%s1057] sm:$0xff]
          %vm1363 = vcmask 261120
          %1364 = vst.msk [vmem:[%s1299] sm:$0xff] %vm1363, %v1362
        $region160: #{tpu_custom_call.1} parent=115 // pred_fallthru
          _
        %v1365 = vld [vmem:[%s1299] sm:$0xff]
        %v1366 = vld [vmem:[%s1067] sm:$0xff]
        %v1367 = vld [vmem:[%s1077] sm:$0xff]
        %v1368 = vld [vmem:[%s1086] sm:$0x1]
        %v1369 = vpack.c.bf16 %v1365, %v1365
        %v1370 = vld [vmem:[%s1311] sm:$0xf]
        %v1371 = vld [vmem:[%s1311 + $0x4] sm:$0xf]
        %v1372 = vld [vmem:[%s1311 + $0x8] sm:$0xf]
        %v1373 = vld [vmem:[%s1311 + $0xc] sm:$0xf]
        %v1374 = vld [vmem:[%s1314] sm:$0x1]
        %v1376 = vperm.slane %v1374, 0
        %v1382 = vunpack.c.l.b16 %v1370
        %v1383 = vunpack.c.l.b16 %v1371
        %v1384 = vunpack.c.l.b16 %v1372
        %v1385 = vunpack.c.l.b16 %v1373
        %v1386 = vpack.c.b16 %v1383, %v1382
        %v1387 = vpack.c.b16 %v1385, %v1384
        %vm1390 = vcmask 261120
        %v1392 = vsel %vm1390, %v1369, 0
        %1394 = vmatpush.bf16.msra.mxu0 0
        %1395 = vmatpush.bf16.msra.mxu0 0
        %1396 = vmatpush.bf16.msra.mxu0 0
        %1397 = vmatpush.bf16.msra.mxu0 0
        %1398 = vmatpush.bf16.msra.mxu0 0
        %1399 = vmatpush.bf16.msra.mxu0 0
        %1400 = vmatpush.bf16.msra.mxu0 %v1387
        %1401 = vmatpush.bf16.msra.mxu0 %v1386
        %1402 = vmatmul.bf16.gmra.mxu0 %v1392
        %v1403 = vpop.f32.mrf.mxu0
        %v1404 = vadd.f32 %v1376, %v1403
        %v1405 = vpop.f32.mrf.mxu0
        %1406 = vdwg.mxu0
        %1408 = vrot.lane.b32.xlu0 %v1404, 120
        %v1409 = vpop.permute.xlu0 %1408
        %1411 = vrot.lane.b32.xlu0 %v1404, 112
        %v1412 = vpop.permute.xlu0 %1411
        %1414 = vrot.lane.b32.xlu0 %v1404, 104
        %v1415 = vpop.permute.xlu0 %1414
        %v1417 = vrot.slane %v1412, 4
        %vm1418 = vcmask 1047556
        %v1419 = vsel %vm1418, %v1417, %v1404
        %v1420 = vrot.slane %v1404, 4
        %v1421 = vsel %vm1418, %v1412, %v1420
        %v1423 = vunpack.c.l.s4 1983009808
        %v1424 = vunpack.c.0.s8 %v1423
        %v1425 = vperm.slane %v1419, %v1424
        %v1427 = vunpack.c.l.s4 1983009808
        %v1428 = vunpack.c.0.s8 %v1427
        %v1429 = vperm.slane %v1421, %v1428
        %v1430 = vrot.slane %v1415, 4
        %v1431 = vsel %vm1418, %v1430, %v1409
        %v1432 = vrot.slane %v1409, 4
        %v1433 = vsel %vm1418, %v1415, %v1432
        %v1435 = vunpack.c.l.s4 1983009808
        %v1436 = vunpack.c.0.s8 %v1435
        %v1437 = vperm.slane %v1431, %v1436
        %v1439 = vunpack.c.l.s4 1983009808
        %v1440 = vunpack.c.0.s8 %v1439
        %v1441 = vperm.slane %v1433, %v1440
        %v1442 = vrot.slane %v1437, 4
        %v1443 = vsel %vm1418, %v1442, %v1425
        %v1444 = vrot.slane %v1425, 4
        %v1445 = vsel %vm1418, %v1437, %v1444
        %v1447 = vunpack.c.l.s4 1934713408
        %v1448 = vunpack.c.0.s8 %v1447
        %v1449 = vperm.slane %v1443, %v1448
        %v1451 = vunpack.c.l.s4 1934713408
        %v1452 = vunpack.c.0.s8 %v1451
        %v1453 = vperm.slane %v1445, %v1452
        %v1454 = vrot.slane %v1441, 4
        %v1455 = vsel %vm1418, %v1454, %v1429
        %v1456 = vrot.slane %v1429, 4
        %v1457 = vsel %vm1418, %v1441, %v1456
        %v1459 = vunpack.c.l.s4 1934713408
        %v1460 = vunpack.c.0.s8 %v1459
        %v1461 = vperm.slane %v1455, %v1460
        %v1463 = vunpack.c.l.s4 1934713408
        %v1464 = vunpack.c.0.s8 %v1463
        %v1465 = vperm.slane %v1457, %v1464
        %v1466 = vrot.slane %v1449, 4
        %v1467 = vsel %vm1418, 0.0, %v1466
        %v1468 = vrot.slane %v1453, 4
        %v1469 = vsel %vm1418, 0.0, %v1468
        %v1470 = vrot.slane %v1461, 4
        %v1471 = vsel %vm1418, 0.0, %v1470
        %v1472 = vrot.slane %v1465, 4
        %v1473 = vsel %vm1418, 0.0, %v1472
        %v1474 = vpack.c.bf16 %v1449, %v1449
        %v1475 = vpack.c.bf16 %v1467, %v1467
        %v1476 = vpack.c.bf16 %v1453, %v1453
        %v1477 = vpack.c.bf16 %v1469, %v1469
        %v1478 = vpack.c.bf16 %v1461, %v1461
        %v1479 = vpack.c.bf16 %v1471, %v1471
        %v1480 = vpack.c.bf16 %v1465, %v1465
        %v1481 = vpack.c.bf16 %v1473, %v1473
        %1482 = vrot.lane.b32.xlu0 %v1404, 96
        %v1483 = vpop.permute.xlu0 %1482
        %1484 = vrot.lane.b32.xlu0 %v1409, 96
        %v1485 = vpop.permute.xlu0 %1484
        %1486 = vrot.lane.b32.xlu0 %v1412, 96
        %v1487 = vpop.permute.xlu0 %1486
        %1488 = vrot.lane.b32.xlu0 %v1415, 96
        %v1489 = vpop.permute.xlu0 %1488
        %v1494 = vrot.slane %v1487, 4
        %v1495 = vsel %vm1418, %v1494, %v1483
        %v1496 = vrot.slane %v1483, 4
        %v1497 = vsel %vm1418, %v1487, %v1496
        %v1499 = vunpack.c.l.s4 1983009808
        %v1500 = vunpack.c.0.s8 %v1499
        %v1501 = vperm.slane %v1495, %v1500
        %v1503 = vunpack.c.l.s4 1983009808
        %v1504 = vunpack.c.0.s8 %v1503
        %v1505 = vperm.slane %v1497, %v1504
        %v1506 = vrot.slane %v1489, 4
        %v1507 = vsel %vm1418, %v1506, %v1485
        %v1508 = vrot.slane %v1485, 4
        %v1509 = vsel %vm1418, %v1489, %v1508
        %v1511 = vunpack.c.l.s4 1983009808
        %v1512 = vunpack.c.0.s8 %v1511
        %v1513 = vperm.slane %v1507, %v1512
        %v1515 = vunpack.c.l.s4 1983009808
        %v1516 = vunpack.c.0.s8 %v1515
        %v1517 = vperm.slane %v1509, %v1516
        %v1518 = vrot.slane %v1513, 4
        %v1519 = vsel %vm1418, %v1518, %v1501
        %v1520 = vrot.slane %v1501, 4
        %v1521 = vsel %vm1418, %v1513, %v1520
        %v1523 = vunpack.c.l.s4 1934713408
        %v1524 = vunpack.c.0.s8 %v1523
        %v1525 = vperm.slane %v1519, %v1524
        %v1527 = vunpack.c.l.s4 1934713408
        %v1528 = vunpack.c.0.s8 %v1527
        %v1529 = vperm.slane %v1521, %v1528
        %v1530 = vrot.slane %v1517, 4
        %v1531 = vsel %vm1418, %v1530, %v1505
        %v1532 = vrot.slane %v1505, 4
        %v1533 = vsel %vm1418, %v1517, %v1532
        %v1535 = vunpack.c.l.s4 1934713408
        %v1536 = vunpack.c.0.s8 %v1535
        %v1537 = vperm.slane %v1531, %v1536
        %v1539 = vunpack.c.l.s4 1934713408
        %v1540 = vunpack.c.0.s8 %v1539
        %v1541 = vperm.slane %v1533, %v1540
        %v1542 = vrot.slane %v1525, 4
        %v1543 = vsel %vm1418, 0.0, %v1542
        %v1544 = vrot.slane %v1529, 4
        %v1545 = vsel %vm1418, 0.0, %v1544
        %v1546 = vrot.slane %v1537, 4
        %v1547 = vsel %vm1418, 0.0, %v1546
        %v1548 = vrot.slane %v1541, 4
        %v1549 = vsel %vm1418, 0.0, %v1548
        %v1550 = vpack.c.bf16 %v1525, %v1525
        %v1551 = vpack.c.bf16 %v1543, %v1543
        %v1552 = vpack.c.bf16 %v1529, %v1529
        %v1553 = vpack.c.bf16 %v1545, %v1545
        %v1554 = vpack.c.bf16 %v1537, %v1537
        %v1555 = vpack.c.bf16 %v1547, %v1547
        %v1556 = vpack.c.bf16 %v1541, %v1541
        %v1557 = vpack.c.bf16 %v1549, %v1549
        %1558 = vrot.lane.b32.xlu0 %v1404, 64
        %v1559 = vpop.permute.xlu0 %1558
        %1560 = vrot.lane.b32.xlu0 %v1409, 64
        %v1561 = vpop.permute.xlu0 %1560
        %1562 = vrot.lane.b32.xlu0 %v1412, 64
        %v1563 = vpop.permute.xlu0 %1562
        %1564 = vrot.lane.b32.xlu0 %v1415, 64
        %v1565 = vpop.permute.xlu0 %1564
        %v1570 = vrot.slane %v1563, 4
        %v1571 = vsel %vm1418, %v1570, %v1559
        %v1572 = vrot.slane %v1559, 4
        %v1573 = vsel %vm1418, %v1563, %v1572
        %v1575 = vunpack.c.l.s4 1983009808
        %v1576 = vunpack.c.0.s8 %v1575
        %v1577 = vperm.slane %v1571, %v1576
        %v1579 = vunpack.c.l.s4 1983009808
        %v1580 = vunpack.c.0.s8 %v1579
        %v1581 = vperm.slane %v1573, %v1580
        %v1582 = vrot.slane %v1565, 4
        %v1583 = vsel %vm1418, %v1582, %v1561
        %v1584 = vrot.slane %v1561, 4
        %v1585 = vsel %vm1418, %v1565, %v1584
        %v1587 = vunpack.c.l.s4 1983009808
        %v1588 = vunpack.c.0.s8 %v1587
        %v1589 = vperm.slane %v1583, %v1588
        %v1591 = vunpack.c.l.s4 1983009808
        %v1592 = vunpack.c.0.s8 %v1591
        %v1593 = vperm.slane %v1585, %v1592
        %v1594 = vrot.slane %v1589, 4
        %v1595 = vsel %vm1418, %v1594, %v1577
        %v1596 = vrot.slane %v1577, 4
        %v1597 = vsel %vm1418, %v1589, %v1596
        %v1599 = vunpack.c.l.s4 1934713408
        %v1600 = vunpack.c.0.s8 %v1599
        %v1601 = vperm.slane %v1595, %v1600
        %v1603 = vunpack.c.l.s4 1934713408
        %v1604 = vunpack.c.0.s8 %v1603
        %v1605 = vperm.slane %v1597, %v1604
        %v1606 = vrot.slane %v1593, 4
        %v1607 = vsel %vm1418, %v1606, %v1581
        %v1608 = vrot.slane %v1581, 4
        %v1609 = vsel %vm1418, %v1593, %v1608
        %v1611 = vunpack.c.l.s4 1934713408
        %v1612 = vunpack.c.0.s8 %v1611
        %v1613 = vperm.slane %v1607, %v1612
        %v1615 = vunpack.c.l.s4 1934713408
        %v1616 = vunpack.c.0.s8 %v1615
        %v1617 = vperm.slane %v1609, %v1616
        %v1618 = vrot.slane %v1601, 4
        %v1619 = vsel %vm1418, 0.0, %v1618
        %v1620 = vrot.slane %v1605, 4
        %v1621 = vsel %vm1418, 0.0, %v1620
        %v1622 = vrot.slane %v1613, 4
        %v1623 = vsel %vm1418, 0.0, %v1622
        %v1624 = vrot.slane %v1617, 4
        %v1625 = vsel %vm1418, 0.0, %v1624
        %v1626 = vpack.c.bf16 %v1601, %v1601
        %v1627 = vpack.c.bf16 %v1619, %v1619
        %v1628 = vpack.c.bf16 %v1605, %v1605
        %v1629 = vpack.c.bf16 %v1621, %v1621
        %v1630 = vpack.c.bf16 %v1613, %v1613
        %v1631 = vpack.c.bf16 %v1623, %v1623
        %v1632 = vpack.c.bf16 %v1617, %v1617
        %v1633 = vpack.c.bf16 %v1625, %v1625
        %v1634 = vrot.slane %v1478, 4
        %vm1635 = vcmask 1047556
        %v1636 = vsel %vm1635, %v1634, %v1474
        %v1638 = vunpack.c.l.s4 1983009808
        %v1639 = vunpack.c.0.s8 %v1638
        %v1640 = vperm.slane %v1636, %v1639
        %v1641 = vrot.slane %v1480, 4
        %v1642 = vsel %vm1635, %v1641, %v1476
        %v1644 = vunpack.c.l.s4 1983009808
        %v1645 = vunpack.c.0.s8 %v1644
        %v1646 = vperm.slane %v1642, %v1645
        %v1647 = vrot.slane %v1646, 4
        %v1648 = vsel %vm1635, %v1647, %v1640
        %v1650 = vunpack.c.l.s4 1934713408
        %v1651 = vunpack.c.0.s8 %v1650
        %v1652 = vperm.slane %v1648, %v1651
        %v1653 = vrot.slane %v1652, 4
        %v1654 = vsel %vm1635, 0, %v1653
        %v1655 = vrot.slane %v1479, 4
        %v1656 = vsel %vm1635, %v1655, %v1475
        %v1658 = vunpack.c.l.s4 1983009808
        %v1659 = vunpack.c.0.s8 %v1658
        %v1660 = vperm.slane %v1656, %v1659
        %v1661 = vrot.slane %v1481, 4
        %v1662 = vsel %vm1635, %v1661, %v1477
        %v1664 = vunpack.c.l.s4 1983009808
        %v1665 = vunpack.c.0.s8 %v1664
        %v1666 = vperm.slane %v1662, %v1665
        %v1667 = vrot.slane %v1666, 4
        %v1668 = vsel %vm1635, %v1667, %v1660
        %v1670 = vunpack.c.l.s4 1934713408
        %v1671 = vunpack.c.0.s8 %v1670
        %v1672 = vperm.slane %v1668, %v1671
        %v1673 = vrot.slane %v1672, 4
        %v1674 = vsel %vm1635, 0, %v1673
        %v1677 = vpack.i.b16 %v1672, %v1652
        %v1678 = vshrl.u32 %v1652, 16
        %v1679 = vshrl.u32 %v1672, 16
        %v1680 = vpack.i.b16 %v1679, %v1678
        %v1683 = vpack.i.b16 %v1674, %v1654
        %v1684 = vshrl.u32 %v1654, 16
        %v1685 = vshrl.u32 %v1674, 16
        %v1686 = vpack.i.b16 %v1685, %v1684
        %1687 = vxpose.xlu0.c.b16.start [1/8] %v1550, 128
        %1688 = vxpose.xlu0.c.b16.cont [2/8] 0, 128
        %1689 = vxpose.xlu0.c.b16.cont [3/8] 0, 128
        %1690 = vxpose.xlu0.c.b16.cont [4/8] 0, 128
        %1691 = vxpose.xlu0.c.b16.cont [5/8] 0, 128
        %1692 = vxpose.xlu0.c.b16.cont [6/8] 0, 128
        %1693 = vxpose.xlu0.c.b16.cont [7/8] 0, 128
        %1694 = vxpose.xlu0.c.b16.end [8/8] 0, 128
        %v1695 = vpop.trf.xlu0
        %v1696 = vpop.trf.xlu0
        %v1697 = vpop.trf.xlu0
        %v1698 = vpop.trf.xlu0
        %v1699 = vpop.trf.xlu0
        %v1700 = vpop.trf.xlu0
        %v1701 = vpop.trf.xlu0
        %v1702 = vpop.trf.xlu0
        %1703 = vxpose.xlu0.c.b16.start [1/8] %v1551, 128
        %1704 = vxpose.xlu0.c.b16.cont [2/8] 0, 128
        %1705 = vxpose.xlu0.c.b16.cont [3/8] 0, 128
        %1706 = vxpose.xlu0.c.b16.cont [4/8] 0, 128
        %1707 = vxpose.xlu0.c.b16.cont [5/8] 0, 128
        %1708 = vxpose.xlu0.c.b16.cont [6/8] 0, 128
        %1709 = vxpose.xlu0.c.b16.cont [7/8] 0, 128
        %1710 = vxpose.xlu0.c.b16.end [8/8] 0, 128
        %v1711 = vpop.trf.xlu0
        %v1712 = vpop.trf.xlu0
        %v1713 = vpop.trf.xlu0
        %v1714 = vpop.trf.xlu0
        %v1715 = vpop.trf.xlu0
        %v1716 = vpop.trf.xlu0
        %v1717 = vpop.trf.xlu0
        %v1718 = vpop.trf.xlu0
        %1719 = vxpose.xlu0.c.b16.start [1/8] %v1552, 128
        %1720 = vxpose.xlu0.c.b16.cont [2/8] 0, 128
        %1721 = vxpose.xlu0.c.b16.cont [3/8] 0, 128
        %1722 = vxpose.xlu0.c.b16.cont [4/8] 0, 128
        %1723 = vxpose.xlu0.c.b16.cont [5/8] 0, 128
        %1724 = vxpose.xlu0.c.b16.cont [6/8] 0, 128
        %1725 = vxpose.xlu0.c.b16.cont [7/8] 0, 128
        %1726 = vxpose.xlu0.c.b16.end [8/8] 0, 128
        %v1727 = vpop.trf.xlu0
        %v1728 = vpop.trf.xlu0
        %v1729 = vpop.trf.xlu0
        %v1730 = vpop.trf.xlu0
        %v1731 = vpop.trf.xlu0
        %v1732 = vpop.trf.xlu0
        %v1733 = vpop.trf.xlu0
        %v1734 = vpop.trf.xlu0
        %1735 = vxpose.xlu0.c.b16.start [1/8] %v1553, 128
        %1736 = vxpose.xlu0.c.b16.cont [2/8] 0, 128
        %1737 = vxpose.xlu0.c.b16.cont [3/8] 0, 128
        %1738 = vxpose.xlu0.c.b16.cont [4/8] 0, 128
        %1739 = vxpose.xlu0.c.b16.cont [5/8] 0, 128
        %1740 = vxpose.xlu0.c.b16.cont [6/8] 0, 128
        %1741 = vxpose.xlu0.c.b16.cont [7/8] 0, 128
        %1742 = vxpose.xlu0.c.b16.end [8/8] 0, 128
        %v1743 = vpop.trf.xlu0
        %v1744 = vpop.trf.xlu0
        %v1745 = vpop.trf.xlu0
        %v1746 = vpop.trf.xlu0
        %v1747 = vpop.trf.xlu0
        %v1748 = vpop.trf.xlu0
        %v1749 = vpop.trf.xlu0
        %v1750 = vpop.trf.xlu0
        %1751 = vxpose.xlu0.c.b16.start [1/8] %v1554, 128
        %1752 = vxpose.xlu0.c.b16.cont [2/8] 0, 128
        %1753 = vxpose.xlu0.c.b16.cont [3/8] 0, 128
        %1754 = vxpose.xlu0.c.b16.cont [4/8] 0, 128
        %1755 = vxpose.xlu0.c.b16.cont [5/8] 0, 128
        %1756 = vxpose.xlu0.c.b16.cont [6/8] 0, 128
        %1757 = vxpose.xlu0.c.b16.cont [7/8] 0, 128
        %1758 = vxpose.xlu0.c.b16.end [8/8] 0, 128
        %v1759 = vpop.trf.xlu0
        %v1760 = vpop.trf.xlu0
        %v1761 = vpop.trf.xlu0
        %v1762 = vpop.trf.xlu0
        %v1763 = vpop.trf.xlu0
        %v1764 = vpop.trf.xlu0
        %v1765 = vpop.trf.xlu0
        %v1766 = vpop.trf.xlu0
        %1767 = vxpose.xlu0.c.b16.start [1/8] %v1555, 128
        %1768 = vxpose.xlu0.c.b16.cont [2/8] 0, 128
        %1769 = vxpose.xlu0.c.b16.cont [3/8] 0, 128
        %1770 = vxpose.xlu0.c.b16.cont [4/8] 0, 128
        %1771 = vxpose.xlu0.c.b16.cont [5/8] 0, 128
        %1772 = vxpose.xlu0.c.b16.cont [6/8] 0, 128
        %1773 = vxpose.xlu0.c.b16.cont [7/8] 0, 128
        %1774 = vxpose.xlu0.c.b16.end [8/8] 0, 128
        %v1775 = vpop.trf.xlu0
        %v1776 = vpop.trf.xlu0
        %v1777 = vpop.trf.xlu0
        %v1778 = vpop.trf.xlu0
        %v1779 = vpop.trf.xlu0
        %v1780 = vpop.trf.xlu0
        %v1781 = vpop.trf.xlu0
        %v1782 = vpop.trf.xlu0
        %1783 = vxpose.xlu0.c.b16.start [1/8] %v1556, 128
        %1784 = vxpose.xlu0.c.b16.cont [2/8] 0, 128
        %1785 = vxpose.xlu0.c.b16.cont [3/8] 0, 128
        %1786 = vxpose.xlu0.c.b16.cont [4/8] 0, 128
        %1787 = vxpose.xlu0.c.b16.cont [5/8] 0, 128
        %1788 = vxpose.xlu0.c.b16.cont [6/8] 0, 128
        %1789 = vxpose.xlu0.c.b16.cont [7/8] 0, 128
        %1790 = vxpose.xlu0.c.b16.end [8/8] 0, 128
        %v1791 = vpop.trf.xlu0
        %v1792 = vpop.trf.xlu0
        %v1793 = vpop.trf.xlu0
        %v1794 = vpop.trf.xlu0
        %v1795 = vpop.trf.xlu0
        %v1796 = vpop.trf.xlu0
        %v1797 = vpop.trf.xlu0
        %v1798 = vpop.trf.xlu0
        %1799 = vxpose.xlu0.c.b16.start [1/8] %v1557, 128
        %1800 = vxpose.xlu0.c.b16.cont [2/8] 0, 128
        %1801 = vxpose.xlu0.c.b16.cont [3/8] 0, 128
        %1802 = vxpose.xlu0.c.b16.cont [4/8] 0, 128
        %1803 = vxpose.xlu0.c.b16.cont [5/8] 0, 128
        %1804 = vxpose.xlu0.c.b16.cont [6/8] 0, 128
        %1805 = vxpose.xlu0.c.b16.cont [7/8] 0, 128
        %1806 = vxpose.xlu0.c.b16.end [8/8] 0, 128
        %v1807 = vpop.trf.xlu0
        %v1808 = vpop.trf.xlu0
        %v1809 = vpop.trf.xlu0
        %v1810 = vpop.trf.xlu0
        %v1811 = vpop.trf.xlu0
        %v1812 = vpop.trf.xlu0
        %v1813 = vpop.trf.xlu0
        %v1814 = vpop.trf.xlu0
        %v1815 = vrot.slane %v1759, 4
        %v1816 = vsel %vm1635, %v1815, %v1695
        %v1818 = vunpack.c.l.s4 1983009808
        %v1819 = vunpack.c.0.s8 %v1818
        %v1820 = vperm.slane %v1816, %v1819
        %v1821 = vrot.slane %v1791, 4
        %v1822 = vsel %vm1635, %v1821, %v1727
        %v1824 = vunpack.c.l.s4 1983009808
        %v1825 = vunpack.c.0.s8 %v1824
        %v1826 = vperm.slane %v1822, %v1825
        %v1827 = vrot.slane %v1826, 4
        %v1828 = vsel %vm1635, %v1827, %v1820
        %v1829 = vrot.slane %v1820, 4
        %v1830 = vsel %vm1635, %v1826, %v1829
        %v1832 = vunpack.c.l.s4 1934713408
        %v1833 = vunpack.c.0.s8 %v1832
        %v1834 = vperm.slane %v1828, %v1833
        %v1836 = vunpack.c.l.s4 1934713408
        %v1837 = vunpack.c.0.s8 %v1836
        %v1838 = vperm.slane %v1830, %v1837
        %v1839 = vrot.slane %v1834, 4
        %v1840 = vsel %vm1635, 0, %v1839
        %v1841 = vrot.slane %v1838, 4
        %v1842 = vsel %vm1635, 0, %v1841
        %v1843 = vrot.slane %v1775, 4
        %v1844 = vsel %vm1635, %v1843, %v1711
        %v1846 = vunpack.c.l.s4 1983009808
        %v1847 = vunpack.c.0.s8 %v1846
        %v1848 = vperm.slane %v1844, %v1847
        %v1849 = vrot.slane %v1807, 4
        %v1850 = vsel %vm1635, %v1849, %v1743
        %v1852 = vunpack.c.l.s4 1983009808
        %v1853 = vunpack.c.0.s8 %v1852
        %v1854 = vperm.slane %v1850, %v1853
        %v1855 = vrot.slane %v1854, 4
        %v1856 = vsel %vm1635, %v1855, %v1848
        %v1857 = vrot.slane %v1848, 4
        %v1858 = vsel %vm1635, %v1854, %v1857
        %v1860 = vunpack.c.l.s4 1934713408
        %v1861 = vunpack.c.0.s8 %v1860
        %v1862 = vperm.slane %v1856, %v1861
        %v1864 = vunpack.c.l.s4 1934713408
        %v1865 = vunpack.c.0.s8 %v1864
        %v1866 = vperm.slane %v1858, %v1865
        %v1867 = vrot.slane %v1862, 4
        %v1868 = vsel %vm1635, 0, %v1867
        %v1869 = vrot.slane %v1866, 4
        %v1870 = vsel %vm1635, 0, %v1869
        %v1873 = vpack.i.b16 %v1862, %v1834
        %v1875 = vshrl.u32 %v1834, 16
        %v1876 = vshrl.u32 %v1862, 16
        %v1877 = vpack.i.b16 %v1876, %v1875
        %v1881 = vpack.i.b16 %v1868, %v1840
        %v1883 = vshrl.u32 %v1840, 16
        %v1884 = vshrl.u32 %v1868, 16
        %v1885 = vpack.i.b16 %v1884, %v1883
        %v1889 = vpack.i.b16 %v1866, %v1838
        %v1891 = vshrl.u32 %v1838, 16
        %v1892 = vshrl.u32 %v1866, 16
        %v1893 = vpack.i.b16 %v1892, %v1891
        %v1897 = vpack.i.b16 %v1870, %v1842
        %v1899 = vshrl.u32 %v1842, 16
        %v1900 = vshrl.u32 %v1870, 16
        %v1901 = vpack.i.b16 %v1900, %v1899
        %1903 = vxpose.xlu0.c.b16.start [1/8] %v1873, 128
        %1904 = vxpose.xlu0.c.b16.cont [2/8] 0, 128
        %1905 = vxpose.xlu0.c.b16.cont [3/8] 0, 128
        %1906 = vxpose.xlu0.c.b16.cont [4/8] 0, 128
        %1907 = vxpose.xlu0.c.b16.cont [5/8] 0, 128
        %1908 = vxpose.xlu0.c.b16.cont [6/8] 0, 128
        %1909 = vxpose.xlu0.c.b16.cont [7/8] 0, 128
        %1910 = vxpose.xlu0.c.b16.end [8/8] 0, 128
        %v1911 = vpop.trf.xlu0
        %v1912 = vpop.trf.xlu0
        %v1913 = vpop.trf.xlu0
        %v1914 = vpop.trf.xlu0
        %v1915 = vpop.trf.xlu0
        %v1916 = vpop.trf.xlu0
        %v1917 = vpop.trf.xlu0
        %v1918 = vpop.trf.xlu0
        %1919 = vxpose.xlu0.c.b16.start [1/8] %v1877, 128
        %1920 = vxpose.xlu0.c.b16.cont [2/8] 0, 128
        %1921 = vxpose.xlu0.c.b16.cont [3/8] 0, 128
        %1922 = vxpose.xlu0.c.b16.cont [4/8] 0, 128
        %1923 = vxpose.xlu0.c.b16.cont [5/8] 0, 128
        %1924 = vxpose.xlu0.c.b16.cont [6/8] 0, 128
        %1925 = vxpose.xlu0.c.b16.cont [7/8] 0, 128
        %1926 = vxpose.xlu0.c.b16.end [8/8] 0, 128
        %v1927 = vpop.trf.xlu0
        %v1928 = vpop.trf.xlu0
        %v1929 = vpop.trf.xlu0
        %v1930 = vpop.trf.xlu0
        %v1931 = vpop.trf.xlu0
        %v1932 = vpop.trf.xlu0
        %v1933 = vpop.trf.xlu0
        %v1934 = vpop.trf.xlu0
        %1935 = vxpose.xlu0.c.b16.start [1/8] %v1881, 128
        %1936 = vxpose.xlu0.c.b16.cont [2/8] 0, 128
        %1937 = vxpose.xlu0.c.b16.cont [3/8] 0, 128
        %1938 = vxpose.xlu0.c.b16.cont [4/8] 0, 128
        %1939 = vxpose.xlu0.c.b16.cont [5/8] 0, 128
        %1940 = vxpose.xlu0.c.b16.cont [6/8] 0, 128
        %1941 = vxpose.xlu0.c.b16.cont [7/8] 0, 128
        %1942 = vxpose.xlu0.c.b16.end [8/8] 0, 128
        %v1943 = vpop.trf.xlu0
        %v1944 = vpop.trf.xlu0
        %v1945 = vpop.trf.xlu0
        %v1946 = vpop.trf.xlu0
        %v1947 = vpop.trf.xlu0
        %v1948 = vpop.trf.xlu0
        %v1949 = vpop.trf.xlu0
        %v1950 = vpop.trf.xlu0
        %1951 = vxpose.xlu0.c.b16.start [1/8] %v1885, 128
        %1952 = vxpose.xlu0.c.b16.cont [2/8] 0, 128
        %1953 = vxpose.xlu0.c.b16.cont [3/8] 0, 128
        %1954 = vxpose.xlu0.c.b16.cont [4/8] 0, 128
        %1955 = vxpose.xlu0.c.b16.cont [5/8] 0, 128
        %1956 = vxpose.xlu0.c.b16.cont [6/8] 0, 128
        %1957 = vxpose.xlu0.c.b16.cont [7/8] 0, 128
        %1958 = vxpose.xlu0.c.b16.end [8/8] 0, 128
        %v1959 = vpop.trf.xlu0
        %v1960 = vpop.trf.xlu0
        %v1961 = vpop.trf.xlu0
        %v1962 = vpop.trf.xlu0
        %v1963 = vpop.trf.xlu0
        %v1964 = vpop.trf.xlu0
        %v1965 = vpop.trf.xlu0
        %v1966 = vpop.trf.xlu0
        %1967 = vxpose.xlu0.c.b16.start [1/8] %v1889, 128
        %1968 = vxpose.xlu0.c.b16.cont [2/8] 0, 128
        %1969 = vxpose.xlu0.c.b16.cont [3/8] 0, 128
        %1970 = vxpose.xlu0.c.b16.cont [4/8] 0, 128
        %1971 = vxpose.xlu0.c.b16.cont [5/8] 0, 128
        %1972 = vxpose.xlu0.c.b16.cont [6/8] 0, 128
        %1973 = vxpose.xlu0.c.b16.cont [7/8] 0, 128
        %1974 = vxpose.xlu0.c.b16.end [8/8] 0, 128
        %v1975 = vpop.trf.xlu0
        %v1976 = vpop.trf.xlu0
        %v1977 = vpop.trf.xlu0
        %v1978 = vpop.trf.xlu0
        %v1979 = vpop.trf.xlu0
        %v1980 = vpop.trf.xlu0
        %v1981 = vpop.trf.xlu0
        %v1982 = vpop.trf.xlu0
        %1983 = vxpose.xlu0.c.b16.start [1/8] %v1893, 128
        %1984 = vxpose.xlu0.c.b16.cont [2/8] 0, 128
        %1985 = vxpose.xlu0.c.b16.cont [3/8] 0, 128
        %1986 = vxpose.xlu0.c.b16.cont [4/8] 0, 128
        %1987 = vxpose.xlu0.c.b16.cont [5/8] 0, 128
        %1988 = vxpose.xlu0.c.b16.cont [6/8] 0, 128
        %1989 = vxpose.xlu0.c.b16.cont [7/8] 0, 128
        %1990 = vxpose.xlu0.c.b16.end [8/8] 0, 128
        %v1991 = vpop.trf.xlu0
        %v1992 = vpop.trf.xlu0
        %v1993 = vpop.trf.xlu0
        %v1994 = vpop.trf.xlu0
        %v1995 = vpop.trf.xlu0
        %v1996 = vpop.trf.xlu0
        %v1997 = vpop.trf.xlu0
        %v1998 = vpop.trf.xlu0
        %1999 = vxpose.xlu0.c.b16.start [1/8] %v1897, 128
        %2000 = vxpose.xlu0.c.b16.cont [2/8] 0, 128
        %2001 = vxpose.xlu0.c.b16.cont [3/8] 0, 128
        %2002 = vxpose.xlu0.c.b16.cont [4/8] 0, 128
        %2003 = vxpose.xlu0.c.b16.cont [5/8] 0, 128
        %2004 = vxpose.xlu0.c.b16.cont [6/8] 0, 128
        %2005 = vxpose.xlu0.c.b16.cont [7/8] 0, 128
        %2006 = vxpose.xlu0.c.b16.end [8/8] 0, 128
        %v2007 = vpop.trf.xlu0
        %v2008 = vpop.trf.xlu0
        %v2009 = vpop.trf.xlu0
        %v2010 = vpop.trf.xlu0
        %v2011 = vpop.trf.xlu0
        %v2012 = vpop.trf.xlu0
        %v2013 = vpop.trf.xlu0
        %v2014 = vpop.trf.xlu0
        %2015 = vxpose.xlu0.c.b16.start [1/8] %v1901, 128
        %2016 = vxpose.xlu0.c.b16.cont [2/8] 0, 128
        %2017 = vxpose.xlu0.c.b16.cont [3/8] 0, 128
        %2018 = vxpose.xlu0.c.b16.cont [4/8] 0, 128
        %2019 = vxpose.xlu0.c.b16.cont [5/8] 0, 128
        %2020 = vxpose.xlu0.c.b16.cont [6/8] 0, 128
        %2021 = vxpose.xlu0.c.b16.cont [7/8] 0, 128
        %2022 = vxpose.xlu0.c.b16.end [8/8] 0, 128
        %v2023 = vpop.trf.xlu0
        %v2024 = vpop.trf.xlu0
        %v2025 = vpop.trf.xlu0
        %v2026 = vpop.trf.xlu0
        %v2027 = vpop.trf.xlu0
        %v2028 = vpop.trf.xlu0
        %v2029 = vpop.trf.xlu0
        %v2030 = vpop.trf.xlu0
        %v2031 = vrot.slane %v1975, 4
        %v2032 = vsel %vm1635, %v2031, %v1911
        %v2034 = vunpack.c.l.s4 1983009808
        %v2035 = vunpack.c.0.s8 %v2034
        %v2036 = vperm.slane %v2032, %v2035
        %v2037 = vrot.slane %v2007, 4
        %v2038 = vsel %vm1635, %v2037, %v1943
        %v2040 = vunpack.c.l.s4 1983009808
        %v2041 = vunpack.c.0.s8 %v2040
        %v2042 = vperm.slane %v2038, %v2041
        %v2043 = vrot.slane %v2042, 4
        %v2044 = vsel %vm1635, %v2043, %v2036
        %v2046 = vunpack.c.l.s4 1934713408
        %v2047 = vunpack.c.0.s8 %v2046
        %v2048 = vperm.slane %v2044, %v2047
        %v2049 = vrot.slane %v2048, 4
        %v2050 = vsel %vm1635, 0, %v2049
        %v2051 = vrot.slane %v1991, 4
        %v2052 = vsel %vm1635, %v2051, %v1927
        %v2054 = vunpack.c.l.s4 1983009808
        %v2055 = vunpack.c.0.s8 %v2054
        %v2056 = vperm.slane %v2052, %v2055
        %v2057 = vrot.slane %v2023, 4
        %v2058 = vsel %vm1635, %v2057, %v1959
        %v2060 = vunpack.c.l.s4 1983009808
        %v2061 = vunpack.c.0.s8 %v2060
        %v2062 = vperm.slane %v2058, %v2061
        %v2063 = vrot.slane %v2062, 4
        %v2064 = vsel %vm1635, %v2063, %v2056
        %v2066 = vunpack.c.l.s4 1934713408
        %v2067 = vunpack.c.0.s8 %v2066
        %v2068 = vperm.slane %v2064, %v2067
        %v2069 = vrot.slane %v2068, 4
        %v2070 = vsel %vm1635, 0, %v2069
        %v2073 = vpack.i.b16 %v2068, %v2048
        %v2074 = vshrl.u32 %v2048, 16
        %v2075 = vshrl.u32 %v2068, 16
        %v2076 = vpack.i.b16 %v2075, %v2074
        %v2079 = vpack.i.b16 %v2070, %v2050
        %v2080 = vshrl.u32 %v2050, 16
        %v2081 = vshrl.u32 %v2070, 16
        %v2082 = vpack.i.b16 %v2081, %v2080
        %vm2083 = vcmask 64512
        %v2085 = vsel %vm2083, %v1677, 0
        %vm2087 = vcmask 1043456
        %v2089 = vsel %vm2087, %v2073, 0
        %2091 = vmatpush.bf16.msra.mxu0 0
        %2092 = vmatpush.bf16.msra.mxu0 0
        %2093 = vmatpush.bf16.msra.mxu0 0
        %2094 = vmatpush.bf16.msra.mxu0 0
        %2095 = vmatpush.bf16.msra.mxu0 0
        %2096 = vmatpush.bf16.msra.mxu0 0
        %2097 = vmatpush.bf16.msra.mxu0 0
        %2098 = vmatpush.bf16.msra.mxu0 %v2089
        %2099 = vmatmul.bf16.gmra.mxu0 %v2085
        %v2100 = vpop.f32.mrf.mxu0
        %v2101 = vadd.f32 0.0, %v2100
        %v2102 = vpop.f32.mrf.mxu0
        %2103 = vdwg.mxu0
        %v2105 = vsel %vm2083, %v1680, 0
        %v2108 = vsel %vm2087, %v2076, 0
        %2110 = vmatpush.bf16.msra.mxu0 0
        %2111 = vmatpush.bf16.msra.mxu0 0
        %2112 = vmatpush.bf16.msra.mxu0 0
        %2113 = vmatpush.bf16.msra.mxu0 0
        %2114 = vmatpush.bf16.msra.mxu0 0
        %2115 = vmatpush.bf16.msra.mxu0 0
        %2116 = vmatpush.bf16.msra.mxu0 0
        %2117 = vmatpush.bf16.msra.mxu0 %v2108
        %2118 = vmatmul.bf16.gmra.mxu0 %v2105
        %v2119 = vpop.f32.mrf.mxu0
        %v2120 = vadd.f32 0.0, %v2119
        %v2121 = vpop.f32.mrf.mxu0
        %2122 = vdwg.mxu0
        %v2124 = vsel %vm2083, %v1683, 0
        %v2127 = vsel %vm2087, %v2079, 0
        %2129 = vmatpush.bf16.msra.mxu0 0
        %2130 = vmatpush.bf16.msra.mxu0 0
        %2131 = vmatpush.bf16.msra.mxu0 0
        %2132 = vmatpush.bf16.msra.mxu0 0
        %2133 = vmatpush.bf16.msra.mxu0 0
        %2134 = vmatpush.bf16.msra.mxu0 0
        %2135 = vmatpush.bf16.msra.mxu0 0
        %2136 = vmatpush.bf16.msra.mxu0 %v2127
        %2137 = vmatmul.bf16.gmra.mxu0 %v2124
        %v2138 = vpop.f32.mrf.mxu0
        %v2139 = vadd.f32 0.0, %v2138
        %v2140 = vpop.f32.mrf.mxu0
        %2141 = vdwg.mxu0
        %v2143 = vsel %vm2083, %v1686, 0
        %v2146 = vsel %vm2087, %v2082, 0
        %2148 = vmatpush.bf16.msra.mxu0 0
        %2149 = vmatpush.bf16.msra.mxu0 0
        %2150 = vmatpush.bf16.msra.mxu0 0
        %2151 = vmatpush.bf16.msra.mxu0 0
        %2152 = vmatpush.bf16.msra.mxu0 0
        %2153 = vmatpush.bf16.msra.mxu0 0
        %2154 = vmatpush.bf16.msra.mxu0 0
        %2155 = vmatpush.bf16.msra.mxu0 %v2146
        %2156 = vmatmul.bf16.gmra.mxu0 %v2143
        %v2157 = vpop.f32.mrf.mxu0
        %v2158 = vadd.f32 0.0, %v2157
        %v2159 = vpop.f32.mrf.mxu0
        %2160 = vdwg.mxu0
        %v2161 = vmul.f32 %v2101, 0.35355338
        %v2162 = vmul.f32 %v2120, 0.35355338
        %v2163 = vmul.f32 %v2139, 0.35355338
        %v2164 = vmul.f32 %v2158, 0.35355338
        %v2165 = vadd.f32 %v2161, %v1367
        %v2166 = vadd.f32 %v2162, %v1367
        %v2167 = vadd.f32 %v2163, %v1367
        %v2168 = vadd.f32 %v2164, %v1367
        %v2169 = vsel %vm2083, %v2165, -inf
        %2170 = vmax.xlane.f32.xlu0 %v2169
        %v2171 = vpop.xlane.xlu0 %2170
        %v2172 = vsel %vm2083, %v2166, -inf
        %2173 = vmax.xlane.f32.xlu0 %v2172
        %v2174 = vpop.xlane.xlu0 %2173
        %v2175 = vsel %vm2083, %v2167, -inf
        %2176 = vmax.xlane.f32.xlu0 %v2175
        %v2177 = vpop.xlane.xlu0 %2176
        %v2178 = vsel %vm2083, %v2168, -inf
        %2179 = vmax.xlane.f32.xlu0 %v2178
        %v2180 = vpop.xlane.xlu0 %2179
        %v2181 = vsub.f32 %v2165, %v2171
        %v2182 = vsub.f32 %v2166, %v2174
        %v2183 = vsub.f32 %v2167, %v2177
        %v2184 = vsub.f32 %v2168, %v2180
        %v2185 = vmul.f32 %v2181, 1.442695
        %v2186 = vpow.pop %v2185
        %v2187 = vmul.f32 %v2182, 1.442695
        %v2188 = vpow.pop %v2187
        %v2189 = vmul.f32 %v2183, 1.442695
        %v2190 = vpow.pop %v2189
        %v2191 = vmul.f32 %v2184, 1.442695
        %v2192 = vpow.pop %v2191
        %v2193 = vsel %vm2083, %v2186, 0.0
        %2194 = vadd.xlane.f32.xlu0 %v2193
        %v2195 = vpop.xlane.xlu0 %2194
        %v2196 = vsel %vm2083, %v2188, 0.0
        %2197 = vadd.xlane.f32.xlu0 %v2196
        %v2198 = vpop.xlane.xlu0 %2197
        %v2199 = vsel %vm2083, %v2190, 0.0
        %2200 = vadd.xlane.f32.xlu0 %v2199
        %v2201 = vpop.xlane.xlu0 %2200
        %v2202 = vsel %vm2083, %v2192, 0.0
        %2203 = vadd.xlane.f32.xlu0 %v2202
        %v2204 = vpop.xlane.xlu0 %2203
        %v2205 = vrcp.pop %v2195
        %v2206 = vrcp.pop %v2198
        %v2207 = vrcp.pop %v2201
        %v2208 = vrcp.pop %v2204
        %v2209 = vmul.f32 %v2186, %v2205
        %v2210 = vmul.f32 %v2188, %v2206
        %v2211 = vmul.f32 %v2190, %v2207
        %v2212 = vmul.f32 %v2192, %v2208
        %v2213 = vpack.c.bf16 %v2209, %v2209
        %v2214 = vpack.c.bf16 %v2210, %v2210
        %v2215 = vpack.c.bf16 %v2211, %v2211
        %v2216 = vpack.c.bf16 %v2212, %v2212
        %2217 = vxpose.xlu0.c.b16.start [1/8] %v1626, 128
        %2218 = vxpose.xlu0.c.b16.cont [2/8] 0, 128
        %2219 = vxpose.xlu0.c.b16.cont [3/8] 0, 128
        %2220 = vxpose.xlu0.c.b16.cont [4/8] 0, 128
        %2221 = vxpose.xlu0.c.b16.cont [5/8] 0, 128
        %2222 = vxpose.xlu0.c.b16.cont [6/8] 0, 128
        %2223 = vxpose.xlu0.c.b16.cont [7/8] 0, 128
        %2224 = vxpose.xlu0.c.b16.end [8/8] 0, 128
        %v2225 = vpop.trf.xlu0
        %v2226 = vpop.trf.xlu0
        %v2227 = vpop.trf.xlu0
        %v2228 = vpop.trf.xlu0
        %v2229 = vpop.trf.xlu0
        %v2230 = vpop.trf.xlu0
        %v2231 = vpop.trf.xlu0
        %v2232 = vpop.trf.xlu0
        %2233 = vxpose.xlu0.c.b16.start [1/8] %v1627, 128
        %2234 = vxpose.xlu0.c.b16.cont [2/8] 0, 128
        %2235 = vxpose.xlu0.c.b16.cont [3/8] 0, 128
        %2236 = vxpose.xlu0.c.b16.cont [4/8] 0, 128
        %2237 = vxpose.xlu0.c.b16.cont [5/8] 0, 128
        %2238 = vxpose.xlu0.c.b16.cont [6/8] 0, 128
        %2239 = vxpose.xlu0.c.b16.cont [7/8] 0, 128
        %2240 = vxpose.xlu0.c.b16.end [8/8] 0, 128
        %v2241 = vpop.trf.xlu0
        %v2242 = vpop.trf.xlu0
        %v2243 = vpop.trf.xlu0
        %v2244 = vpop.trf.xlu0
        %v2245 = vpop.trf.xlu0
        %v2246 = vpop.trf.xlu0
        %v2247 = vpop.trf.xlu0
        %v2248 = vpop.trf.xlu0
        %2249 = vxpose.xlu0.c.b16.start [1/8] %v1628, 128
        %2250 = vxpose.xlu0.c.b16.cont [2/8] 0, 128
        %2251 = vxpose.xlu0.c.b16.cont [3/8] 0, 128
        %2252 = vxpose.xlu0.c.b16.cont [4/8] 0, 128
        %2253 = vxpose.xlu0.c.b16.cont [5/8] 0, 128
        %2254 = vxpose.xlu0.c.b16.cont [6/8] 0, 128
        %2255 = vxpose.xlu0.c.b16.cont [7/8] 0, 128
        %2256 = vxpose.xlu0.c.b16.end [8/8] 0, 128
        %v2257 = vpop.trf.xlu0
        %v2258 = vpop.trf.xlu0
        %v2259 = vpop.trf.xlu0
        %v2260 = vpop.trf.xlu0
        %v2261 = vpop.trf.xlu0
        %v2262 = vpop.trf.xlu0
        %v2263 = vpop.trf.xlu0
        %v2264 = vpop.trf.xlu0
        %2265 = vxpose.xlu0.c.b16.start [1/8] %v1629, 128
        %2266 = vxpose.xlu0.c.b16.cont [2/8] 0, 128
        %2267 = vxpose.xlu0.c.b16.cont [3/8] 0, 128
        %2268 = vxpose.xlu0.c.b16.cont [4/8] 0, 128
        %2269 = vxpose.xlu0.c.b16.cont [5/8] 0, 128
        %2270 = vxpose.xlu0.c.b16.cont [6/8] 0, 128
        %2271 = vxpose.xlu0.c.b16.cont [7/8] 0, 128
        %2272 = vxpose.xlu0.c.b16.end [8/8] 0, 128
        %v2273 = vpop.trf.xlu0
        %v2274 = vpop.trf.xlu0
        %v2275 = vpop.trf.xlu0
        %v2276 = vpop.trf.xlu0
        %v2277 = vpop.trf.xlu0
        %v2278 = vpop.trf.xlu0
        %v2279 = vpop.trf.xlu0
        %v2280 = vpop.trf.xlu0
        %2281 = vxpose.xlu0.c.b16.start [1/8] %v1630, 128
        %2282 = vxpose.xlu0.c.b16.cont [2/8] 0, 128
        %2283 = vxpose.xlu0.c.b16.cont [3/8] 0, 128
        %2284 = vxpose.xlu0.c.b16.cont [4/8] 0, 128
        %2285 = vxpose.xlu0.c.b16.cont [5/8] 0, 128
        %2286 = vxpose.xlu0.c.b16.cont [6/8] 0, 128
        %2287 = vxpose.xlu0.c.b16.cont [7/8] 0, 128
        %2288 = vxpose.xlu0.c.b16.end [8/8] 0, 128
        %v2289 = vpop.trf.xlu0
        %v2290 = vpop.trf.xlu0
        %v2291 = vpop.trf.xlu0
        %v2292 = vpop.trf.xlu0
        %v2293 = vpop.trf.xlu0
        %v2294 = vpop.trf.xlu0
        %v2295 = vpop.trf.xlu0
        %v2296 = vpop.trf.xlu0
        %2297 = vxpose.xlu0.c.b16.start [1/8] %v1631, 128
        %2298 = vxpose.xlu0.c.b16.cont [2/8] 0, 128
        %2299 = vxpose.xlu0.c.b16.cont [3/8] 0, 128
        %2300 = vxpose.xlu0.c.b16.cont [4/8] 0, 128
        %2301 = vxpose.xlu0.c.b16.cont [5/8] 0, 128
        %2302 = vxpose.xlu0.c.b16.cont [6/8] 0, 128
        %2303 = vxpose.xlu0.c.b16.cont [7/8] 0, 128
        %2304 = vxpose.xlu0.c.b16.end [8/8] 0, 128
        %v2305 = vpop.trf.xlu0
        %v2306 = vpop.trf.xlu0
        %v2307 = vpop.trf.xlu0
        %v2308 = vpop.trf.xlu0
        %v2309 = vpop.trf.xlu0
        %v2310 = vpop.trf.xlu0
        %v2311 = vpop.trf.xlu0
        %v2312 = vpop.trf.xlu0
        %2313 = vxpose.xlu0.c.b16.start [1/8] %v1632, 128
        %2314 = vxpose.xlu0.c.b16.cont [2/8] 0, 128
        %2315 = vxpose.xlu0.c.b16.cont [3/8] 0, 128
        %2316 = vxpose.xlu0.c.b16.cont [4/8] 0, 128
        %2317 = vxpose.xlu0.c.b16.cont [5/8] 0, 128
        %2318 = vxpose.xlu0.c.b16.cont [6/8] 0, 128
        %2319 = vxpose.xlu0.c.b16.cont [7/8] 0, 128
        %2320 = vxpose.xlu0.c.b16.end [8/8] 0, 128
        %v2321 = vpop.trf.xlu0
        %v2322 = vpop.trf.xlu0
        %v2323 = vpop.trf.xlu0
        %v2324 = vpop.trf.xlu0
        %v2325 = vpop.trf.xlu0
        %v2326 = vpop.trf.xlu0
        %v2327 = vpop.trf.xlu0
        %v2328 = vpop.trf.xlu0
        %2329 = vxpose.xlu0.c.b16.start [1/8] %v1633, 128
        %2330 = vxpose.xlu0.c.b16.cont [2/8] 0, 128
        %2331 = vxpose.xlu0.c.b16.cont [3/8] 0, 128
        %2332 = vxpose.xlu0.c.b16.cont [4/8] 0, 128
        %2333 = vxpose.xlu0.c.b16.cont [5/8] 0, 128
        %2334 = vxpose.xlu0.c.b16.cont [6/8] 0, 128
        %2335 = vxpose.xlu0.c.b16.cont [7/8] 0, 128
        %2336 = vxpose.xlu0.c.b16.end [8/8] 0, 128
        %v2337 = vpop.trf.xlu0
        %v2338 = vpop.trf.xlu0
        %v2339 = vpop.trf.xlu0
        %v2340 = vpop.trf.xlu0
        %v2341 = vpop.trf.xlu0
        %v2342 = vpop.trf.xlu0
        %v2343 = vpop.trf.xlu0
        %v2344 = vpop.trf.xlu0
        %v2345 = vrot.slane %v2289, 4
        %v2346 = vsel %vm1635, %v2345, %v2225
        %v2348 = vunpack.c.l.s4 1983009808
        %v2349 = vunpack.c.0.s8 %v2348
        %v2350 = vperm.slane %v2346, %v2349
        %v2351 = vrot.slane %v2321, 4
        %v2352 = vsel %vm1635, %v2351, %v2257
        %v2354 = vunpack.c.l.s4 1983009808
        %v2355 = vunpack.c.0.s8 %v2354
        %v2356 = vperm.slane %v2352, %v2355
        %v2357 = vrot.slane %v2356, 4
        %v2358 = vsel %vm1635, %v2357, %v2350
        %v2359 = vrot.slane %v2350, 4
        %v2360 = vsel %vm1635, %v2356, %v2359
        %v2362 = vunpack.c.l.s4 1934713408
        %v2363 = vunpack.c.0.s8 %v2362
        %v2364 = vperm.slane %v2358, %v2363
        %v2366 = vunpack.c.l.s4 1934713408
        %v2367 = vunpack.c.0.s8 %v2366
        %v2368 = vperm.slane %v2360, %v2367
        %v2369 = vrot.slane %v2364, 4
        %v2370 = vsel %vm1635, 0, %v2369
        %v2371 = vrot.slane %v2368, 4
        %v2372 = vsel %vm1635, 0, %v2371
        %v2373 = vrot.slane %v2305, 4
        %v2374 = vsel %vm1635, %v2373, %v2241
        %v2376 = vunpack.c.l.s4 1983009808
        %v2377 = vunpack.c.0.s8 %v2376
        %v2378 = vperm.slane %v2374, %v2377
        %v2379 = vrot.slane %v2337, 4
        %v2380 = vsel %vm1635, %v2379, %v2273
        %v2382 = vunpack.c.l.s4 1983009808
        %v2383 = vunpack.c.0.s8 %v2382
        %v2384 = vperm.slane %v2380, %v2383
        %v2385 = vrot.slane %v2384, 4
        %v2386 = vsel %vm1635, %v2385, %v2378
        %v2387 = vrot.slane %v2378, 4
        %v2388 = vsel %vm1635, %v2384, %v2387
        %v2390 = vunpack.c.l.s4 1934713408
        %v2391 = vunpack.c.0.s8 %v2390
        %v2392 = vperm.slane %v2386, %v2391
        %v2394 = vunpack.c.l.s4 1934713408
        %v2395 = vunpack.c.0.s8 %v2394
        %v2396 = vperm.slane %v2388, %v2395
        %v2397 = vrot.slane %v2392, 4
        %v2398 = vsel %vm1635, 0, %v2397
        %v2399 = vrot.slane %v2396, 4
        %v2400 = vsel %vm1635, 0, %v2399
        %v2403 = vpack.i.b16 %v2392, %v2364
        %v2405 = vshrl.u32 %v2364, 16
        %v2406 = vshrl.u32 %v2392, 16
        %v2407 = vpack.i.b16 %v2406, %v2405
        %v2411 = vpack.i.b16 %v2398, %v2370
        %v2413 = vshrl.u32 %v2370, 16
        %v2414 = vshrl.u32 %v2398, 16
        %v2415 = vpack.i.b16 %v2414, %v2413
        %v2419 = vpack.i.b16 %v2396, %v2368
        %v2421 = vshrl.u32 %v2368, 16
        %v2422 = vshrl.u32 %v2396, 16
        %v2423 = vpack.i.b16 %v2422, %v2421
        %v2427 = vpack.i.b16 %v2400, %v2372
        %v2429 = vshrl.u32 %v2372, 16
        %v2430 = vshrl.u32 %v2400, 16
        %v2431 = vpack.i.b16 %v2430, %v2429
        %2433 = vxpose.xlu0.c.b16.start [1/8] %v2403, 128
        %2434 = vxpose.xlu0.c.b16.cont [2/8] 0, 128
        %2435 = vxpose.xlu0.c.b16.cont [3/8] 0, 128
        %2436 = vxpose.xlu0.c.b16.cont [4/8] 0, 128
        %2437 = vxpose.xlu0.c.b16.cont [5/8] 0, 128
        %2438 = vxpose.xlu0.c.b16.cont [6/8] 0, 128
        %2439 = vxpose.xlu0.c.b16.cont [7/8] 0, 128
        %2440 = vxpose.xlu0.c.b16.end [8/8] 0, 128
        %v2441 = vpop.trf.xlu0
        %v2442 = vpop.trf.xlu0
        %v2443 = vpop.trf.xlu0
        %v2444 = vpop.trf.xlu0
        %v2445 = vpop.trf.xlu0
        %v2446 = vpop.trf.xlu0
        %v2447 = vpop.trf.xlu0
        %v2448 = vpop.trf.xlu0
        %2449 = vxpose.xlu0.c.b16.start [1/8] %v2407, 128
        %2450 = vxpose.xlu0.c.b16.cont [2/8] 0, 128
        %2451 = vxpose.xlu0.c.b16.cont [3/8] 0, 128
        %2452 = vxpose.xlu0.c.b16.cont [4/8] 0, 128
        %2453 = vxpose.xlu0.c.b16.cont [5/8] 0, 128
        %2454 = vxpose.xlu0.c.b16.cont [6/8] 0, 128
        %2455 = vxpose.xlu0.c.b16.cont [7/8] 0, 128
        %2456 = vxpose.xlu0.c.b16.end [8/8] 0, 128
        %v2457 = vpop.trf.xlu0
        %v2458 = vpop.trf.xlu0
        %v2459 = vpop.trf.xlu0
        %v2460 = vpop.trf.xlu0
        %v2461 = vpop.trf.xlu0
        %v2462 = vpop.trf.xlu0
        %v2463 = vpop.trf.xlu0
        %v2464 = vpop.trf.xlu0
        %2465 = vxpose.xlu0.c.b16.start [1/8] %v2411, 128
        %2466 = vxpose.xlu0.c.b16.cont [2/8] 0, 128
        %2467 = vxpose.xlu0.c.b16.cont [3/8] 0, 128
        %2468 = vxpose.xlu0.c.b16.cont [4/8] 0, 128
        %2469 = vxpose.xlu0.c.b16.cont [5/8] 0, 128
        %2470 = vxpose.xlu0.c.b16.cont [6/8] 0, 128
        %2471 = vxpose.xlu0.c.b16.cont [7/8] 0, 128
        %2472 = vxpose.xlu0.c.b16.end [8/8] 0, 128
        %v2473 = vpop.trf.xlu0
        %v2474 = vpop.trf.xlu0
        %v2475 = vpop.trf.xlu0
        %v2476 = vpop.trf.xlu0
        %v2477 = vpop.trf.xlu0
        %v2478 = vpop.trf.xlu0
        %v2479 = vpop.trf.xlu0
        %v2480 = vpop.trf.xlu0
        %2481 = vxpose.xlu0.c.b16.start [1/8] %v2415, 128
        %2482 = vxpose.xlu0.c.b16.cont [2/8] 0, 128
        %2483 = vxpose.xlu0.c.b16.cont [3/8] 0, 128
        %2484 = vxpose.xlu0.c.b16.cont [4/8] 0, 128
        %2485 = vxpose.xlu0.c.b16.cont [5/8] 0, 128
        %2486 = vxpose.xlu0.c.b16.cont [6/8] 0, 128
        %2487 = vxpose.xlu0.c.b16.cont [7/8] 0, 128
        %2488 = vxpose.xlu0.c.b16.end [8/8] 0, 128
        %v2489 = vpop.trf.xlu0
        %v2490 = vpop.trf.xlu0
        %v2491 = vpop.trf.xlu0
        %v2492 = vpop.trf.xlu0
        %v2493 = vpop.trf.xlu0
        %v2494 = vpop.trf.xlu0
        %v2495 = vpop.trf.xlu0
        %v2496 = vpop.trf.xlu0
        %2497 = vxpose.xlu0.c.b16.start [1/8] %v2419, 128
        %2498 = vxpose.xlu0.c.b16.cont [2/8] 0, 128
        %2499 = vxpose.xlu0.c.b16.cont [3/8] 0, 128
        %2500 = vxpose.xlu0.c.b16.cont [4/8] 0, 128
        %2501 = vxpose.xlu0.c.b16.cont [5/8] 0, 128
        %2502 = vxpose.xlu0.c.b16.cont [6/8] 0, 128
        %2503 = vxpose.xlu0.c.b16.cont [7/8] 0, 128
        %2504 = vxpose.xlu0.c.b16.end [8/8] 0, 128
        %v2505 = vpop.trf.xlu0
        %v2506 = vpop.trf.xlu0
        %v2507 = vpop.trf.xlu0
        %v2508 = vpop.trf.xlu0
        %v2509 = vpop.trf.xlu0
        %v2510 = vpop.trf.xlu0
        %v2511 = vpop.trf.xlu0
        %v2512 = vpop.trf.xlu0
        %2513 = vxpose.xlu0.c.b16.start [1/8] %v2423, 128
        %2514 = vxpose.xlu0.c.b16.cont [2/8] 0, 128
        %2515 = vxpose.xlu0.c.b16.cont [3/8] 0, 128
        %2516 = vxpose.xlu0.c.b16.cont [4/8] 0, 128
        %2517 = vxpose.xlu0.c.b16.cont [5/8] 0, 128
        %2518 = vxpose.xlu0.c.b16.cont [6/8] 0, 128
        %2519 = vxpose.xlu0.c.b16.cont [7/8] 0, 128
        %2520 = vxpose.xlu0.c.b16.end [8/8] 0, 128
        %v2521 = vpop.trf.xlu0
        %v2522 = vpop.trf.xlu0
        %v2523 = vpop.trf.xlu0
        %v2524 = vpop.trf.xlu0
        %v2525 = vpop.trf.xlu0
        %v2526 = vpop.trf.xlu0
        %v2527 = vpop.trf.xlu0
        %v2528 = vpop.trf.xlu0
        %2529 = vxpose.xlu0.c.b16.start [1/8] %v2427, 128
        %2530 = vxpose.xlu0.c.b16.cont [2/8] 0, 128
        %2531 = vxpose.xlu0.c.b16.cont [3/8] 0, 128
        %2532 = vxpose.xlu0.c.b16.cont [4/8] 0, 128
        %2533 = vxpose.xlu0.c.b16.cont [5/8] 0, 128
        %2534 = vxpose.xlu0.c.b16.cont [6/8] 0, 128
        %2535 = vxpose.xlu0.c.b16.cont [7/8] 0, 128
        %2536 = vxpose.xlu0.c.b16.end [8/8] 0, 128
        %v2537 = vpop.trf.xlu0
        %v2538 = vpop.trf.xlu0
        %v2539 = vpop.trf.xlu0
        %v2540 = vpop.trf.xlu0
        %v2541 = vpop.trf.xlu0
        %v2542 = vpop.trf.xlu0
        %v2543 = vpop.trf.xlu0
        %v2544 = vpop.trf.xlu0
        %2545 = vxpose.xlu0.c.b16.start [1/8] %v2431, 128
        %2546 = vxpose.xlu0.c.b16.cont [2/8] 0, 128
        %2547 = vxpose.xlu0.c.b16.cont [3/8] 0, 128
        %2548 = vxpose.xlu0.c.b16.cont [4/8] 0, 128
        %2549 = vxpose.xlu0.c.b16.cont [5/8] 0, 128
        %2550 = vxpose.xlu0.c.b16.cont [6/8] 0, 128
        %2551 = vxpose.xlu0.c.b16.cont [7/8] 0, 128
        %2552 = vxpose.xlu0.c.b16.end [8/8] 0, 128
        %v2553 = vpop.trf.xlu0
        %v2554 = vpop.trf.xlu0
        %v2555 = vpop.trf.xlu0
        %v2556 = vpop.trf.xlu0
        %v2557 = vpop.trf.xlu0
        %v2558 = vpop.trf.xlu0
        %v2559 = vpop.trf.xlu0
        %v2560 = vpop.trf.xlu0
        %v2561 = vrot.slane %v2505, 4
        %v2562 = vsel %vm1635, %v2561, %v2441
        %v2564 = vunpack.c.l.s4 1983009808
        %v2565 = vunpack.c.0.s8 %v2564
        %v2566 = vperm.slane %v2562, %v2565
        %v2567 = vrot.slane %v2537, 4
        %v2568 = vsel %vm1635, %v2567, %v2473
        %v2570 = vunpack.c.l.s4 1983009808
        %v2571 = vunpack.c.0.s8 %v2570
        %v2572 = vperm.slane %v2568, %v2571
        %v2573 = vrot.slane %v2572, 4
        %v2574 = vsel %vm1635, %v2573, %v2566
        %v2576 = vunpack.c.l.s4 1934713408
        %v2577 = vunpack.c.0.s8 %v2576
        %v2578 = vperm.slane %v2574, %v2577
        %v2579 = vrot.slane %v2578, 4
        %v2580 = vsel %vm1635, 0, %v2579
        %v2581 = vrot.slane %v2521, 4
        %v2582 = vsel %vm1635, %v2581, %v2457
        %v2584 = vunpack.c.l.s4 1983009808
        %v2585 = vunpack.c.0.s8 %v2584
        %v2586 = vperm.slane %v2582, %v2585
        %v2587 = vrot.slane %v2553, 4
        %v2588 = vsel %vm1635, %v2587, %v2489
        %v2590 = vunpack.c.l.s4 1983009808
        %v2591 = vunpack.c.0.s8 %v2590
        %v2592 = vperm.slane %v2588, %v2591
        %v2593 = vrot.slane %v2592, 4
        %v2594 = vsel %vm1635, %v2593, %v2586
        %v2596 = vunpack.c.l.s4 1934713408
        %v2597 = vunpack.c.0.s8 %v2596
        %v2598 = vperm.slane %v2594, %v2597
        %v2599 = vrot.slane %v2598, 4
        %v2600 = vsel %vm1635, 0, %v2599
        %v2603 = vpack.i.b16 %v2598, %v2578
        %v2604 = vshrl.u32 %v2578, 16
        %v2605 = vshrl.u32 %v2598, 16
        %v2606 = vpack.i.b16 %v2605, %v2604
        %v2609 = vpack.i.b16 %v2600, %v2580
        %v2610 = vshrl.u32 %v2580, 16
        %v2611 = vshrl.u32 %v2600, 16
        %v2612 = vpack.i.b16 %v2611, %v2610
        %v2614 = vsel %vm2083, %v2603, 0
        %v2617 = vsel %vm2083, %v2213, 0
        %2619 = vmatpush.bf16.xpose.msra.mxu0 0
        %2620 = vmatpush.bf16.xpose.msra.mxu0 0
        %2621 = vmatpush.bf16.xpose.msra.mxu0 0
        %2622 = vmatpush.bf16.xpose.msra.mxu0 0
        %2623 = vmatpush.bf16.xpose.msra.mxu0 0
        %2624 = vmatpush.bf16.xpose.msra.mxu0 0
        %2625 = vmatpush.bf16.xpose.msra.mxu0 0
        %2626 = vmatpush.bf16.xpose.msra.mxu0 %v2617
        %2627 = vmatmul.bf16.gmra.mxu0 %v2614
        %v2628 = vpop.f32.mrf.mxu0
        %v2629 = vadd.f32 0.0, %v2628
        %v2630 = vpop.f32.mrf.mxu0
        %2631 = vdwg.mxu0
        %v2633 = vsel %vm2083, %v2606, 0
        %v2636 = vsel %vm2083, %v2214, 0
        %2638 = vmatpush.bf16.xpose.msra.mxu0 0
        %2639 = vmatpush.bf16.xpose.msra.mxu0 0
        %2640 = vmatpush.bf16.xpose.msra.mxu0 0
        %2641 = vmatpush.bf16.xpose.msra.mxu0 0
        %2642 = vmatpush.bf16.xpose.msra.mxu0 0
        %2643 = vmatpush.bf16.xpose.msra.mxu0 0
        %2644 = vmatpush.bf16.xpose.msra.mxu0 0
        %2645 = vmatpush.bf16.xpose.msra.mxu0 %v2636
        %2646 = vmatmul.bf16.gmra.mxu0 %v2633
        %v2647 = vpop.f32.mrf.mxu0
        %v2648 = vadd.f32 0.0, %v2647
        %v2649 = vpop.f32.mrf.mxu0
        %2650 = vdwg.mxu0
        %v2652 = vsel %vm2083, %v2609, 0
        %v2655 = vsel %vm2083, %v2215, 0
        %2657 = vmatpush.bf16.xpose.msra.mxu0 0
        %2658 = vmatpush.bf16.xpose.msra.mxu0 0
        %2659 = vmatpush.bf16.xpose.msra.mxu0 0
        %2660 = vmatpush.bf16.xpose.msra.mxu0 0
        %2661 = vmatpush.bf16.xpose.msra.mxu0 0
        %2662 = vmatpush.bf16.xpose.msra.mxu0 0
        %2663 = vmatpush.bf16.xpose.msra.mxu0 0
        %2664 = vmatpush.bf16.xpose.msra.mxu0 %v2655
        %2665 = vmatmul.bf16.gmra.mxu0 %v2652
        %v2666 = vpop.f32.mrf.mxu0
        %v2667 = vadd.f32 0.0, %v2666
        %v2668 = vpop.f32.mrf.mxu0
        %2669 = vdwg.mxu0
        %v2671 = vsel %vm2083, %v2612, 0
        %v2674 = vsel %vm2083, %v2216, 0
        %2676 = vmatpush.bf16.xpose.msra.mxu0 0
        %2677 = vmatpush.bf16.xpose.msra.mxu0 0
        %2678 = vmatpush.bf16.xpose.msra.mxu0 0
        %2679 = vmatpush.bf16.xpose.msra.mxu0 0
        %2680 = vmatpush.bf16.xpose.msra.mxu0 0
        %2681 = vmatpush.bf16.xpose.msra.mxu0 0
        %2682 = vmatpush.bf16.xpose.msra.mxu0 0
        %2683 = vmatpush.bf16.xpose.msra.mxu0 %v2674
        %2684 = vmatmul.bf16.gmra.mxu0 %v2671
        %v2685 = vpop.f32.mrf.mxu0
        %v2686 = vadd.f32 0.0, %v2685
        %v2687 = vpop.f32.mrf.mxu0
        %2688 = vdwg.mxu0
        %2689 = vxpose.xlu0.b32.start [1/16] %v2629, 128
        %2690 = vxpose.xlu0.b32.cont [2/16] 0.0, 128
        %2691 = vxpose.xlu0.b32.cont [3/16] 0.0, 128
        %2692 = vxpose.xlu0.b32.cont [4/16] 0.0, 128
        %2693 = vxpose.xlu0.b32.cont [5/16] 0.0, 128
        %2694 = vxpose.xlu0.b32.cont [6/16] 0.0, 128
        %2695 = vxpose.xlu0.b32.cont [7/16] 0.0, 128
        %2696 = vxpose.xlu0.b32.cont [8/16] 0.0, 128
        %2697 = vxpose.xlu0.b32.cont [9/16] 0.0, 128
        %2698 = vxpose.xlu0.b32.cont [10/16] 0.0, 128
        %2699 = vxpose.xlu0.b32.cont [11/16] 0.0, 128
        %2700 = vxpose.xlu0.b32.cont [12/16] 0.0, 128
        %2701 = vxpose.xlu0.b32.cont [13/16] 0.0, 128
        %2702 = vxpose.xlu0.b32.cont [14/16] 0.0, 128
        %2703 = vxpose.xlu0.b32.cont [15/16] 0.0, 128
        %2704 = vxpose.xlu0.b32.end [16/16] 0.0, 128
        %v2705 = vpop.trf.xlu0
        %v2706 = vpop.trf.xlu0
        %v2707 = vpop.trf.xlu0
        %v2708 = vpop.trf.xlu0
        %v2709 = vpop.trf.xlu0
        %v2710 = vpop.trf.xlu0
        %v2711 = vpop.trf.xlu0
        %v2712 = vpop.trf.xlu0
        %v2713 = vpop.trf.xlu0
        %v2714 = vpop.trf.xlu0
        %v2715 = vpop.trf.xlu0
        %v2716 = vpop.trf.xlu0
        %v2717 = vpop.trf.xlu0
        %v2718 = vpop.trf.xlu0
        %v2719 = vpop.trf.xlu0
        %v2720 = vpop.trf.xlu0
        %2721 = vxpose.xlu0.b32.start [1/16] %v2648, 128
        %2722 = vxpose.xlu0.b32.cont [2/16] 0.0, 128
        %2723 = vxpose.xlu0.b32.cont [3/16] 0.0, 128
        %2724 = vxpose.xlu0.b32.cont [4/16] 0.0, 128
        %2725 = vxpose.xlu0.b32.cont [5/16] 0.0, 128
        %2726 = vxpose.xlu0.b32.cont [6/16] 0.0, 128
        %2727 = vxpose.xlu0.b32.cont [7/16] 0.0, 128
        %2728 = vxpose.xlu0.b32.cont [8/16] 0.0, 128
        %2729 = vxpose.xlu0.b32.cont [9/16] 0.0, 128
        %2730 = vxpose.xlu0.b32.cont [10/16] 0.0, 128
        %2731 = vxpose.xlu0.b32.cont [11/16] 0.0, 128
        %2732 = vxpose.xlu0.b32.cont [12/16] 0.0, 128
        %2733 = vxpose.xlu0.b32.cont [13/16] 0.0, 128
        %2734 = vxpose.xlu0.b32.cont [14/16] 0.0, 128
        %2735 = vxpose.xlu0.b32.cont [15/16] 0.0, 128
        %2736 = vxpose.xlu0.b32.end [16/16] 0.0, 128
        %v2737 = vpop.trf.xlu0
        %v2738 = vpop.trf.xlu0
        %v2739 = vpop.trf.xlu0
        %v2740 = vpop.trf.xlu0
        %v2741 = vpop.trf.xlu0
        %v2742 = vpop.trf.xlu0
        %v2743 = vpop.trf.xlu0
        %v2744 = vpop.trf.xlu0
        %v2745 = vpop.trf.xlu0
        %v2746 = vpop.trf.xlu0
        %v2747 = vpop.trf.xlu0
        %v2748 = vpop.trf.xlu0
        %v2749 = vpop.trf.xlu0
        %v2750 = vpop.trf.xlu0
        %v2751 = vpop.trf.xlu0
        %v2752 = vpop.trf.xlu0
        %2753 = vxpose.xlu0.b32.start [1/16] %v2667, 128
        %2754 = vxpose.xlu0.b32.cont [2/16] 0.0, 128
        %2755 = vxpose.xlu0.b32.cont [3/16] 0.0, 128
        %2756 = vxpose.xlu0.b32.cont [4/16] 0.0, 128
        %2757 = vxpose.xlu0.b32.cont [5/16] 0.0, 128
        %2758 = vxpose.xlu0.b32.cont [6/16] 0.0, 128
        %2759 = vxpose.xlu0.b32.cont [7/16] 0.0, 128
        %2760 = vxpose.xlu0.b32.cont [8/16] 0.0, 128
        %2761 = vxpose.xlu0.b32.cont [9/16] 0.0, 128
        %2762 = vxpose.xlu0.b32.cont [10/16] 0.0, 128
        %2763 = vxpose.xlu0.b32.cont [11/16] 0.0, 128
        %2764 = vxpose.xlu0.b32.cont [12/16] 0.0, 128
        %2765 = vxpose.xlu0.b32.cont [13/16] 0.0, 128
        %2766 = vxpose.xlu0.b32.cont [14/16] 0.0, 128
        %2767 = vxpose.xlu0.b32.cont [15/16] 0.0, 128
        %2768 = vxpose.xlu0.b32.end [16/16] 0.0, 128
        %v2769 = vpop.trf.xlu0
        %v2770 = vpop.trf.xlu0
        %v2771 = vpop.trf.xlu0
        %v2772 = vpop.trf.xlu0
        %v2773 = vpop.trf.xlu0
        %v2774 = vpop.trf.xlu0
        %v2775 = vpop.trf.xlu0
        %v2776 = vpop.trf.xlu0
        %v2777 = vpop.trf.xlu0
        %v2778 = vpop.trf.xlu0
        %v2779 = vpop.trf.xlu0
        %v2780 = vpop.trf.xlu0
        %v2781 = vpop.trf.xlu0
        %v2782 = vpop.trf.xlu0
        %v2783 = vpop.trf.xlu0
        %v2784 = vpop.trf.xlu0
        %2785 = vxpose.xlu0.b32.start [1/16] %v2686, 128
        %2786 = vxpose.xlu0.b32.cont [2/16] 0.0, 128
        %2787 = vxpose.xlu0.b32.cont [3/16] 0.0, 128
        %2788 = vxpose.xlu0.b32.cont [4/16] 0.0, 128
        %2789 = vxpose.xlu0.b32.cont [5/16] 0.0, 128
        %2790 = vxpose.xlu0.b32.cont [6/16] 0.0, 128
        %2791 = vxpose.xlu0.b32.cont [7/16] 0.0, 128
        %2792 = vxpose.xlu0.b32.cont [8/16] 0.0, 128
        %2793 = vxpose.xlu0.b32.cont [9/16] 0.0, 128
        %2794 = vxpose.xlu0.b32.cont [10/16] 0.0, 128
        %2795 = vxpose.xlu0.b32.cont [11/16] 0.0, 128
        %2796 = vxpose.xlu0.b32.cont [12/16] 0.0, 128
        %2797 = vxpose.xlu0.b32.cont [13/16] 0.0, 128
        %2798 = vxpose.xlu0.b32.cont [14/16] 0.0, 128
        %2799 = vxpose.xlu0.b32.cont [15/16] 0.0, 128
        %2800 = vxpose.xlu0.b32.end [16/16] 0.0, 128
        %v2801 = vpop.trf.xlu0
        %v2802 = vpop.trf.xlu0
        %v2803 = vpop.trf.xlu0
        %v2804 = vpop.trf.xlu0
        %v2805 = vpop.trf.xlu0
        %v2806 = vpop.trf.xlu0
        %v2807 = vpop.trf.xlu0
        %v2808 = vpop.trf.xlu0
        %v2809 = vpop.trf.xlu0
        %v2810 = vpop.trf.xlu0
        %v2811 = vpop.trf.xlu0
        %v2812 = vpop.trf.xlu0
        %v2813 = vpop.trf.xlu0
        %v2814 = vpop.trf.xlu0
        %v2815 = vpop.trf.xlu0
        %v2816 = vpop.trf.xlu0
        %v2817 = vrot.slane %v2769, 4
        %v2818 = vsel %vm1418, %v2817, %v2705
        %v2819 = vrot.slane %v2705, 4
        %v2820 = vsel %vm1418, %v2769, %v2819
        %v2822 = vunpack.c.l.s4 1983009808
        %v2823 = vunpack.c.0.s8 %v2822
        %v2824 = vperm.slane %v2818, %v2823
        %v2826 = vunpack.c.l.s4 1983009808
        %v2827 = vunpack.c.0.s8 %v2826
        %v2828 = vperm.slane %v2820, %v2827
        %v2829 = vrot.slane %v2801, 4
        %v2830 = vsel %vm1418, %v2829, %v2737
        %v2831 = vrot.slane %v2737, 4
        %v2832 = vsel %vm1418, %v2801, %v2831
        %v2834 = vunpack.c.l.s4 1983009808
        %v2835 = vunpack.c.0.s8 %v2834
        %v2836 = vperm.slane %v2830, %v2835
        %v2838 = vunpack.c.l.s4 1983009808
        %v2839 = vunpack.c.0.s8 %v2838
        %v2840 = vperm.slane %v2832, %v2839
        %v2841 = vrot.slane %v2836, 4
        %v2842 = vsel %vm1418, %v2841, %v2824
        %v2843 = vrot.slane %v2824, 4
        %v2844 = vsel %vm1418, %v2836, %v2843
        %v2846 = vunpack.c.l.s4 1934713408
        %v2847 = vunpack.c.0.s8 %v2846
        %v2848 = vperm.slane %v2842, %v2847
        %v2850 = vunpack.c.l.s4 1934713408
        %v2851 = vunpack.c.0.s8 %v2850
        %v2852 = vperm.slane %v2844, %v2851
        %v2853 = vrot.slane %v2840, 4
        %v2854 = vsel %vm1418, %v2853, %v2828
        %v2855 = vrot.slane %v2828, 4
        %v2856 = vsel %vm1418, %v2840, %v2855
        %v2858 = vunpack.c.l.s4 1934713408
        %v2859 = vunpack.c.0.s8 %v2858
        %v2860 = vperm.slane %v2854, %v2859
        %v2862 = vunpack.c.l.s4 1934713408
        %v2863 = vunpack.c.0.s8 %v2862
        %v2864 = vperm.slane %v2856, %v2863
        %v2865 = vrot.slane %v2848, 4
        %v2866 = vsel %vm1418, 0.0, %v2865
        %v2867 = vrot.slane %v2852, 4
        %v2868 = vsel %vm1418, 0.0, %v2867
        %v2869 = vrot.slane %v2860, 4
        %v2870 = vsel %vm1418, 0.0, %v2869
        %v2871 = vrot.slane %v2864, 4
        %v2872 = vsel %vm1418, 0.0, %v2871
        %v2873 = vsel %vm1418, %v2867, %v2848
        %v2875 = vunpack.c.l.s4 1983009808
        %v2876 = vunpack.c.0.s8 %v2875
        %v2877 = vperm.slane %v2873, %v2876
        %v2878 = vrot.slane %v2868, 4
        %v2879 = vsel %vm1418, %v2878, %v2866
        %v2881 = vunpack.c.l.s4 1983009808
        %v2882 = vunpack.c.0.s8 %v2881
        %v2883 = vperm.slane %v2879, %v2882
        %v2884 = vsel %vm1418, %v2871, %v2860
        %v2886 = vunpack.c.l.s4 1983009808
        %v2887 = vunpack.c.0.s8 %v2886
        %v2888 = vperm.slane %v2884, %v2887
        %v2889 = vrot.slane %v2872, 4
        %v2890 = vsel %vm1418, %v2889, %v2870
        %v2892 = vunpack.c.l.s4 1983009808
        %v2893 = vunpack.c.0.s8 %v2892
        %v2894 = vperm.slane %v2890, %v2893
        %v2895 = vrot.slane %v2883, 4
        %v2896 = vsel %vm1418, %v2895, %v2877
        %v2897 = vrot.slane %v2877, 4
        %v2898 = vsel %vm1418, %v2883, %v2897
        %v2900 = vunpack.c.l.s4 1934713408
        %v2901 = vunpack.c.0.s8 %v2900
        %v2902 = vperm.slane %v2896, %v2901
        %v2904 = vunpack.c.l.s4 1934713408
        %v2905 = vunpack.c.0.s8 %v2904
        %v2906 = vperm.slane %v2898, %v2905
        %v2907 = vrot.slane %v2894, 4
        %v2908 = vsel %vm1418, %v2907, %v2888
        %v2909 = vrot.slane %v2888, 4
        %v2910 = vsel %vm1418, %v2894, %v2909
        %v2912 = vunpack.c.l.s4 1934713408
        %v2913 = vunpack.c.0.s8 %v2912
        %v2914 = vperm.slane %v2908, %v2913
        %v2916 = vunpack.c.l.s4 1934713408
        %v2917 = vunpack.c.0.s8 %v2916
        %v2918 = vperm.slane %v2910, %v2917
        %v2919 = vrot.slane %v2914, 4
        %v2920 = vsel %vm1418, %v2919, %v2902
        %v2921 = vrot.slane %v2902, 4
        %v2922 = vsel %vm1418, %v2914, %v2921
        %v2923 = vrot.slane %v2918, 4
        %v2924 = vsel %vm1418, %v2923, %v2906
        %v2925 = vrot.slane %v2906, 4
        %v2926 = vsel %vm1418, %v2918, %v2925
        %2928 = vrot.lane.b32.xlu0 %v2922, 8
        %v2929 = vpop.permute.xlu0 %2928
        %2932 = vrot.lane.b32.xlu0 %v2924, 16
        %v2933 = vpop.permute.xlu0 %2932
        %2936 = vrot.lane.b32.xlu0 %v2926, 24
        %v2937 = vpop.permute.xlu0 %2936
        %v2939 = vsel %vm2083, %v2920, %v2929
        %vm2940 = vcmask 130048
        %v2941 = vsel %vm2940, %v2939, %v2933
        %vm2942 = vcmask 195584
        %v2943 = vsel %vm2942, %v2941, %v2937
        %v2944 = vpack.c.bf16 %v2943, %v2943
        %v2945 = vld [vmem:[%s1319] sm:$0xf]
        %v2946 = vld [vmem:[%s1319 + $0x4] sm:$0xf]
        %v2947 = vld [vmem:[%s1319 + $0x8] sm:$0xf]
        %v2948 = vld [vmem:[%s1319 + $0xc] sm:$0xf]
        %v2949 = vld [vmem:[%s1322] sm:$0x1]
        %v2951 = vperm.slane %v2949, 0
        %v2957 = vunpack.c.l.b16 %v2945
        %v2958 = vunpack.c.l.b16 %v2946
        %v2959 = vunpack.c.l.b16 %v2947
        %v2960 = vunpack.c.l.b16 %v2948
        %v2961 = vpack.c.b16 %v2958, %v2957
        %v2962 = vpack.c.b16 %v2960, %v2959
        %v2966 = vsel %vm1390, %v2944, 0
        %2968 = vmatpush.bf16.msra.mxu0 0
        %2969 = vmatpush.bf16.msra.mxu0 0
        %2970 = vmatpush.bf16.msra.mxu0 0
        %2971 = vmatpush.bf16.msra.mxu0 0
        %2972 = vmatpush.bf16.msra.mxu0 0
        %2973 = vmatpush.bf16.msra.mxu0 0
        %2974 = vmatpush.bf16.msra.mxu0 %v2962
        %2975 = vmatpush.bf16.msra.mxu0 %v2961
        %2976 = vmatmul.bf16.gmra.mxu0 %v2966
        %v2977 = vpop.f32.mrf.mxu0
        %v2978 = vadd.f32 %v2951, %v2977
        %v2979 = vpop.f32.mrf.mxu0
        %2980 = vdwg.mxu0
        %v2981 = vadd.f32 %v1365, %v2978
        %v2982 = vsel %vm1390, %v2981, 0.0
        %2983 = vadd.xlane.f32.xlu0 %v2982
        %v2984 = vpop.xlane.xlu0 %2983
        %v2985 = vrcp.pop 32.0
        %v2986 = vmul.f32 32.0, %v2985
        %v2987 = vsub.f32 1.0, %v2986
        %v2988 = vmul.f32 %v2985, %v2987
        %v2989 = vadd.f32 %v2985, %v2988
        %vm2990 = vweird.f32 %v2985
        %v2991 = vsel %vm2990, %v2985, %v2989
        %v2992 = vmul.f32 %v2984, %v2991
        %v2993 = vsub.f32 %v2981, %v2992
        %v2994 = vmul.f32 %v2993, %v2993
        %v2995 = vsel %vm1390, %v2994, 0.0
        %2996 = vadd.xlane.f32.xlu0 %v2995
        %v2997 = vpop.xlane.xlu0 %2996
        %v2998 = vmul.f32 %v2997, %v2991
        %v2999 = vadd.f32 %v2998, 1e-05
        %v3000 = vrsqrt.pop %v2999
        %v3001 = vmul.f32 %v3000, %v2999
        %v3002 = vmul.f32 %v3001, %v3000
        %v3003 = vmul.f32 0.5, %v3002
        %v3004 = vsub.f32 1.5, %v3003
        %v3005 = vmul.f32 %v3000, %v3004
        %vm3006 = vweird.f32 %v2999
        %vm3007 = vweird.f32 %v3000
        %vm3008 = vmor %vm3006, %vm3007
        %v3009 = vsel %vm3008, %v3000, %v3005
        %v3010 = vmul.f32 %v2993, %v3009
        %v3011 = vld [vmem:[%s1350] sm:$0x1]
        %v3013 = vperm.slane %v3011, 0
        %v3015 = vmul.f32 %v3010, %v3013
        %v3016 = vld [vmem:[%s1125] sm:$0x1]
        %v3018 = vperm.slane %v3016, 0
        %v3020 = vadd.f32 %v3015, %v3018
        %v3021 = vpack.c.bf16 %v3020, %v3020
        %v3022 = vld [vmem:[%s1327] sm:$0xf]
        %v3023 = vld [vmem:[%s1327 + $0x4] sm:$0xf]
        %v3024 = vld [vmem:[%s1327 + $0x8] sm:$0xf]
        %v3025 = vld [vmem:[%s1327 + $0xc] sm:$0xf]
        %v3026 = vld [vmem:[%s1330] sm:$0x1]
        %v3028 = vperm.slane %v3026, 0
        %v3034 = vunpack.c.l.b16 %v3022
        %v3035 = vunpack.c.l.b16 %v3023
        %v3036 = vunpack.c.l.b16 %v3024
        %v3037 = vunpack.c.l.b16 %v3025
        %v3038 = vpack.c.b16 %v3035, %v3034
        %v3039 = vpack.c.b16 %v3037, %v3036
        %v3043 = vsel %vm1390, %v3021, 0
        %3045 = vmatpush.bf16.msra.mxu0 0
        %3046 = vmatpush.bf16.msra.mxu0 0
        %3047 = vmatpush.bf16.msra.mxu0 0
        %3048 = vmatpush.bf16.msra.mxu0 0
        %3049 = vmatpush.bf16.msra.mxu0 0
        %3050 = vmatpush.bf16.msra.mxu0 0
        %3051 = vmatpush.bf16.msra.mxu0 %v3039
        %3052 = vmatpush.bf16.msra.mxu0 %v3038
        %3053 = vmatmul.bf16.gmra.mxu0 %v3043
        %v3054 = vpop.f32.mrf.mxu0
        %v3055 = vadd.f32 %v3028, %v3054
        %v3056 = vpop.f32.mrf.mxu0
        %3057 = vdwg.mxu0
        %v3058 = vpack.c.bf16 %v1366, %v1366
        %v3059 = vld [vmem:[%s1096] sm:$0xf]
        %v3060 = vld [vmem:[%s1096 + $0x4] sm:$0xf]
        %v3061 = vld [vmem:[%s1096 + $0x8] sm:$0xf]
        %v3062 = vld [vmem:[%s1096 + $0xc] sm:$0xf]
        %v3063 = vld [vmem:[%s1333] sm:$0x1]
        %v3065 = vperm.slane %v3063, 0
        %v3071 = vunpack.c.l.b16 %v3059
        %v3072 = vunpack.c.l.b16 %v3060
        %v3073 = vunpack.c.l.b16 %v3061
        %v3074 = vunpack.c.l.b16 %v3062
        %v3075 = vpack.c.b16 %v3072, %v3071
        %v3076 = vpack.c.b16 %v3074, %v3073
        %v3080 = vsel %vm1390, %v3058, 0
        %3082 = vmatpush.bf16.msra.mxu0 0
        %3083 = vmatpush.bf16.msra.mxu0 0
        %3084 = vmatpush.bf16.msra.mxu0 0
        %3085 = vmatpush.bf16.msra.mxu0 0
        %3086 = vmatpush.bf16.msra.mxu0 0
        %3087 = vmatpush.bf16.msra.mxu0 0
        %3088 = vmatpush.bf16.msra.mxu0 %v3076
        %3089 = vmatpush.bf16.msra.mxu0 %v3075
        %3090 = vmatmul.bf16.gmra.mxu0 %v3080
        %v3091 = vpop.f32.mrf.mxu0
        %v3092 = vadd.f32 %v3065, %v3091
        %v3093 = vpop.f32.mrf.mxu0
        %3094 = vdwg.mxu0
        %3096 = vrot.lane.b32.xlu0 %v3055, 120
        %v3097 = vpop.permute.xlu0 %3096
        %3099 = vrot.lane.b32.xlu0 %v3055, 112
        %v3100 = vpop.permute.xlu0 %3099
        %3102 = vrot.lane.b32.xlu0 %v3055, 104
        %v3103 = vpop.permute.xlu0 %3102
        %v3105 = vrot.slane %v3100, 4
        %v3106 = vsel %vm1418, %v3105, %v3055
        %v3107 = vrot.slane %v3055, 4
        %v3108 = vsel %vm1418, %v3100, %v3107
        %v3110 = vunpack.c.l.s4 1983009808
        %v3111 = vunpack.c.0.s8 %v3110
        %v3112 = vperm.slane %v3106, %v3111
        %v3114 = vunpack.c.l.s4 1983009808
        %v3115 = vunpack.c.0.s8 %v3114
        %v3116 = vperm.slane %v3108, %v3115
        %v3117 = vrot.slane %v3103, 4
        %v3118 = vsel %vm1418, %v3117, %v3097
        %v3119 = vrot.slane %v3097, 4
        %v3120 = vsel %vm1418, %v3103, %v3119
        %v3122 = vunpack.c.l.s4 1983009808
        %v3123 = vunpack.c.0.s8 %v3122
        %v3124 = vperm.slane %v3118, %v3123
        %v3126 = vunpack.c.l.s4 1983009808
        %v3127 = vunpack.c.0.s8 %v3126
        %v3128 = vperm.slane %v3120, %v3127
        %v3129 = vrot.slane %v3124, 4
        %v3130 = vsel %vm1418, %v3129, %v3112
        %v3131 = vrot.slane %v3112, 4
        %v3132 = vsel %vm1418, %v3124, %v3131
        %v3134 = vunpack.c.l.s4 1934713408
        %v3135 = vunpack.c.0.s8 %v3134
        %v3136 = vperm.slane %v3130, %v3135
        %v3138 = vunpack.c.l.s4 1934713408
        %v3139 = vunpack.c.0.s8 %v3138
        %v3140 = vperm.slane %v3132, %v3139
        %v3141 = vrot.slane %v3128, 4
        %v3142 = vsel %vm1418, %v3141, %v3116
        %v3143 = vrot.slane %v3116, 4
        %v3144 = vsel %vm1418, %v3128, %v3143
        %v3146 = vunpack.c.l.s4 1934713408
        %v3147 = vunpack.c.0.s8 %v3146
        %v3148 = vperm.slane %v3142, %v3147
        %v3150 = vunpack.c.l.s4 1934713408
        %v3151 = vunpack.c.0.s8 %v3150
        %v3152 = vperm.slane %v3144, %v3151
        %v3153 = vrot.slane %v3136, 4
        %v3154 = vsel %vm1418, 0.0, %v3153
        %v3155 = vrot.slane %v3140, 4
        %v3156 = vsel %vm1418, 0.0, %v3155
        %v3157 = vrot.slane %v3148, 4
        %v3158 = vsel %vm1418, 0.0, %v3157
        %v3159 = vrot.slane %v3152, 4
        %v3160 = vsel %vm1418, 0.0, %v3159
        %v3161 = vpack.c.bf16 %v3136, %v3136
        %v3162 = vpack.c.bf16 %v3154, %v3154
        %v3163 = vpack.c.bf16 %v3140, %v3140
        %v3164 = vpack.c.bf16 %v3156, %v3156
        %v3165 = vpack.c.bf16 %v3148, %v3148
        %v3166 = vpack.c.bf16 %v3158, %v3158
        %v3167 = vpack.c.bf16 %v3152, %v3152
        %v3168 = vpack.c.bf16 %v3160, %v3160
        %3170 = vrot.lane.b32.xlu0 %v3092, 120
        %v3171 = vpop.permute.xlu0 %3170
        %3173 = vrot.lane.b32.xlu0 %v3092, 112
        %v3174 = vpop.permute.xlu0 %3173
        %3176 = vrot.lane.b32.xlu0 %v3092, 104
        %v3177 = vpop.permute.xlu0 %3176
        %v3179 = vrot.slane %v3174, 4
        %v3180 = vsel %vm1418, %v3179, %v3092
        %v3181 = vrot.slane %v3092, 4
        %v3182 = vsel %vm1418, %v3174, %v3181
        %v3184 = vunpack.c.l.s4 1983009808
        %v3185 = vunpack.c.0.s8 %v3184
        %v3186 = vperm.slane %v3180, %v3185
        %v3188 = vunpack.c.l.s4 1983009808
        %v3189 = vunpack.c.0.s8 %v3188
        %v3190 = vperm.slane %v3182, %v3189
        %v3191 = vrot.slane %v3177, 4
        %v3192 = vsel %vm1418, %v3191, %v3171
        %v3193 = vrot.slane %v3171, 4
        %v3194 = vsel %vm1418, %v3177, %v3193
        %v3196 = vunpack.c.l.s4 1983009808
        %v3197 = vunpack.c.0.s8 %v3196
        %v3198 = vperm.slane %v3192, %v3197
        %v3200 = vunpack.c.l.s4 1983009808
        %v3201 = vunpack.c.0.s8 %v3200
        %v3202 = vperm.slane %v3194, %v3201
        %v3203 = vrot.slane %v3198, 4
        %v3204 = vsel %vm1418, %v3203, %v3186
        %v3205 = vrot.slane %v3186, 4
        %v3206 = vsel %vm1418, %v3198, %v3205
        %v3208 = vunpack.c.l.s4 1934713408
        %v3209 = vunpack.c.0.s8 %v3208
        %v3210 = vperm.slane %v3204, %v3209
        %v3212 = vunpack.c.l.s4 1934713408
        %v3213 = vunpack.c.0.s8 %v3212
        %v3214 = vperm.slane %v3206, %v3213
        %v3215 = vrot.slane %v3202, 4
        %v3216 = vsel %vm1418, %v3215, %v3190
        %v3217 = vrot.slane %v3190, 4
        %v3218 = vsel %vm1418, %v3202, %v3217
        %v3220 = vunpack.c.l.s4 1934713408
        %v3221 = vunpack.c.0.s8 %v3220
        %v3222 = vperm.slane %v3216, %v3221
        %v3224 = vunpack.c.l.s4 1934713408
        %v3225 = vunpack.c.0.s8 %v3224
        %v3226 = vperm.slane %v3218, %v3225
        %v3227 = vrot.slane %v3210, 4
        %v3228 = vsel %vm1418, 0.0, %v3227
        %v3229 = vrot.slane %v3214, 4
        %v3230 = vsel %vm1418, 0.0, %v3229
        %v3231 = vrot.slane %v3222, 4
        %v3232 = vsel %vm1418, 0.0, %v3231
        %v3233 = vrot.slane %v3226, 4
        %v3234 = vsel %vm1418, 0.0, %v3233
        %v3235 = vpack.c.bf16 %v3210, %v3210
        %v3236 = vpack.c.bf16 %v3228, %v3228
        %v3237 = vpack.c.bf16 %v3214, %v3214
        %v3238 = vpack.c.bf16 %v3230, %v3230
        %v3239 = vpack.c.bf16 %v3222, %v3222
        %v3240 = vpack.c.bf16 %v3232, %v3232
        %v3241 = vpack.c.bf16 %v3226, %v3226
        %v3242 = vpack.c.bf16 %v3234, %v3234
        %3243 = vrot.lane.b32.xlu0 %v3092, 96
        %v3244 = vpop.permute.xlu0 %3243
        %3245 = vrot.lane.b32.xlu0 %v3171, 96
        %v3246 = vpop.permute.xlu0 %3245
        %3247 = vrot.lane.b32.xlu0 %v3174, 96
        %v3248 = vpop.permute.xlu0 %3247
        %3249 = vrot.lane.b32.xlu0 %v3177, 96
        %v3250 = vpop.permute.xlu0 %3249
        %v3255 = vrot.slane %v3248, 4
        %v3256 = vsel %vm1418, %v3255, %v3244
        %v3257 = vrot.slane %v3244, 4
        %v3258 = vsel %vm1418, %v3248, %v3257
        %v3260 = vunpack.c.l.s4 1983009808
        %v3261 = vunpack.c.0.s8 %v3260
        %v3262 = vperm.slane %v3256, %v3261
        %v3264 = vunpack.c.l.s4 1983009808
        %v3265 = vunpack.c.0.s8 %v3264
        %v3266 = vperm.slane %v3258, %v3265
        %v3267 = vrot.slane %v3250, 4
        %v3268 = vsel %vm1418, %v3267, %v3246
        %v3269 = vrot.slane %v3246, 4
        %v3270 = vsel %vm1418, %v3250, %v3269
        %v3272 = vunpack.c.l.s4 1983009808
        %v3273 = vunpack.c.0.s8 %v3272
        %v3274 = vperm.slane %v3268, %v3273
        %v3276 = vunpack.c.l.s4 1983009808
        %v3277 = vunpack.c.0.s8 %v3276
        %v3278 = vperm.slane %v3270, %v3277
        %v3279 = vrot.slane %v3274, 4
        %v3280 = vsel %vm1418, %v3279, %v3262
        %v3281 = vrot.slane %v3262, 4
        %v3282 = vsel %vm1418, %v3274, %v3281
        %v3284 = vunpack.c.l.s4 1934713408
        %v3285 = vunpack.c.0.s8 %v3284
        %v3286 = vperm.slane %v3280, %v3285
        %v3288 = vunpack.c.l.s4 1934713408
        %v3289 = vunpack.c.0.s8 %v3288
        %v3290 = vperm.slane %v3282, %v3289
        %v3291 = vrot.slane %v3278, 4
        %v3292 = vsel %vm1418, %v3291, %v3266
        %v3293 = vrot.slane %v3266, 4
        %v3294 = vsel %vm1418, %v3278, %v3293
        %v3296 = vunpack.c.l.s4 1934713408
        %v3297 = vunpack.c.0.s8 %v3296
        %v3298 = vperm.slane %v3292, %v3297
        %v3300 = vunpack.c.l.s4 1934713408
        %v3301 = vunpack.c.0.s8 %v3300
        %v3302 = vperm.slane %v3294, %v3301
        %v3303 = vrot.slane %v3286, 4
        %v3304 = vsel %vm1418, 0.0, %v3303
        %v3305 = vrot.slane %v3290, 4
        %v3306 = vsel %vm1418, 0.0, %v3305
        %v3307 = vrot.slane %v3298, 4
        %v3308 = vsel %vm1418, 0.0, %v3307
        %v3309 = vrot.slane %v3302, 4
        %v3310 = vsel %vm1418, 0.0, %v3309
        %v3311 = vpack.c.bf16 %v3286, %v3286
        %v3312 = vpack.c.bf16 %v3304, %v3304
        %v3313 = vpack.c.bf16 %v3290, %v3290
        %v3314 = vpack.c.bf16 %v3306, %v3306
        %v3315 = vpack.c.bf16 %v3298, %v3298
        %v3316 = vpack.c.bf16 %v3308, %v3308
        %v3317 = vpack.c.bf16 %v3302, %v3302
        %v3318 = vpack.c.bf16 %v3310, %v3310
        %v3319 = vrot.slane %v3165, 4
        %v3320 = vsel %vm1635, %v3319, %v3161
        %v3322 = vunpack.c.l.s4 1983009808
        %v3323 = vunpack.c.0.s8 %v3322
        %v3324 = vperm.slane %v3320, %v3323
        %v3325 = vrot.slane %v3167, 4
        %v3326 = vsel %vm1635, %v3325, %v3163
        %v3328 = vunpack.c.l.s4 1983009808
        %v3329 = vunpack.c.0.s8 %v3328
        %v3330 = vperm.slane %v3326, %v3329
        %v3331 = vrot.slane %v3330, 4
        %v3332 = vsel %vm1635, %v3331, %v3324
        %v3334 = vunpack.c.l.s4 1934713408
        %v3335 = vunpack.c.0.s8 %v3334
        %v3336 = vperm.slane %v3332, %v3335
        %v3337 = vrot.slane %v3336, 4
        %v3338 = vsel %vm1635, 0, %v3337
        %v3339 = vrot.slane %v3166, 4
        %v3340 = vsel %vm1635, %v3339, %v3162
        %v3342 = vunpack.c.l.s4 1983009808
        %v3343 = vunpack.c.0.s8 %v3342
        %v3344 = vperm.slane %v3340, %v3343
        %v3345 = vrot.slane %v3168, 4
        %v3346 = vsel %vm1635, %v3345, %v3164
        %v3348 = vunpack.c.l.s4 1983009808
        %v3349 = vunpack.c.0.s8 %v3348
        %v3350 = vperm.slane %v3346, %v3349
        %v3351 = vrot.slane %v3350, 4
        %v3352 = vsel %vm1635, %v3351, %v3344
        %v3354 = vunpack.c.l.s4 1934713408
        %v3355 = vunpack.c.0.s8 %v3354
        %v3356 = vperm.slane %v3352, %v3355
        %v3357 = vrot.slane %v3356, 4
        %v3358 = vsel %vm1635, 0, %v3357
        %v3361 = vpack.i.b16 %v3356, %v3336
        %v3362 = vshrl.u32 %v3336, 16
        %v3363 = vshrl.u32 %v3356, 16
        %v3364 = vpack.i.b16 %v3363, %v3362
        %v3367 = vpack.i.b16 %v3358, %v3338
        %v3368 = vshrl.u32 %v3338, 16
        %v3369 = vshrl.u32 %v3358, 16
        %v3370 = vpack.i.b16 %v3369, %v3368
        %3371 = vxpose.xlu0.c.b16.start [1/8] %v3235, 128
        %3372 = vxpose.xlu0.c.b16.cont [2/8] 0, 128
        %3373 = vxpose.xlu0.c.b16.cont [3/8] 0, 128
        %3374 = vxpose.xlu0.c.b16.cont [4/8] 0, 128
        %3375 = vxpose.xlu0.c.b16.cont [5/8] 0, 128
        %3376 = vxpose.xlu0.c.b16.cont [6/8] 0, 128
        %3377 = vxpose.xlu0.c.b16.cont [7/8] 0, 128
        %3378 = vxpose.xlu0.c.b16.end [8/8] 0, 128
        %v3379 = vpop.trf.xlu0
        %v3380 = vpop.trf.xlu0
        %v3381 = vpop.trf.xlu0
        %v3382 = vpop.trf.xlu0
        %v3383 = vpop.trf.xlu0
        %v3384 = vpop.trf.xlu0
        %v3385 = vpop.trf.xlu0
        %v3386 = vpop.trf.xlu0
        %3387 = vxpose.xlu0.c.b16.start [1/8] %v3236, 128
        %3388 = vxpose.xlu0.c.b16.cont [2/8] 0, 128
        %3389 = vxpose.xlu0.c.b16.cont [3/8] 0, 128
        %3390 = vxpose.xlu0.c.b16.cont [4/8] 0, 128
        %3391 = vxpose.xlu0.c.b16.cont [5/8] 0, 128
        %3392 = vxpose.xlu0.c.b16.cont [6/8] 0, 128
        %3393 = vxpose.xlu0.c.b16.cont [7/8] 0, 128
        %3394 = vxpose.xlu0.c.b16.end [8/8] 0, 128
        %v3395 = vpop.trf.xlu0
        %v3396 = vpop.trf.xlu0
        %v3397 = vpop.trf.xlu0
        %v3398 = vpop.trf.xlu0
        %v3399 = vpop.trf.xlu0
        %v3400 = vpop.trf.xlu0
        %v3401 = vpop.trf.xlu0
        %v3402 = vpop.trf.xlu0
        %3403 = vxpose.xlu0.c.b16.start [1/8] %v3237, 128
        %3404 = vxpose.xlu0.c.b16.cont [2/8] 0, 128
        %3405 = vxpose.xlu0.c.b16.cont [3/8] 0, 128
        %3406 = vxpose.xlu0.c.b16.cont [4/8] 0, 128
        %3407 = vxpose.xlu0.c.b16.cont [5/8] 0, 128
        %3408 = vxpose.xlu0.c.b16.cont [6/8] 0, 128
        %3409 = vxpose.xlu0.c.b16.cont [7/8] 0, 128
        %3410 = vxpose.xlu0.c.b16.end [8/8] 0, 128
        %v3411 = vpop.trf.xlu0
        %v3412 = vpop.trf.xlu0
        %v3413 = vpop.trf.xlu0
        %v3414 = vpop.trf.xlu0
        %v3415 = vpop.trf.xlu0
        %v3416 = vpop.trf.xlu0
        %v3417 = vpop.trf.xlu0
        %v3418 = vpop.trf.xlu0
        %3419 = vxpose.xlu0.c.b16.start [1/8] %v3238, 128
        %3420 = vxpose.xlu0.c.b16.cont [2/8] 0, 128
        %3421 = vxpose.xlu0.c.b16.cont [3/8] 0, 128
        %3422 = vxpose.xlu0.c.b16.cont [4/8] 0, 128
        %3423 = vxpose.xlu0.c.b16.cont [5/8] 0, 128
        %3424 = vxpose.xlu0.c.b16.cont [6/8] 0, 128
        %3425 = vxpose.xlu0.c.b16.cont [7/8] 0, 128
        %3426 = vxpose.xlu0.c.b16.end [8/8] 0, 128
        %v3427 = vpop.trf.xlu0
        %v3428 = vpop.trf.xlu0
        %v3429 = vpop.trf.xlu0
        %v3430 = vpop.trf.xlu0
        %v3431 = vpop.trf.xlu0
        %v3432 = vpop.trf.xlu0
        %v3433 = vpop.trf.xlu0
        %v3434 = vpop.trf.xlu0
        %3435 = vxpose.xlu0.c.b16.start [1/8] %v3239, 128
        %3436 = vxpose.xlu0.c.b16.cont [2/8] 0, 128
        %3437 = vxpose.xlu0.c.b16.cont [3/8] 0, 128
        %3438 = vxpose.xlu0.c.b16.cont [4/8] 0, 128
        %3439 = vxpose.xlu0.c.b16.cont [5/8] 0, 128
        %3440 = vxpose.xlu0.c.b16.cont [6/8] 0, 128
        %3441 = vxpose.xlu0.c.b16.cont [7/8] 0, 128
        %3442 = vxpose.xlu0.c.b16.end [8/8] 0, 128
        %v3443 = vpop.trf.xlu0
        %v3444 = vpop.trf.xlu0
        %v3445 = vpop.trf.xlu0
        %v3446 = vpop.trf.xlu0
        %v3447 = vpop.trf.xlu0
        %v3448 = vpop.trf.xlu0
        %v3449 = vpop.trf.xlu0
        %v3450 = vpop.trf.xlu0
        %3451 = vxpose.xlu0.c.b16.start [1/8] %v3240, 128
        %3452 = vxpose.xlu0.c.b16.cont [2/8] 0, 128
        %3453 = vxpose.xlu0.c.b16.cont [3/8] 0, 128
        %3454 = vxpose.xlu0.c.b16.cont [4/8] 0, 128
        %3455 = vxpose.xlu0.c.b16.cont [5/8] 0, 128
        %3456 = vxpose.xlu0.c.b16.cont [6/8] 0, 128
        %3457 = vxpose.xlu0.c.b16.cont [7/8] 0, 128
        %3458 = vxpose.xlu0.c.b16.end [8/8] 0, 128
        %v3459 = vpop.trf.xlu0
        %v3460 = vpop.trf.xlu0
        %v3461 = vpop.trf.xlu0
        %v3462 = vpop.trf.xlu0
        %v3463 = vpop.trf.xlu0
        %v3464 = vpop.trf.xlu0
        %v3465 = vpop.trf.xlu0
        %v3466 = vpop.trf.xlu0
        %3467 = vxpose.xlu0.c.b16.start [1/8] %v3241, 128
        %3468 = vxpose.xlu0.c.b16.cont [2/8] 0, 128
        %3469 = vxpose.xlu0.c.b16.cont [3/8] 0, 128
        %3470 = vxpose.xlu0.c.b16.cont [4/8] 0, 128
        %3471 = vxpose.xlu0.c.b16.cont [5/8] 0, 128
        %3472 = vxpose.xlu0.c.b16.cont [6/8] 0, 128
        %3473 = vxpose.xlu0.c.b16.cont [7/8] 0, 128
        %3474 = vxpose.xlu0.c.b16.end [8/8] 0, 128
        %v3475 = vpop.trf.xlu0
        %v3476 = vpop.trf.xlu0
        %v3477 = vpop.trf.xlu0
        %v3478 = vpop.trf.xlu0
        %v3479 = vpop.trf.xlu0
        %v3480 = vpop.trf.xlu0
        %v3481 = vpop.trf.xlu0
        %v3482 = vpop.trf.xlu0
        %3483 = vxpose.xlu0.c.b16.start [1/8] %v3242, 128
        %3484 = vxpose.xlu0.c.b16.cont [2/8] 0, 128
        %3485 = vxpose.xlu0.c.b16.cont [3/8] 0, 128
        %3486 = vxpose.xlu0.c.b16.cont [4/8] 0, 128
        %3487 = vxpose.xlu0.c.b16.cont [5/8] 0, 128
        %3488 = vxpose.xlu0.c.b16.cont [6/8] 0, 128
        %3489 = vxpose.xlu0.c.b16.cont [7/8] 0, 128
        %3490 = vxpose.xlu0.c.b16.end [8/8] 0, 128
        %v3491 = vpop.trf.xlu0
        %v3492 = vpop.trf.xlu0
        %v3493 = vpop.trf.xlu0
        %v3494 = vpop.trf.xlu0
        %v3495 = vpop.trf.xlu0
        %v3496 = vpop.trf.xlu0
        %v3497 = vpop.trf.xlu0
        %v3498 = vpop.trf.xlu0
        %v3499 = vrot.slane %v3443, 4
        %v3500 = vsel %vm1635, %v3499, %v3379
        %v3502 = vunpack.c.l.s4 1983009808
        %v3503 = vunpack.c.0.s8 %v3502
        %v3504 = vperm.slane %v3500, %v3503
        %v3505 = vrot.slane %v3475, 4
        %v3506 = vsel %vm1635, %v3505, %v3411
        %v3508 = vunpack.c.l.s4 1983009808
        %v3509 = vunpack.c.0.s8 %v3508
        %v3510 = vperm.slane %v3506, %v3509
        %v3511 = vrot.slane %v3510, 4
        %v3512 = vsel %vm1635, %v3511, %v3504
        %v3513 = vrot.slane %v3504, 4
        %v3514 = vsel %vm1635, %v3510, %v3513
        %v3516 = vunpack.c.l.s4 1934713408
        %v3517 = vunpack.c.0.s8 %v3516
        %v3518 = vperm.slane %v3512, %v3517
        %v3520 = vunpack.c.l.s4 1934713408
        %v3521 = vunpack.c.0.s8 %v3520
        %v3522 = vperm.slane %v3514, %v3521
        %v3523 = vrot.slane %v3518, 4
        %v3524 = vsel %vm1635, 0, %v3523
        %v3525 = vrot.slane %v3522, 4
        %v3526 = vsel %vm1635, 0, %v3525
        %v3527 = vrot.slane %v3459, 4
        %v3528 = vsel %vm1635, %v3527, %v3395
        %v3530 = vunpack.c.l.s4 1983009808
        %v3531 = vunpack.c.0.s8 %v3530
        %v3532 = vperm.slane %v3528, %v3531
        %v3533 = vrot.slane %v3491, 4
        %v3534 = vsel %vm1635, %v3533, %v3427
        %v3536 = vunpack.c.l.s4 1983009808
        %v3537 = vunpack.c.0.s8 %v3536
        %v3538 = vperm.slane %v3534, %v3537
        %v3539 = vrot.slane %v3538, 4
        %v3540 = vsel %vm1635, %v3539, %v3532
        %v3541 = vrot.slane %v3532, 4
        %v3542 = vsel %vm1635, %v3538, %v3541
        %v3544 = vunpack.c.l.s4 1934713408
        %v3545 = vunpack.c.0.s8 %v3544
        %v3546 = vperm.slane %v3540, %v3545
        %v3548 = vunpack.c.l.s4 1934713408
        %v3549 = vunpack.c.0.s8 %v3548
        %v3550 = vperm.slane %v3542, %v3549
        %v3551 = vrot.slane %v3546, 4
        %v3552 = vsel %vm1635, 0, %v3551
        %v3553 = vrot.slane %v3550, 4
        %v3554 = vsel %vm1635, 0, %v3553
        %v3557 = vpack.i.b16 %v3546, %v3518
        %v3559 = vshrl.u32 %v3518, 16
        %v3560 = vshrl.u32 %v3546, 16
        %v3561 = vpack.i.b16 %v3560, %v3559
        %v3565 = vpack.i.b16 %v3552, %v3524
        %v3567 = vshrl.u32 %v3524, 16
        %v3568 = vshrl.u32 %v3552, 16
        %v3569 = vpack.i.b16 %v3568, %v3567
        %v3573 = vpack.i.b16 %v3550, %v3522
        %v3575 = vshrl.u32 %v3522, 16
        %v3576 = vshrl.u32 %v3550, 16
        %v3577 = vpack.i.b16 %v3576, %v3575
        %v3581 = vpack.i.b16 %v3554, %v3526
        %v3583 = vshrl.u32 %v3526, 16
        %v3584 = vshrl.u32 %v3554, 16
        %v3585 = vpack.i.b16 %v3584, %v3583
        %3587 = vxpose.xlu0.c.b16.start [1/8] %v3557, 128
        %3588 = vxpose.xlu0.c.b16.cont [2/8] 0, 128
        %3589 = vxpose.xlu0.c.b16.cont [3/8] 0, 128
        %3590 = vxpose.xlu0.c.b16.cont [4/8] 0, 128
        %3591 = vxpose.xlu0.c.b16.cont [5/8] 0, 128
        %3592 = vxpose.xlu0.c.b16.cont [6/8] 0, 128
        %3593 = vxpose.xlu0.c.b16.cont [7/8] 0, 128
        %3594 = vxpose.xlu0.c.b16.end [8/8] 0, 128
        %v3595 = vpop.trf.xlu0
        %v3596 = vpop.trf.xlu0
        %v3597 = vpop.trf.xlu0
        %v3598 = vpop.trf.xlu0
        %v3599 = vpop.trf.xlu0
        %v3600 = vpop.trf.xlu0
        %v3601 = vpop.trf.xlu0
        %v3602 = vpop.trf.xlu0
        %3603 = vxpose.xlu0.c.b16.start [1/8] %v3561, 128
        %3604 = vxpose.xlu0.c.b16.cont [2/8] 0, 128
        %3605 = vxpose.xlu0.c.b16.cont [3/8] 0, 128
        %3606 = vxpose.xlu0.c.b16.cont [4/8] 0, 128
        %3607 = vxpose.xlu0.c.b16.cont [5/8] 0, 128
        %3608 = vxpose.xlu0.c.b16.cont [6/8] 0, 128
        %3609 = vxpose.xlu0.c.b16.cont [7/8] 0, 128
        %3610 = vxpose.xlu0.c.b16.end [8/8] 0, 128
        %v3611 = vpop.trf.xlu0
        %v3612 = vpop.trf.xlu0
        %v3613 = vpop.trf.xlu0
        %v3614 = vpop.trf.xlu0
        %v3615 = vpop.trf.xlu0
        %v3616 = vpop.trf.xlu0
        %v3617 = vpop.trf.xlu0
        %v3618 = vpop.trf.xlu0
        %3619 = vxpose.xlu0.c.b16.start [1/8] %v3565, 128
        %3620 = vxpose.xlu0.c.b16.cont [2/8] 0, 128
        %3621 = vxpose.xlu0.c.b16.cont [3/8] 0, 128
        %3622 = vxpose.xlu0.c.b16.cont [4/8] 0, 128
        %3623 = vxpose.xlu0.c.b16.cont [5/8] 0, 128
        %3624 = vxpose.xlu0.c.b16.cont [6/8] 0, 128
        %3625 = vxpose.xlu0.c.b16.cont [7/8] 0, 128
        %3626 = vxpose.xlu0.c.b16.end [8/8] 0, 128
        %v3627 = vpop.trf.xlu0
        %v3628 = vpop.trf.xlu0
        %v3629 = vpop.trf.xlu0
        %v3630 = vpop.trf.xlu0
        %v3631 = vpop.trf.xlu0
        %v3632 = vpop.trf.xlu0
        %v3633 = vpop.trf.xlu0
        %v3634 = vpop.trf.xlu0
        %3635 = vxpose.xlu0.c.b16.start [1/8] %v3569, 128
        %3636 = vxpose.xlu0.c.b16.cont [2/8] 0, 128
        %3637 = vxpose.xlu0.c.b16.cont [3/8] 0, 128
        %3638 = vxpose.xlu0.c.b16.cont [4/8] 0, 128
        %3639 = vxpose.xlu0.c.b16.cont [5/8] 0, 128
        %3640 = vxpose.xlu0.c.b16.cont [6/8] 0, 128
        %3641 = vxpose.xlu0.c.b16.cont [7/8] 0, 128
        %3642 = vxpose.xlu0.c.b16.end [8/8] 0, 128
        %v3643 = vpop.trf.xlu0
        %v3644 = vpop.trf.xlu0
        %v3645 = vpop.trf.xlu0
        %v3646 = vpop.trf.xlu0
        %v3647 = vpop.trf.xlu0
        %v3648 = vpop.trf.xlu0
        %v3649 = vpop.trf.xlu0
        %v3650 = vpop.trf.xlu0
        %3651 = vxpose.xlu0.c.b16.start [1/8] %v3573, 128
        %3652 = vxpose.xlu0.c.b16.cont [2/8] 0, 128
        %3653 = vxpose.xlu0.c.b16.cont [3/8] 0, 128
        %3654 = vxpose.xlu0.c.b16.cont [4/8] 0, 128
        %3655 = vxpose.xlu0.c.b16.cont [5/8] 0, 128
        %3656 = vxpose.xlu0.c.b16.cont [6/8] 0, 128
        %3657 = vxpose.xlu0.c.b16.cont [7/8] 0, 128
        %3658 = vxpose.xlu0.c.b16.end [8/8] 0, 128
        %v3659 = vpop.trf.xlu0
        %v3660 = vpop.trf.xlu0
        %v3661 = vpop.trf.xlu0
        %v3662 = vpop.trf.xlu0
        %v3663 = vpop.trf.xlu0
        %v3664 = vpop.trf.xlu0
        %v3665 = vpop.trf.xlu0
        %v3666 = vpop.trf.xlu0
        %3667 = vxpose.xlu0.c.b16.start [1/8] %v3577, 128
        %3668 = vxpose.xlu0.c.b16.cont [2/8] 0, 128
        %3669 = vxpose.xlu0.c.b16.cont [3/8] 0, 128
        %3670 = vxpose.xlu0.c.b16.cont [4/8] 0, 128
        %3671 = vxpose.xlu0.c.b16.cont [5/8] 0, 128
        %3672 = vxpose.xlu0.c.b16.cont [6/8] 0, 128
        %3673 = vxpose.xlu0.c.b16.cont [7/8] 0, 128
        %3674 = vxpose.xlu0.c.b16.end [8/8] 0, 128
        %v3675 = vpop.trf.xlu0
        %v3676 = vpop.trf.xlu0
        %v3677 = vpop.trf.xlu0
        %v3678 = vpop.trf.xlu0
        %v3679 = vpop.trf.xlu0
        %v3680 = vpop.trf.xlu0
        %v3681 = vpop.trf.xlu0
        %v3682 = vpop.trf.xlu0
        %3683 = vxpose.xlu0.c.b16.start [1/8] %v3581, 128
        %3684 = vxpose.xlu0.c.b16.cont [2/8] 0, 128
        %3685 = vxpose.xlu0.c.b16.cont [3/8] 0, 128
        %3686 = vxpose.xlu0.c.b16.cont [4/8] 0, 128
        %3687 = vxpose.xlu0.c.b16.cont [5/8] 0, 128
        %3688 = vxpose.xlu0.c.b16.cont [6/8] 0, 128
        %3689 = vxpose.xlu0.c.b16.cont [7/8] 0, 128
        %3690 = vxpose.xlu0.c.b16.end [8/8] 0, 128
        %v3691 = vpop.trf.xlu0
        %v3692 = vpop.trf.xlu0
        %v3693 = vpop.trf.xlu0
        %v3694 = vpop.trf.xlu0
        %v3695 = vpop.trf.xlu0
        %v3696 = vpop.trf.xlu0
        %v3697 = vpop.trf.xlu0
        %v3698 = vpop.trf.xlu0
        %3699 = vxpose.xlu0.c.b16.start [1/8] %v3585, 128
        %3700 = vxpose.xlu0.c.b16.cont [2/8] 0, 128
        %3701 = vxpose.xlu0.c.b16.cont [3/8] 0, 128
        %3702 = vxpose.xlu0.c.b16.cont [4/8] 0, 128
        %3703 = vxpose.xlu0.c.b16.cont [5/8] 0, 128
        %3704 = vxpose.xlu0.c.b16.cont [6/8] 0, 128
        %3705 = vxpose.xlu0.c.b16.cont [7/8] 0, 128
        %3706 = vxpose.xlu0.c.b16.end [8/8] 0, 128
        %v3707 = vpop.trf.xlu0
        %v3708 = vpop.trf.xlu0
        %v3709 = vpop.trf.xlu0
        %v3710 = vpop.trf.xlu0
        %v3711 = vpop.trf.xlu0
        %v3712 = vpop.trf.xlu0
        %v3713 = vpop.trf.xlu0
        %v3714 = vpop.trf.xlu0
        %v3715 = vrot.slane %v3659, 4
        %v3716 = vsel %vm1635, %v3715, %v3595
        %v3718 = vunpack.c.l.s4 1983009808
        %v3719 = vunpack.c.0.s8 %v3718
        %v3720 = vperm.slane %v3716, %v3719
        %v3721 = vrot.slane %v3691, 4
        %v3722 = vsel %vm1635, %v3721, %v3627
        %v3724 = vunpack.c.l.s4 1983009808
        %v3725 = vunpack.c.0.s8 %v3724
        %v3726 = vperm.slane %v3722, %v3725
        %v3727 = vrot.slane %v3726, 4
        %v3728 = vsel %vm1635, %v3727, %v3720
        %v3730 = vunpack.c.l.s4 1934713408
        %v3731 = vunpack.c.0.s8 %v3730
        %v3732 = vperm.slane %v3728, %v3731
        %v3733 = vrot.slane %v3732, 4
        %v3734 = vsel %vm1635, 0, %v3733
        %v3735 = vrot.slane %v3675, 4
        %v3736 = vsel %vm1635, %v3735, %v3611
        %v3738 = vunpack.c.l.s4 1983009808
        %v3739 = vunpack.c.0.s8 %v3738
        %v3740 = vperm.slane %v3736, %v3739
        %v3741 = vrot.slane %v3707, 4
        %v3742 = vsel %vm1635, %v3741, %v3643
        %v3744 = vunpack.c.l.s4 1983009808
        %v3745 = vunpack.c.0.s8 %v3744
        %v3746 = vperm.slane %v3742, %v3745
        %v3747 = vrot.slane %v3746, 4
        %v3748 = vsel %vm1635, %v3747, %v3740
        %v3750 = vunpack.c.l.s4 1934713408
        %v3751 = vunpack.c.0.s8 %v3750
        %v3752 = vperm.slane %v3748, %v3751
        %v3753 = vrot.slane %v3752, 4
        %v3754 = vsel %vm1635, 0, %v3753
        %v3757 = vpack.i.b16 %v3752, %v3732
        %v3758 = vshrl.u32 %v3732, 16
        %v3759 = vshrl.u32 %v3752, 16
        %v3760 = vpack.i.b16 %v3759, %v3758
        %v3763 = vpack.i.b16 %v3754, %v3734
        %v3764 = vshrl.u32 %v3734, 16
        %v3765 = vshrl.u32 %v3754, 16
        %v3766 = vpack.i.b16 %v3765, %v3764
        %v3768 = vsel %vm2083, %v3361, 0
        %v3771 = vsel %vm2087, %v3757, 0
        %3773 = vmatpush.bf16.msra.mxu0 0
        %3774 = vmatpush.bf16.msra.mxu0 0
        %3775 = vmatpush.bf16.msra.mxu0 0
        %3776 = vmatpush.bf16.msra.mxu0 0
        %3777 = vmatpush.bf16.msra.mxu0 0
        %3778 = vmatpush.bf16.msra.mxu0 0
        %3779 = vmatpush.bf16.msra.mxu0 0
        %3780 = vmatpush.bf16.msra.mxu0 %v3771
        %3781 = vmatmul.bf16.gmra.mxu0 %v3768
        %v3782 = vpop.f32.mrf.mxu0
        %v3783 = vadd.f32 0.0, %v3782
        %v3784 = vpop.f32.mrf.mxu0
        %3785 = vdwg.mxu0
        %v3787 = vsel %vm2083, %v3364, 0
        %v3790 = vsel %vm2087, %v3760, 0
        %3792 = vmatpush.bf16.msra.mxu0 0
        %3793 = vmatpush.bf16.msra.mxu0 0
        %3794 = vmatpush.bf16.msra.mxu0 0
        %3795 = vmatpush.bf16.msra.mxu0 0
        %3796 = vmatpush.bf16.msra.mxu0 0
        %3797 = vmatpush.bf16.msra.mxu0 0
        %3798 = vmatpush.bf16.msra.mxu0 0
        %3799 = vmatpush.bf16.msra.mxu0 %v3790
        %3800 = vmatmul.bf16.gmra.mxu0 %v3787
        %v3801 = vpop.f32.mrf.mxu0
        %v3802 = vadd.f32 0.0, %v3801
        %v3803 = vpop.f32.mrf.mxu0
        %3804 = vdwg.mxu0
        %v3806 = vsel %vm2083, %v3367, 0
        %v3809 = vsel %vm2087, %v3763, 0
        %3811 = vmatpush.bf16.msra.mxu0 0
        %3812 = vmatpush.bf16.msra.mxu0 0
        %3813 = vmatpush.bf16.msra.mxu0 0
        %3814 = vmatpush.bf16.msra.mxu0 0
        %3815 = vmatpush.bf16.msra.mxu0 0
        %3816 = vmatpush.bf16.msra.mxu0 0
        %3817 = vmatpush.bf16.msra.mxu0 0
        %3818 = vmatpush.bf16.msra.mxu0 %v3809
        %3819 = vmatmul.bf16.gmra.mxu0 %v3806
        %v3820 = vpop.f32.mrf.mxu0
        %v3821 = vadd.f32 0.0, %v3820
        %v3822 = vpop.f32.mrf.mxu0
        %3823 = vdwg.mxu0
        %v3825 = vsel %vm2083, %v3370, 0
        %v3828 = vsel %vm2087, %v3766, 0
        %3830 = vmatpush.bf16.msra.mxu0 0
        %3831 = vmatpush.bf16.msra.mxu0 0
        %3832 = vmatpush.bf16.msra.mxu0 0
        %3833 = vmatpush.bf16.msra.mxu0 0
        %3834 = vmatpush.bf16.msra.mxu0 0
        %3835 = vmatpush.bf16.msra.mxu0 0
        %3836 = vmatpush.bf16.msra.mxu0 0
        %3837 = vmatpush.bf16.msra.mxu0 %v3828
        %3838 = vmatmul.bf16.gmra.mxu0 %v3825
        %v3839 = vpop.f32.mrf.mxu0
        %v3840 = vadd.f32 0.0, %v3839
        %v3841 = vpop.f32.mrf.mxu0
        %3842 = vdwg.mxu0
        %v3843 = vmul.f32 %v3783, 0.35355338
        %v3844 = vmul.f32 %v3802, 0.35355338
        %v3845 = vmul.f32 %v3821, 0.35355338
        %v3846 = vmul.f32 %v3840, 0.35355338
        %v3848 = vperm.slane %v1368, 0
        %v3850 = vadd.f32 %v3843, %v3848
        %v3851 = vadd.f32 %v3844, %v3848
        %v3852 = vadd.f32 %v3845, %v3848
        %v3853 = vadd.f32 %v3846, %v3848
        %v3854 = vsel %vm2083, %v3850, -inf
        %3855 = vmax.xlane.f32.xlu0 %v3854
        %v3856 = vpop.xlane.xlu0 %3855
        %v3857 = vsel %vm2083, %v3851, -inf
        %3858 = vmax.xlane.f32.xlu0 %v3857
        %v3859 = vpop.xlane.xlu0 %3858
        %v3860 = vsel %vm2083, %v3852, -inf
        %3861 = vmax.xlane.f32.xlu0 %v3860
        %v3862 = vpop.xlane.xlu0 %3861
        %v3863 = vsel %vm2083, %v3853, -inf
        %3864 = vmax.xlane.f32.xlu0 %v3863
        %v3865 = vpop.xlane.xlu0 %3864
        %v3866 = vsub.f32 %v3850, %v3856
        %v3867 = vsub.f32 %v3851, %v3859
        %v3868 = vsub.f32 %v3852, %v3862
        %v3869 = vsub.f32 %v3853, %v3865
        %v3870 = vmul.f32 %v3866, 1.442695
        %v3871 = vpow.pop %v3870
        %v3872 = vmul.f32 %v3867, 1.442695
        %v3873 = vpow.pop %v3872
        %v3874 = vmul.f32 %v3868, 1.442695
        %v3875 = vpow.pop %v3874
        %v3876 = vmul.f32 %v3869, 1.442695
        %v3877 = vpow.pop %v3876
        %v3878 = vsel %vm2083, %v3871, 0.0
        %3879 = vadd.xlane.f32.xlu0 %v3878
        %v3880 = vpop.xlane.xlu0 %3879
        %v3881 = vsel %vm2083, %v3873, 0.0
        %3882 = vadd.xlane.f32.xlu0 %v3881
        %v3883 = vpop.xlane.xlu0 %3882
        %v3884 = vsel %vm2083, %v3875, 0.0
        %3885 = vadd.xlane.f32.xlu0 %v3884
        %v3886 = vpop.xlane.xlu0 %3885
        %v3887 = vsel %vm2083, %v3877, 0.0
        %3888 = vadd.xlane.f32.xlu0 %v3887
        %v3889 = vpop.xlane.xlu0 %3888
        %v3890 = vrcp.pop %v3880
        %v3891 = vrcp.pop %v3883
        %v3892 = vrcp.pop %v3886
        %v3893 = vrcp.pop %v3889
        %v3894 = vmul.f32 %v3871, %v3890
        %v3895 = vmul.f32 %v3873, %v3891
        %v3896 = vmul.f32 %v3875, %v3892
        %v3897 = vmul.f32 %v3877, %v3893
        %v3898 = vpack.c.bf16 %v3894, %v3894
        %v3899 = vpack.c.bf16 %v3895, %v3895
        %v3900 = vpack.c.bf16 %v3896, %v3896
        %v3901 = vpack.c.bf16 %v3897, %v3897
        %3902 = vxpose.xlu0.c.b16.start [1/8] %v3311, 128
        %3903 = vxpose.xlu0.c.b16.cont [2/8] 0, 128
        %3904 = vxpose.xlu0.c.b16.cont [3/8] 0, 128
        %3905 = vxpose.xlu0.c.b16.cont [4/8] 0, 128
        %3906 = vxpose.xlu0.c.b16.cont [5/8] 0, 128
        %3907 = vxpose.xlu0.c.b16.cont [6/8] 0, 128
        %3908 = vxpose.xlu0.c.b16.cont [7/8] 0, 128
        %3909 = vxpose.xlu0.c.b16.end [8/8] 0, 128
        %v3910 = vpop.trf.xlu0
        %v3911 = vpop.trf.xlu0
        %v3912 = vpop.trf.xlu0
        %v3913 = vpop.trf.xlu0
        %v3914 = vpop.trf.xlu0
        %v3915 = vpop.trf.xlu0
        %v3916 = vpop.trf.xlu0
        %v3917 = vpop.trf.xlu0
        %3918 = vxpose.xlu0.c.b16.start [1/8] %v3312, 128
        %3919 = vxpose.xlu0.c.b16.cont [2/8] 0, 128
        %3920 = vxpose.xlu0.c.b16.cont [3/8] 0, 128
        %3921 = vxpose.xlu0.c.b16.cont [4/8] 0, 128
        %3922 = vxpose.xlu0.c.b16.cont [5/8] 0, 128
        %3923 = vxpose.xlu0.c.b16.cont [6/8] 0, 128
        %3924 = vxpose.xlu0.c.b16.cont [7/8] 0, 128
        %3925 = vxpose.xlu0.c.b16.end [8/8] 0, 128
        %v3926 = vpop.trf.xlu0
        %v3927 = vpop.trf.xlu0
        %v3928 = vpop.trf.xlu0
        %v3929 = vpop.trf.xlu0
        %v3930 = vpop.trf.xlu0
        %v3931 = vpop.trf.xlu0
        %v3932 = vpop.trf.xlu0
        %v3933 = vpop.trf.xlu0
        %3934 = vxpose.xlu0.c.b16.start [1/8] %v3313, 128
        %3935 = vxpose.xlu0.c.b16.cont [2/8] 0, 128
        %3936 = vxpose.xlu0.c.b16.cont [3/8] 0, 128
        %3937 = vxpose.xlu0.c.b16.cont [4/8] 0, 128
        %3938 = vxpose.xlu0.c.b16.cont [5/8] 0, 128
        %3939 = vxpose.xlu0.c.b16.cont [6/8] 0, 128
        %3940 = vxpose.xlu0.c.b16.cont [7/8] 0, 128
        %3941 = vxpose.xlu0.c.b16.end [8/8] 0, 128
        %v3942 = vpop.trf.xlu0
        %v3943 = vpop.trf.xlu0
        %v3944 = vpop.trf.xlu0
        %v3945 = vpop.trf.xlu0
        %v3946 = vpop.trf.xlu0
        %v3947 = vpop.trf.xlu0
        %v3948 = vpop.trf.xlu0
        %v3949 = vpop.trf.xlu0
        %3950 = vxpose.xlu0.c.b16.start [1/8] %v3314, 128
        %3951 = vxpose.xlu0.c.b16.cont [2/8] 0, 128
        %3952 = vxpose.xlu0.c.b16.cont [3/8] 0, 128
        %3953 = vxpose.xlu0.c.b16.cont [4/8] 0, 128
        %3954 = vxpose.xlu0.c.b16.cont [5/8] 0, 128
        %3955 = vxpose.xlu0.c.b16.cont [6/8] 0, 128
        %3956 = vxpose.xlu0.c.b16.cont [7/8] 0, 128
        %3957 = vxpose.xlu0.c.b16.end [8/8] 0, 128
        %v3958 = vpop.trf.xlu0
        %v3959 = vpop.trf.xlu0
        %v3960 = vpop.trf.xlu0
        %v3961 = vpop.trf.xlu0
        %v3962 = vpop.trf.xlu0
        %v3963 = vpop.trf.xlu0
        %v3964 = vpop.trf.xlu0
        %v3965 = vpop.trf.xlu0
        %3966 = vxpose.xlu0.c.b16.start [1/8] %v3315, 128
        %3967 = vxpose.xlu0.c.b16.cont [2/8] 0, 128
        %3968 = vxpose.xlu0.c.b16.cont [3/8] 0, 128
        %3969 = vxpose.xlu0.c.b16.cont [4/8] 0, 128
        %3970 = vxpose.xlu0.c.b16.cont [5/8] 0, 128
        %3971 = vxpose.xlu0.c.b16.cont [6/8] 0, 128
        %3972 = vxpose.xlu0.c.b16.cont [7/8] 0, 128
        %3973 = vxpose.xlu0.c.b16.end [8/8] 0, 128
        %v3974 = vpop.trf.xlu0
        %v3975 = vpop.trf.xlu0
        %v3976 = vpop.trf.xlu0
        %v3977 = vpop.trf.xlu0
        %v3978 = vpop.trf.xlu0
        %v3979 = vpop.trf.xlu0
        %v3980 = vpop.trf.xlu0
        %v3981 = vpop.trf.xlu0
        %3982 = vxpose.xlu0.c.b16.start [1/8] %v3316, 128
        %3983 = vxpose.xlu0.c.b16.cont [2/8] 0, 128
        %3984 = vxpose.xlu0.c.b16.cont [3/8] 0, 128
        %3985 = vxpose.xlu0.c.b16.cont [4/8] 0, 128
        %3986 = vxpose.xlu0.c.b16.cont [5/8] 0, 128
        %3987 = vxpose.xlu0.c.b16.cont [6/8] 0, 128
        %3988 = vxpose.xlu0.c.b16.cont [7/8] 0, 128
        %3989 = vxpose.xlu0.c.b16.end [8/8] 0, 128
        %v3990 = vpop.trf.xlu0
        %v3991 = vpop.trf.xlu0
        %v3992 = vpop.trf.xlu0
        %v3993 = vpop.trf.xlu0
        %v3994 = vpop.trf.xlu0
        %v3995 = vpop.trf.xlu0
        %v3996 = vpop.trf.xlu0
        %v3997 = vpop.trf.xlu0
        %3998 = vxpose.xlu0.c.b16.start [1/8] %v3317, 128
        %3999 = vxpose.xlu0.c.b16.cont [2/8] 0, 128
        %4000 = vxpose.xlu0.c.b16.cont [3/8] 0, 128
        %4001 = vxpose.xlu0.c.b16.cont [4/8] 0, 128
        %4002 = vxpose.xlu0.c.b16.cont [5/8] 0, 128
        %4003 = vxpose.xlu0.c.b16.cont [6/8] 0, 128
        %4004 = vxpose.xlu0.c.b16.cont [7/8] 0, 128
        %4005 = vxpose.xlu0.c.b16.end [8/8] 0, 128
        %v4006 = vpop.trf.xlu0
        %v4007 = vpop.trf.xlu0
        %v4008 = vpop.trf.xlu0
        %v4009 = vpop.trf.xlu0
        %v4010 = vpop.trf.xlu0
        %v4011 = vpop.trf.xlu0
        %v4012 = vpop.trf.xlu0
        %v4013 = vpop.trf.xlu0
        %4014 = vxpose.xlu0.c.b16.start [1/8] %v3318, 128
        %4015 = vxpose.xlu0.c.b16.cont [2/8] 0, 128
        %4016 = vxpose.xlu0.c.b16.cont [3/8] 0, 128
        %4017 = vxpose.xlu0.c.b16.cont [4/8] 0, 128
        %4018 = vxpose.xlu0.c.b16.cont [5/8] 0, 128
        %4019 = vxpose.xlu0.c.b16.cont [6/8] 0, 128
        %4020 = vxpose.xlu0.c.b16.cont [7/8] 0, 128
        %4021 = vxpose.xlu0.c.b16.end [8/8] 0, 128
        %v4022 = vpop.trf.xlu0
        %v4023 = vpop.trf.xlu0
        %v4024 = vpop.trf.xlu0
        %v4025 = vpop.trf.xlu0
        %v4026 = vpop.trf.xlu0
        %v4027 = vpop.trf.xlu0
        %v4028 = vpop.trf.xlu0
        %v4029 = vpop.trf.xlu0
        %v4030 = vrot.slane %v3974, 4
        %v4031 = vsel %vm1635, %v4030, %v3910
        %v4033 = vunpack.c.l.s4 1983009808
        %v4034 = vunpack.c.0.s8 %v4033
        %v4035 = vperm.slane %v4031, %v4034
        %v4036 = vrot.slane %v4006, 4
        %v4037 = vsel %vm1635, %v4036, %v3942
        %v4039 = vunpack.c.l.s4 1983009808
        %v4040 = vunpack.c.0.s8 %v4039
        %v4041 = vperm.slane %v4037, %v4040
        %v4042 = vrot.slane %v4041, 4
        %v4043 = vsel %vm1635, %v4042, %v4035
        %v4044 = vrot.slane %v4035, 4
        %v4045 = vsel %vm1635, %v4041, %v4044
        %v4047 = vunpack.c.l.s4 1934713408
        %v4048 = vunpack.c.0.s8 %v4047
        %v4049 = vperm.slane %v4043, %v4048
        %v4051 = vunpack.c.l.s4 1934713408
        %v4052 = vunpack.c.0.s8 %v4051
        %v4053 = vperm.slane %v4045, %v4052
        %v4054 = vrot.slane %v4049, 4
        %v4055 = vsel %vm1635, 0, %v4054
        %v4056 = vrot.slane %v4053, 4
        %v4057 = vsel %vm1635, 0, %v4056
        %v4058 = vrot.slane %v3990, 4
        %v4059 = vsel %vm1635, %v4058, %v3926
        %v4061 = vunpack.c.l.s4 1983009808
        %v4062 = vunpack.c.0.s8 %v4061
        %v4063 = vperm.slane %v4059, %v4062
        %v4064 = vrot.slane %v4022, 4
        %v4065 = vsel %vm1635, %v4064, %v3958
        %v4067 = vunpack.c.l.s4 1983009808
        %v4068 = vunpack.c.0.s8 %v4067
        %v4069 = vperm.slane %v4065, %v4068
        %v4070 = vrot.slane %v4069, 4
        %v4071 = vsel %vm1635, %v4070, %v4063
        %v4072 = vrot.slane %v4063, 4
        %v4073 = vsel %vm1635, %v4069, %v4072
        %v4075 = vunpack.c.l.s4 1934713408
        %v4076 = vunpack.c.0.s8 %v4075
        %v4077 = vperm.slane %v4071, %v4076
        %v4079 = vunpack.c.l.s4 1934713408
        %v4080 = vunpack.c.0.s8 %v4079
        %v4081 = vperm.slane %v4073, %v4080
        %v4082 = vrot.slane %v4077, 4
        %v4083 = vsel %vm1635, 0, %v4082
        %v4084 = vrot.slane %v4081, 4
        %v4085 = vsel %vm1635, 0, %v4084
        %v4088 = vpack.i.b16 %v4077, %v4049
        %v4090 = vshrl.u32 %v4049, 16
        %v4091 = vshrl.u32 %v4077, 16
        %v4092 = vpack.i.b16 %v4091, %v4090
        %v4096 = vpack.i.b16 %v4083, %v4055
        %v4098 = vshrl.u32 %v4055, 16
        %v4099 = vshrl.u32 %v4083, 16
        %v4100 = vpack.i.b16 %v4099, %v4098
        %v4104 = vpack.i.b16 %v4081, %v4053
        %v4106 = vshrl.u32 %v4053, 16
        %v4107 = vshrl.u32 %v4081, 16
        %v4108 = vpack.i.b16 %v4107, %v4106
        %v4112 = vpack.i.b16 %v4085, %v4057
        %v4114 = vshrl.u32 %v4057, 16
        %v4115 = vshrl.u32 %v4085, 16
        %v4116 = vpack.i.b16 %v4115, %v4114
        %4118 = vxpose.xlu0.c.b16.start [1/8] %v4088, 128
        %4119 = vxpose.xlu0.c.b16.cont [2/8] 0, 128
        %4120 = vxpose.xlu0.c.b16.cont [3/8] 0, 128
        %4121 = vxpose.xlu0.c.b16.cont [4/8] 0, 128
        %4122 = vxpose.xlu0.c.b16.cont [5/8] 0, 128
        %4123 = vxpose.xlu0.c.b16.cont [6/8] 0, 128
        %4124 = vxpose.xlu0.c.b16.cont [7/8] 0, 128
        %4125 = vxpose.xlu0.c.b16.end [8/8] 0, 128
        %v4126 = vpop.trf.xlu0
        %v4127 = vpop.trf.xlu0
        %v4128 = vpop.trf.xlu0
        %v4129 = vpop.trf.xlu0
        %v4130 = vpop.trf.xlu0
        %v4131 = vpop.trf.xlu0
        %v4132 = vpop.trf.xlu0
        %v4133 = vpop.trf.xlu0
        %4134 = vxpose.xlu0.c.b16.start [1/8] %v4092, 128
        %4135 = vxpose.xlu0.c.b16.cont [2/8] 0, 128
        %4136 = vxpose.xlu0.c.b16.cont [3/8] 0, 128
        %4137 = vxpose.xlu0.c.b16.cont [4/8] 0, 128
        %4138 = vxpose.xlu0.c.b16.cont [5/8] 0, 128
        %4139 = vxpose.xlu0.c.b16.cont [6/8] 0, 128
        %4140 = vxpose.xlu0.c.b16.cont [7/8] 0, 128
        %4141 = vxpose.xlu0.c.b16.end [8/8] 0, 128
        %v4142 = vpop.trf.xlu0
        %v4143 = vpop.trf.xlu0
        %v4144 = vpop.trf.xlu0
        %v4145 = vpop.trf.xlu0
        %v4146 = vpop.trf.xlu0
        %v4147 = vpop.trf.xlu0
        %v4148 = vpop.trf.xlu0
        %v4149 = vpop.trf.xlu0
        %4150 = vxpose.xlu0.c.b16.start [1/8] %v4096, 128
        %4151 = vxpose.xlu0.c.b16.cont [2/8] 0, 128
        %4152 = vxpose.xlu0.c.b16.cont [3/8] 0, 128
        %4153 = vxpose.xlu0.c.b16.cont [4/8] 0, 128
        %4154 = vxpose.xlu0.c.b16.cont [5/8] 0, 128
        %4155 = vxpose.xlu0.c.b16.cont [6/8] 0, 128
        %4156 = vxpose.xlu0.c.b16.cont [7/8] 0, 128
        %4157 = vxpose.xlu0.c.b16.end [8/8] 0, 128
        %v4158 = vpop.trf.xlu0
        %v4159 = vpop.trf.xlu0
        %v4160 = vpop.trf.xlu0
        %v4161 = vpop.trf.xlu0
        %v4162 = vpop.trf.xlu0
        %v4163 = vpop.trf.xlu0
        %v4164 = vpop.trf.xlu0
        %v4165 = vpop.trf.xlu0
        %4166 = vxpose.xlu0.c.b16.start [1/8] %v4100, 128
        %4167 = vxpose.xlu0.c.b16.cont [2/8] 0, 128
        %4168 = vxpose.xlu0.c.b16.cont [3/8] 0, 128
        %4169 = vxpose.xlu0.c.b16.cont [4/8] 0, 128
        %4170 = vxpose.xlu0.c.b16.cont [5/8] 0, 128
        %4171 = vxpose.xlu0.c.b16.cont [6/8] 0, 128
        %4172 = vxpose.xlu0.c.b16.cont [7/8] 0, 128
        %4173 = vxpose.xlu0.c.b16.end [8/8] 0, 128
        %v4174 = vpop.trf.xlu0
        %v4175 = vpop.trf.xlu0
        %v4176 = vpop.trf.xlu0
        %v4177 = vpop.trf.xlu0
        %v4178 = vpop.trf.xlu0
        %v4179 = vpop.trf.xlu0
        %v4180 = vpop.trf.xlu0
        %v4181 = vpop.trf.xlu0
        %4182 = vxpose.xlu0.c.b16.start [1/8] %v4104, 128
        %4183 = vxpose.xlu0.c.b16.cont [2/8] 0, 128
        %4184 = vxpose.xlu0.c.b16.cont [3/8] 0, 128
        %4185 = vxpose.xlu0.c.b16.cont [4/8] 0, 128
        %4186 = vxpose.xlu0.c.b16.cont [5/8] 0, 128
        %4187 = vxpose.xlu0.c.b16.cont [6/8] 0, 128
        %4188 = vxpose.xlu0.c.b16.cont [7/8] 0, 128
        %4189 = vxpose.xlu0.c.b16.end [8/8] 0, 128
        %v4190 = vpop.trf.xlu0
        %v4191 = vpop.trf.xlu0
        %v4192 = vpop.trf.xlu0
        %v4193 = vpop.trf.xlu0
        %v4194 = vpop.trf.xlu0
        %v4195 = vpop.trf.xlu0
        %v4196 = vpop.trf.xlu0
        %v4197 = vpop.trf.xlu0
        %4198 = vxpose.xlu0.c.b16.start [1/8] %v4108, 128
        %4199 = vxpose.xlu0.c.b16.cont [2/8] 0, 128
        %4200 = vxpose.xlu0.c.b16.cont [3/8] 0, 128
        %4201 = vxpose.xlu0.c.b16.cont [4/8] 0, 128
        %4202 = vxpose.xlu0.c.b16.cont [5/8] 0, 128
        %4203 = vxpose.xlu0.c.b16.cont [6/8] 0, 128
        %4204 = vxpose.xlu0.c.b16.cont [7/8] 0, 128
        %4205 = vxpose.xlu0.c.b16.end [8/8] 0, 128
        %v4206 = vpop.trf.xlu0
        %v4207 = vpop.trf.xlu0
        %v4208 = vpop.trf.xlu0
        %v4209 = vpop.trf.xlu0
        %v4210 = vpop.trf.xlu0
        %v4211 = vpop.trf.xlu0
        %v4212 = vpop.trf.xlu0
        %v4213 = vpop.trf.xlu0
        %4214 = vxpose.xlu0.c.b16.start [1/8] %v4112, 128
        %4215 = vxpose.xlu0.c.b16.cont [2/8] 0, 128
        %4216 = vxpose.xlu0.c.b16.cont [3/8] 0, 128
        %4217 = vxpose.xlu0.c.b16.cont [4/8] 0, 128
        %4218 = vxpose.xlu0.c.b16.cont [5/8] 0, 128
        %4219 = vxpose.xlu0.c.b16.cont [6/8] 0, 128
        %4220 = vxpose.xlu0.c.b16.cont [7/8] 0, 128
        %4221 = vxpose.xlu0.c.b16.end [8/8] 0, 128
        %v4222 = vpop.trf.xlu0
        %v4223 = vpop.trf.xlu0
        %v4224 = vpop.trf.xlu0
        %v4225 = vpop.trf.xlu0
        %v4226 = vpop.trf.xlu0
        %v4227 = vpop.trf.xlu0
        %v4228 = vpop.trf.xlu0
        %v4229 = vpop.trf.xlu0
        %4230 = vxpose.xlu0.c.b16.start [1/8] %v4116, 128
        %4231 = vxpose.xlu0.c.b16.cont [2/8] 0, 128
        %4232 = vxpose.xlu0.c.b16.cont [3/8] 0, 128
        %4233 = vxpose.xlu0.c.b16.cont [4/8] 0, 128
        %4234 = vxpose.xlu0.c.b16.cont [5/8] 0, 128
        %4235 = vxpose.xlu0.c.b16.cont [6/8] 0, 128
        %4236 = vxpose.xlu0.c.b16.cont [7/8] 0, 128
        %4237 = vxpose.xlu0.c.b16.end [8/8] 0, 128
        %v4238 = vpop.trf.xlu0
        %v4239 = vpop.trf.xlu0
        %v4240 = vpop.trf.xlu0
        %v4241 = vpop.trf.xlu0
        %v4242 = vpop.trf.xlu0
        %v4243 = vpop.trf.xlu0
        %v4244 = vpop.trf.xlu0
        %v4245 = vpop.trf.xlu0
        %v4246 = vrot.slane %v4190, 4
        %v4247 = vsel %vm1635, %v4246, %v4126
        %v4249 = vunpack.c.l.s4 1983009808
        %v4250 = vunpack.c.0.s8 %v4249
        %v4251 = vperm.slane %v4247, %v4250
        %v4252 = vrot.slane %v4222, 4
        %v4253 = vsel %vm1635, %v4252, %v4158
        %v4255 = vunpack.c.l.s4 1983009808
        %v4256 = vunpack.c.0.s8 %v4255
        %v4257 = vperm.slane %v4253, %v4256
        %v4258 = vrot.slane %v4257, 4
        %v4259 = vsel %vm1635, %v4258, %v4251
        %v4261 = vunpack.c.l.s4 1934713408
        %v4262 = vunpack.c.0.s8 %v4261
        %v4263 = vperm.slane %v4259, %v4262
        %v4264 = vrot.slane %v4263, 4
        %v4265 = vsel %vm1635, 0, %v4264
        %v4266 = vrot.slane %v4206, 4
        %v4267 = vsel %vm1635, %v4266, %v4142
        %v4269 = vunpack.c.l.s4 1983009808
        %v4270 = vunpack.c.0.s8 %v4269
        %v4271 = vperm.slane %v4267, %v4270
        %v4272 = vrot.slane %v4238, 4
        %v4273 = vsel %vm1635, %v4272, %v4174
        %v4275 = vunpack.c.l.s4 1983009808
        %v4276 = vunpack.c.0.s8 %v4275
        %v4277 = vperm.slane %v4273, %v4276
        %v4278 = vrot.slane %v4277, 4
        %v4279 = vsel %vm1635, %v4278, %v4271
        %v4281 = vunpack.c.l.s4 1934713408
        %v4282 = vunpack.c.0.s8 %v4281
        %v4283 = vperm.slane %v4279, %v4282
        %v4284 = vrot.slane %v4283, 4
        %v4285 = vsel %vm1635, 0, %v4284
        %v4288 = vpack.i.b16 %v4283, %v4263
        %v4289 = vshrl.u32 %v4263, 16
        %v4290 = vshrl.u32 %v4283, 16
        %v4291 = vpack.i.b16 %v4290, %v4289
        %v4294 = vpack.i.b16 %v4285, %v4265
        %v4295 = vshrl.u32 %v4265, 16
        %v4296 = vshrl.u32 %v4285, 16
        %v4297 = vpack.i.b16 %v4296, %v4295
        %v4299 = vsel %vm2083, %v4288, 0
        %v4302 = vsel %vm2083, %v3898, 0
        %4304 = vmatpush.bf16.xpose.msra.mxu0 0
        %4305 = vmatpush.bf16.xpose.msra.mxu0 0
        %4306 = vmatpush.bf16.xpose.msra.mxu0 0
        %4307 = vmatpush.bf16.xpose.msra.mxu0 0
        %4308 = vmatpush.bf16.xpose.msra.mxu0 0
        %4309 = vmatpush.bf16.xpose.msra.mxu0 0
        %4310 = vmatpush.bf16.xpose.msra.mxu0 0
        %4311 = vmatpush.bf16.xpose.msra.mxu0 %v4302
        %4312 = vmatmul.bf16.gmra.mxu0 %v4299
        %v4313 = vpop.f32.mrf.mxu0
        %v4314 = vadd.f32 0.0, %v4313
        %v4315 = vpop.f32.mrf.mxu0
        %4316 = vdwg.mxu0
        %v4318 = vsel %vm2083, %v4291, 0
        %v4321 = vsel %vm2083, %v3899, 0
        %4323 = vmatpush.bf16.xpose.msra.mxu0 0
        %4324 = vmatpush.bf16.xpose.msra.mxu0 0
        %4325 = vmatpush.bf16.xpose.msra.mxu0 0
        %4326 = vmatpush.bf16.xpose.msra.mxu0 0
        %4327 = vmatpush.bf16.xpose.msra.mxu0 0
        %4328 = vmatpush.bf16.xpose.msra.mxu0 0
        %4329 = vmatpush.bf16.xpose.msra.mxu0 0
        %4330 = vmatpush.bf16.xpose.msra.mxu0 %v4321
        %4331 = vmatmul.bf16.gmra.mxu0 %v4318
        %v4332 = vpop.f32.mrf.mxu0
        %v4333 = vadd.f32 0.0, %v4332
        %v4334 = vpop.f32.mrf.mxu0
        %4335 = vdwg.mxu0
        %v4337 = vsel %vm2083, %v4294, 0
        %v4340 = vsel %vm2083, %v3900, 0
        %4342 = vmatpush.bf16.xpose.msra.mxu0 0
        %4343 = vmatpush.bf16.xpose.msra.mxu0 0
        %4344 = vmatpush.bf16.xpose.msra.mxu0 0
        %4345 = vmatpush.bf16.xpose.msra.mxu0 0
        %4346 = vmatpush.bf16.xpose.msra.mxu0 0
        %4347 = vmatpush.bf16.xpose.msra.mxu0 0
        %4348 = vmatpush.bf16.xpose.msra.mxu0 0
        %4349 = vmatpush.bf16.xpose.msra.mxu0 %v4340
        %4350 = vmatmul.bf16.gmra.mxu0 %v4337
        %v4351 = vpop.f32.mrf.mxu0
        %v4352 = vadd.f32 0.0, %v4351
        %v4353 = vpop.f32.mrf.mxu0
        %4354 = vdwg.mxu0
        %v4356 = vsel %vm2083, %v4297, 0
        %v4359 = vsel %vm2083, %v3901, 0
        %4361 = vmatpush.bf16.xpose.msra.mxu0 0
        %4362 = vmatpush.bf16.xpose.msra.mxu0 0
        %4363 = vmatpush.bf16.xpose.msra.mxu0 0
        %4364 = vmatpush.bf16.xpose.msra.mxu0 0
        %4365 = vmatpush.bf16.xpose.msra.mxu0 0
        %4366 = vmatpush.bf16.xpose.msra.mxu0 0
        %4367 = vmatpush.bf16.xpose.msra.mxu0 0
        %4368 = vmatpush.bf16.xpose.msra.mxu0 %v4359
        %4369 = vmatmul.bf16.gmra.mxu0 %v4356
        %v4370 = vpop.f32.mrf.mxu0
        %v4371 = vadd.f32 0.0, %v4370
        %v4372 = vpop.f32.mrf.mxu0
        %4373 = vdwg.mxu0
        %4374 = vxpose.xlu0.b32.start [1/16] %v4314, 128
        %4375 = vxpose.xlu0.b32.cont [2/16] 0.0, 128
        %4376 = vxpose.xlu0.b32.cont [3/16] 0.0, 128
        %4377 = vxpose.xlu0.b32.cont [4/16] 0.0, 128
        %4378 = vxpose.xlu0.b32.cont [5/16] 0.0, 128
        %4379 = vxpose.xlu0.b32.cont [6/16] 0.0, 128
        %4380 = vxpose.xlu0.b32.cont [7/16] 0.0, 128
        %4381 = vxpose.xlu0.b32.cont [8/16] 0.0, 128
        %4382 = vxpose.xlu0.b32.cont [9/16] 0.0, 128
        %4383 = vxpose.xlu0.b32.cont [10/16] 0.0, 128
        %4384 = vxpose.xlu0.b32.cont [11/16] 0.0, 128
        %4385 = vxpose.xlu0.b32.cont [12/16] 0.0, 128
        %4386 = vxpose.xlu0.b32.cont [13/16] 0.0, 128
        %4387 = vxpose.xlu0.b32.cont [14/16] 0.0, 128
        %4388 = vxpose.xlu0.b32.cont [15/16] 0.0, 128
        %4389 = vxpose.xlu0.b32.end [16/16] 0.0, 128
        %v4390 = vpop.trf.xlu0
        %v4391 = vpop.trf.xlu0
        %v4392 = vpop.trf.xlu0
        %v4393 = vpop.trf.xlu0
        %v4394 = vpop.trf.xlu0
        %v4395 = vpop.trf.xlu0
        %v4396 = vpop.trf.xlu0
        %v4397 = vpop.trf.xlu0
        %v4398 = vpop.trf.xlu0
        %v4399 = vpop.trf.xlu0
        %v4400 = vpop.trf.xlu0
        %v4401 = vpop.trf.xlu0
        %v4402 = vpop.trf.xlu0
        %v4403 = vpop.trf.xlu0
        %v4404 = vpop.trf.xlu0
        %v4405 = vpop.trf.xlu0
        %4406 = vxpose.xlu0.b32.start [1/16] %v4333, 128
        %4407 = vxpose.xlu0.b32.cont [2/16] 0.0, 128
        %4408 = vxpose.xlu0.b32.cont [3/16] 0.0, 128
        %4409 = vxpose.xlu0.b32.cont [4/16] 0.0, 128
        %4410 = vxpose.xlu0.b32.cont [5/16] 0.0, 128
        %4411 = vxpose.xlu0.b32.cont [6/16] 0.0, 128
        %4412 = vxpose.xlu0.b32.cont [7/16] 0.0, 128
        %4413 = vxpose.xlu0.b32.cont [8/16] 0.0, 128
        %4414 = vxpose.xlu0.b32.cont [9/16] 0.0, 128
        %4415 = vxpose.xlu0.b32.cont [10/16] 0.0, 128
        %4416 = vxpose.xlu0.b32.cont [11/16] 0.0, 128
        %4417 = vxpose.xlu0.b32.cont [12/16] 0.0, 128
        %4418 = vxpose.xlu0.b32.cont [13/16] 0.0, 128
        %4419 = vxpose.xlu0.b32.cont [14/16] 0.0, 128
        %4420 = vxpose.xlu0.b32.cont [15/16] 0.0, 128
        %4421 = vxpose.xlu0.b32.end [16/16] 0.0, 128
        %v4422 = vpop.trf.xlu0
        %v4423 = vpop.trf.xlu0
        %v4424 = vpop.trf.xlu0
        %v4425 = vpop.trf.xlu0
        %v4426 = vpop.trf.xlu0
        %v4427 = vpop.trf.xlu0
        %v4428 = vpop.trf.xlu0
        %v4429 = vpop.trf.xlu0
        %v4430 = vpop.trf.xlu0
        %v4431 = vpop.trf.xlu0
        %v4432 = vpop.trf.xlu0
        %v4433 = vpop.trf.xlu0
        %v4434 = vpop.trf.xlu0
        %v4435 = vpop.trf.xlu0
        %v4436 = vpop.trf.xlu0
        %v4437 = vpop.trf.xlu0
        %4438 = vxpose.xlu0.b32.start [1/16] %v4352, 128
        %4439 = vxpose.xlu0.b32.cont [2/16] 0.0, 128
        %4440 = vxpose.xlu0.b32.cont [3/16] 0.0, 128
        %4441 = vxpose.xlu0.b32.cont [4/16] 0.0, 128
        %4442 = vxpose.xlu0.b32.cont [5/16] 0.0, 128
        %4443 = vxpose.xlu0.b32.cont [6/16] 0.0, 128
        %4444 = vxpose.xlu0.b32.cont [7/16] 0.0, 128
        %4445 = vxpose.xlu0.b32.cont [8/16] 0.0, 128
        %4446 = vxpose.xlu0.b32.cont [9/16] 0.0, 128
        %4447 = vxpose.xlu0.b32.cont [10/16] 0.0, 128
        %4448 = vxpose.xlu0.b32.cont [11/16] 0.0, 128
        %4449 = vxpose.xlu0.b32.cont [12/16] 0.0, 128
        %4450 = vxpose.xlu0.b32.cont [13/16] 0.0, 128
        %4451 = vxpose.xlu0.b32.cont [14/16] 0.0, 128
        %4452 = vxpose.xlu0.b32.cont [15/16] 0.0, 128
        %4453 = vxpose.xlu0.b32.end [16/16] 0.0, 128
        %v4454 = vpop.trf.xlu0
        %v4455 = vpop.trf.xlu0
        %v4456 = vpop.trf.xlu0
        %v4457 = vpop.trf.xlu0
        %v4458 = vpop.trf.xlu0
        %v4459 = vpop.trf.xlu0
        %v4460 = vpop.trf.xlu0
        %v4461 = vpop.trf.xlu0
        %v4462 = vpop.trf.xlu0
        %v4463 = vpop.trf.xlu0
        %v4464 = vpop.trf.xlu0
        %v4465 = vpop.trf.xlu0
        %v4466 = vpop.trf.xlu0
        %v4467 = vpop.trf.xlu0
        %v4468 = vpop.trf.xlu0
        %v4469 = vpop.trf.xlu0
        %4470 = vxpose.xlu0.b32.start [1/16] %v4371, 128
        %4471 = vxpose.xlu0.b32.cont [2/16] 0.0, 128
        %4472 = vxpose.xlu0.b32.cont [3/16] 0.0, 128
        %4473 = vxpose.xlu0.b32.cont [4/16] 0.0, 128
        %4474 = vxpose.xlu0.b32.cont [5/16] 0.0, 128
        %4475 = vxpose.xlu0.b32.cont [6/16] 0.0, 128
        %4476 = vxpose.xlu0.b32.cont [7/16] 0.0, 128
        %4477 = vxpose.xlu0.b32.cont [8/16] 0.0, 128
        %4478 = vxpose.xlu0.b32.cont [9/16] 0.0, 128
        %4479 = vxpose.xlu0.b32.cont [10/16] 0.0, 128
        %4480 = vxpose.xlu0.b32.cont [11/16] 0.0, 128
        %4481 = vxpose.xlu0.b32.cont [12/16] 0.0, 128
        %4482 = vxpose.xlu0.b32.cont [13/16] 0.0, 128
        %4483 = vxpose.xlu0.b32.cont [14/16] 0.0, 128
        %4484 = vxpose.xlu0.b32.cont [15/16] 0.0, 128
        %4485 = vxpose.xlu0.b32.end [16/16] 0.0, 128
        %v4486 = vpop.trf.xlu0
        %v4487 = vpop.trf.xlu0
        %v4488 = vpop.trf.xlu0
        %v4489 = vpop.trf.xlu0
        %v4490 = vpop.trf.xlu0
        %v4491 = vpop.trf.xlu0
        %v4492 = vpop.trf.xlu0
        %v4493 = vpop.trf.xlu0
        %v4494 = vpop.trf.xlu0
        %v4495 = vpop.trf.xlu0
        %v4496 = vpop.trf.xlu0
        %v4497 = vpop.trf.xlu0
        %v4498 = vpop.trf.xlu0
        %v4499 = vpop.trf.xlu0
        %v4500 = vpop.trf.xlu0
        %v4501 = vpop.trf.xlu0
        %v4502 = vrot.slane %v4454, 4
        %v4503 = vsel %vm1418, %v4502, %v4390
        %v4504 = vrot.slane %v4390, 4
        %v4505 = vsel %vm1418, %v4454, %v4504
        %v4507 = vunpack.c.l.s4 1983009808
        %v4508 = vunpack.c.0.s8 %v4507
        %v4509 = vperm.slane %v4503, %v4508
        %v4511 = vunpack.c.l.s4 1983009808
        %v4512 = vunpack.c.0.s8 %v4511
        %v4513 = vperm.slane %v4505, %v4512
        %v4514 = vrot.slane %v4486, 4
        %v4515 = vsel %vm1418, %v4514, %v4422
        %v4516 = vrot.slane %v4422, 4
        %v4517 = vsel %vm1418, %v4486, %v4516
        %v4519 = vunpack.c.l.s4 1983009808
        %v4520 = vunpack.c.0.s8 %v4519
        %v4521 = vperm.slane %v4515, %v4520
        %v4523 = vunpack.c.l.s4 1983009808
        %v4524 = vunpack.c.0.s8 %v4523
        %v4525 = vperm.slane %v4517, %v4524
        %v4526 = vrot.slane %v4521, 4
        %v4527 = vsel %vm1418, %v4526, %v4509
        %v4528 = vrot.slane %v4509, 4
        %v4529 = vsel %vm1418, %v4521, %v4528
        %v4531 = vunpack.c.l.s4 1934713408
        %v4532 = vunpack.c.0.s8 %v4531
        %v4533 = vperm.slane %v4527, %v4532
        %v4535 = vunpack.c.l.s4 1934713408
        %v4536 = vunpack.c.0.s8 %v4535
        %v4537 = vperm.slane %v4529, %v4536
        %v4538 = vrot.slane %v4525, 4
        %v4539 = vsel %vm1418, %v4538, %v4513
        %v4540 = vrot.slane %v4513, 4
        %v4541 = vsel %vm1418, %v4525, %v4540
        %v4543 = vunpack.c.l.s4 1934713408
        %v4544 = vunpack.c.0.s8 %v4543
        %v4545 = vperm.slane %v4539, %v4544
        %v4547 = vunpack.c.l.s4 1934713408
        %v4548 = vunpack.c.0.s8 %v4547
        %v4549 = vperm.slane %v4541, %v4548
        %v4550 = vrot.slane %v4533, 4
        %v4551 = vsel %vm1418, 0.0, %v4550
        %v4552 = vrot.slane %v4537, 4
        %v4553 = vsel %vm1418, 0.0, %v4552
        %v4554 = vrot.slane %v4545, 4
        %v4555 = vsel %vm1418, 0.0, %v4554
        %v4556 = vrot.slane %v4549, 4
        %v4557 = vsel %vm1418, 0.0, %v4556
        %v4558 = vsel %vm1418, %v4552, %v4533
        %v4560 = vunpack.c.l.s4 1983009808
        %v4561 = vunpack.c.0.s8 %v4560
        %v4562 = vperm.slane %v4558, %v4561
        %v4563 = vrot.slane %v4553, 4
        %v4564 = vsel %vm1418, %v4563, %v4551
        %v4566 = vunpack.c.l.s4 1983009808
        %v4567 = vunpack.c.0.s8 %v4566
        %v4568 = vperm.slane %v4564, %v4567
        %v4569 = vsel %vm1418, %v4556, %v4545
        %v4571 = vunpack.c.l.s4 1983009808
        %v4572 = vunpack.c.0.s8 %v4571
        %v4573 = vperm.slane %v4569, %v4572
        %v4574 = vrot.slane %v4557, 4
        %v4575 = vsel %vm1418, %v4574, %v4555
        %v4577 = vunpack.c.l.s4 1983009808
        %v4578 = vunpack.c.0.s8 %v4577
        %v4579 = vperm.slane %v4575, %v4578
        %v4580 = vrot.slane %v4568, 4
        %v4581 = vsel %vm1418, %v4580, %v4562
        %v4582 = vrot.slane %v4562, 4
        %v4583 = vsel %vm1418, %v4568, %v4582
        %v4585 = vunpack.c.l.s4 1934713408
        %v4586 = vunpack.c.0.s8 %v4585
        %v4587 = vperm.slane %v4581, %v4586
        %v4589 = vunpack.c.l.s4 1934713408
        %v4590 = vunpack.c.0.s8 %v4589
        %v4591 = vperm.slane %v4583, %v4590
        %v4592 = vrot.slane %v4579, 4
        %v4593 = vsel %vm1418, %v4592, %v4573
        %v4594 = vrot.slane %v4573, 4
        %v4595 = vsel %vm1418, %v4579, %v4594
        %v4597 = vunpack.c.l.s4 1934713408
        %v4598 = vunpack.c.0.s8 %v4597
        %v4599 = vperm.slane %v4593, %v4598
        %v4601 = vunpack.c.l.s4 1934713408
        %v4602 = vunpack.c.0.s8 %v4601
        %v4603 = vperm.slane %v4595, %v4602
        %v4604 = vrot.slane %v4599, 4
        %v4605 = vsel %vm1418, %v4604, %v4587
        %v4606 = vrot.slane %v4587, 4
        %v4607 = vsel %vm1418, %v4599, %v4606
        %v4608 = vrot.slane %v4603, 4
        %v4609 = vsel %vm1418, %v4608, %v4591
        %v4610 = vrot.slane %v4591, 4
        %v4611 = vsel %vm1418, %v4603, %v4610
        %4613 = vrot.lane.b32.xlu0 %v4607, 8
        %v4614 = vpop.permute.xlu0 %4613
        %4617 = vrot.lane.b32.xlu0 %v4609, 16
        %v4618 = vpop.permute.xlu0 %4617
        %4621 = vrot.lane.b32.xlu0 %v4611, 24
        %v4622 = vpop.permute.xlu0 %4621
        %v4624 = vsel %vm2083, %v4605, %v4614
        %v4625 = vsel %vm2940, %v4624, %v4618
        %v4626 = vsel %vm2942, %v4625, %v4622
        %4627 = vst.msk [vmem:[%s1306] sm:$0xff] %vm2083, %v3894
        %4628 = vst.msk [vmem:[%s1306 + $0x8] sm:$0xff] %vm2083, %v3895
        %4629 = vst.msk [vmem:[%s1306 + $0x10] sm:$0xff] %vm2083, %v3896
        %4630 = vst.msk [vmem:[%s1306 + $0x18] sm:$0xff] %vm2083, %v3897
        %v4631 = vpack.c.bf16 %v4626, %v4626
        %v4632 = vld [vmem:[%s1106] sm:$0xf]
        %v4633 = vld [vmem:[%s1106 + $0x4] sm:$0xf]
        %v4634 = vld [vmem:[%s1106 + $0x8] sm:$0xf]
        %v4635 = vld [vmem:[%s1106 + $0xc] sm:$0xf]
        %v4636 = vld [vmem:[%s1336] sm:$0x1]
        %v4638 = vperm.slane %v4636, 0
        %v4644 = vunpack.c.l.b16 %v4632
        %v4645 = vunpack.c.l.b16 %v4633
        %v4646 = vunpack.c.l.b16 %v4634
        %v4647 = vunpack.c.l.b16 %v4635
        %v4648 = vpack.c.b16 %v4645, %v4644
        %v4649 = vpack.c.b16 %v4647, %v4646
        %v4653 = vsel %vm1390, %v4631, 0
        %4655 = vmatpush.bf16.msra.mxu0 0
        %4656 = vmatpush.bf16.msra.mxu0 0
        %4657 = vmatpush.bf16.msra.mxu0 0
        %4658 = vmatpush.bf16.msra.mxu0 0
        %4659 = vmatpush.bf16.msra.mxu0 0
        %4660 = vmatpush.bf16.msra.mxu0 0
        %4661 = vmatpush.bf16.msra.mxu0 %v4649
        %4662 = vmatpush.bf16.msra.mxu0 %v4648
        %4663 = vmatmul.bf16.gmra.mxu0 %v4653
        %v4664 = vpop.f32.mrf.mxu0
        %v4665 = vadd.f32 %v4638, %v4664
        %v4666 = vpop.f32.mrf.mxu0
        %4667 = vdwg.mxu0
        %v4668 = vadd.f32 %v3020, %v4665
        %v4669 = vsel %vm1390, %v4668, 0.0
        %4670 = vadd.xlane.f32.xlu0 %v4669
        %v4671 = vpop.xlane.xlu0 %4670
        %v4672 = vmul.f32 %v4671, %v2991
        %v4673 = vsub.f32 %v4668, %v4672
        %v4674 = vmul.f32 %v4673, %v4673
        %v4675 = vsel %vm1390, %v4674, 0.0
        %4676 = vadd.xlane.f32.xlu0 %v4675
        %v4677 = vpop.xlane.xlu0 %4676
        %v4678 = vmul.f32 %v4677, %v2991
        %v4679 = vadd.f32 %v4678, 1e-05
        %v4680 = vrsqrt.pop %v4679
        %v4681 = vmul.f32 %v4680, %v4679
        %v4682 = vmul.f32 %v4681, %v4680
        %v4683 = vmul.f32 0.5, %v4682
        %v4684 = vsub.f32 1.5, %v4683
        %v4685 = vmul.f32 %v4680, %v4684
        %vm4686 = vweird.f32 %v4679
        %vm4687 = vweird.f32 %v4680
        %vm4688 = vmor %vm4686, %vm4687
        %v4689 = vsel %vm4688, %v4680, %v4685
        %v4690 = vmul.f32 %v4673, %v4689
        %v4691 = vld [vmem:[%s1353] sm:$0x1]
        %v4693 = vperm.slane %v4691, 0
        %v4695 = vmul.f32 %v4690, %v4693
        %v4696 = vld [vmem:[%s1134] sm:$0x1]
        %v4698 = vperm.slane %v4696, 0
        %v4700 = vadd.f32 %v4695, %v4698
        %v4701 = vpack.c.bf16 %v4700, %v4700
        %v4702 = vld [vmem:[%s1116] sm:$0xf]
        %v4703 = vld [vmem:[%s1116 + $0x4] sm:$0xf]
        %v4704 = vld [vmem:[%s1116 + $0x8] sm:$0xf]
        %v4705 = vld [vmem:[%s1116 + $0xc] sm:$0xf]
        %v4706 = vld [vmem:[%s1339] sm:$0x1]
        %v4708 = vperm.slane %v4706, 0
        %v4714 = vunpack.c.l.b16 %v4702
        %v4715 = vunpack.c.l.b16 %v4703
        %v4716 = vunpack.c.l.b16 %v4704
        %v4717 = vunpack.c.l.b16 %v4705
        %v4718 = vpack.c.b16 %v4715, %v4714
        %v4719 = vpack.c.b16 %v4717, %v4716
        %v4723 = vsel %vm1390, %v4701, 0
        %4725 = vmatpush.bf16.msra.mxu0 0
        %4726 = vmatpush.bf16.msra.mxu0 0
        %4727 = vmatpush.bf16.msra.mxu0 0
        %4728 = vmatpush.bf16.msra.mxu0 0
        %4729 = vmatpush.bf16.msra.mxu0 0
        %4730 = vmatpush.bf16.msra.mxu0 0
        %4731 = vmatpush.bf16.msra.mxu0 %v4719
        %4732 = vmatpush.bf16.msra.mxu0 %v4718
        %4733 = vmatmul.bf16.gmra.mxu0 %v4723
        %v4734 = vpop.f32.mrf.mxu0
        %v4735 = vadd.f32 %v4708, %v4734
        %v4736 = vpop.f32.mrf.mxu0
        %4737 = vdwg.mxu0
        %v4738 = vmax.f32 %v4735, 0.0
        %v4739 = vpack.c.bf16 %v4738, %v4738
        %v4740 = vld [vmem:[%s1344] sm:$0xf]
        %v4741 = vld [vmem:[%s1344 + $0x4] sm:$0xf]
        %v4742 = vld [vmem:[%s1344 + $0x8] sm:$0xf]
        %v4743 = vld [vmem:[%s1344 + $0xc] sm:$0xf]
        %v4744 = vld [vmem:[%s1344 + $0x10] sm:$0xf]
        %v4745 = vld [vmem:[%s1344 + $0x14] sm:$0xf]
        %v4746 = vld [vmem:[%s1344 + $0x18] sm:$0xf]
        %v4747 = vld [vmem:[%s1344 + $0x1c] sm:$0xf]
        %v4748 = vld [vmem:[%s1347] sm:$0x1]
        %v4750 = vperm.slane %v4748, 0
        %v4760 = vunpack.c.l.b16 %v4740
        %v4761 = vunpack.c.l.b16 %v4741
        %v4762 = vunpack.c.l.b16 %v4742
        %v4763 = vunpack.c.l.b16 %v4743
        %v4764 = vunpack.c.l.b16 %v4744
        %v4765 = vunpack.c.l.b16 %v4745
        %v4766 = vunpack.c.l.b16 %v4746
        %v4767 = vunpack.c.l.b16 %v4747
        %v4768 = vpack.c.b16 %v4761, %v4760
        %v4769 = vpack.c.b16 %v4763, %v4762
        %v4770 = vpack.c.b16 %v4765, %v4764
        %v4771 = vpack.c.b16 %v4767, %v4766
        %vm4776 = vcmask 523264
        %v4778 = vsel %vm4776, %v4739, 0
        %4780 = vmatpush.bf16.msra.mxu0 0
        %4781 = vmatpush.bf16.msra.mxu0 0
        %4782 = vmatpush.bf16.msra.mxu0 0
        %4783 = vmatpush.bf16.msra.mxu0 0
        %4784 = vmatpush.bf16.msra.mxu0 %v4771
        %4785 = vmatpush.bf16.msra.mxu0 %v4770
        %4786 = vmatpush.bf16.msra.mxu0 %v4769
        %4787 = vmatpush.bf16.msra.mxu0 %v4768
        %4788 = vmatmul.bf16.gmra.mxu0 %v4778
        %v4789 = vpop.f32.mrf.mxu0
        %v4790 = vadd.f32 %v4750, %v4789
        %v4791 = vpop.f32.mrf.mxu0
        %4792 = vdwg.mxu0
        %v4793 = vadd.f32 %v4700, %v4790
        %v4794 = vsel %vm1390, %v4793, 0.0
        %4795 = vadd.xlane.f32.xlu0 %v4794
        %v4796 = vpop.xlane.xlu0 %4795
        %v4797 = vmul.f32 %v4796, %v2991
        %v4798 = vsub.f32 %v4793, %v4797
        %v4799 = vmul.f32 %v4798, %v4798
        %v4800 = vsel %vm1390, %v4799, 0.0
        %4801 = vadd.xlane.f32.xlu0 %v4800
        %v4802 = vpop.xlane.xlu0 %4801
        %v4803 = vmul.f32 %v4802, %v2991
        %v4804 = vadd.f32 %v4803, 1e-05
        %v4805 = vrsqrt.pop %v4804
        %v4806 = vmul.f32 %v4805, %v4804
        %v4807 = vmul.f32 %v4806, %v4805
        %v4808 = vmul.f32 0.5, %v4807
        %v4809 = vsub.f32 1.5, %v4808
        %v4810 = vmul.f32 %v4805, %v4809
        %vm4811 = vweird.f32 %v4804
        %vm4812 = vweird.f32 %v4805
        %vm4813 = vmor %vm4811, %vm4812
        %v4814 = vsel %vm4813, %v4805, %v4810
        %v4815 = vmul.f32 %v4798, %v4814
        %v4816 = vld [vmem:[%s1356] sm:$0x1]
        %v4818 = vperm.slane %v4816, 0
        %v4820 = vmul.f32 %v4815, %v4818
        %v4821 = vld [vmem:[%s1143] sm:$0x1]
        %v4823 = vperm.slane %v4821, 0
        %v4825 = vadd.f32 %v4820, %v4823
        %4826 = vst.msk [vmem:[%s1299] sm:$0xff] %vm1390, %v4825
        %s4827 = sand.u32 %s705, 1
        %s4828 = scalar_lea.sflag [#allocation4], %s4827
        %s4829 = sand.u32 %s705, 1
        %s4830 = smul.addr %s4829, 8
        %s4831 = scalar_lea.vmem [#allocation19], %s4830
        %s4832 = sand.u32 %s731, 1
        %s4833 = scalar_lea.sflag [#allocation21], %s4832
        %s4834 = sand.u32 %s731, 1
        %s4835 = smul.addr %s4834, 32
        %s4836 = scalar_lea.vmem [#allocation20], %s4835
        // Predicated region
        $region161: #{tpu_custom_call.1} parent=115 // pred_check
          %p4837 = pneg %p715
        $region162: #{tpu_custom_call.1} parent=115 // pred_check_branch
          %4839 = sbr.rel (%p4837) target = $region164
        $region163: #{tpu_custom_call.1} parent=115 // pred_region
          %4841 = vsyncadd %s4828, 0
          %s4842 = smul.addr %s65, 8
          %s4843 = scalar_lea.hbm %s24, %s4842
          %s4845 = sshll.u32 %s4831, 4
          %s4846 = int_to_ptr.vmem [resolvable:$true] %s4845
          %s4847 = sshll.u32 %s4843, 4
          %s4848 = int_to_ptr.hbm [resolvable:$true] %s4847
          %4850 = dma.vmem_to_hbm [thread:$0]  %s4846, 128, %s4848, %s4828
        $region164: #{tpu_custom_call.1} parent=115 // pred_fallthru
          _
        // Predicated region
        $region165: #{tpu_custom_call.1} parent=115 // pred_check
          %p4851 = pneg %p741
        $region166: #{tpu_custom_call.1} parent=115 // pred_check_branch
          %4853 = sbr.rel (%p4851) target = $region168
        $region167: #{tpu_custom_call.1} parent=115 // pred_region
          %4855 = vsyncadd %s4833, 0
          %s4856 = smul.addr %s65, 4
          %s4857 = smul.addr %s4856, 8
          %s4858 = scalar_lea.hbm %s25, %s4857
          %s4859 = sshll.u32 %s4836, 4
          %s4860 = int_to_ptr.vmem [resolvable:$true] %s4859
          %s4861 = sshll.u32 %s4858, 4
          %s4862 = int_to_ptr.hbm [resolvable:$true] %s4861
          %4867 = dma.vmem_to_hbm [thread:$0]  %s4860, 512, %s4862, %s4833, 128, 128, 8
        $region168: #{tpu_custom_call.1} parent=115 // pred_fallthru
          _
      $region116: #{tpu_custom_call.1} parent=5 // pred_fallthru
        _
      %p4868 = scmp.le.s32.totalorder 2, %s56
      // Predicated region
      $region169: #{tpu_custom_call.1} parent=5 // pred_check
        %p4869 = pneg %p4868
      $region170: #{tpu_custom_call.1} parent=5 // pred_check_branch
        %4871 = sbr.rel (%p4869) target = $region172
      $region171: #{tpu_custom_call.1} parent=5 // pred_region
        %s4872 = ssub.s32 %s56, 2
        // Predicated region
        $region173: #{tpu_custom_call.1} parent=171 // pred_check
          %p4873 = pneg %p721
        $region174: #{tpu_custom_call.1} parent=171 // pred_check_branch
          %4875 = sbr.rel (%p4873) target = $region176
        $region175: #{tpu_custom_call.1} parent=171 // pred_region
          %s4876 = sand.u32 %s706, 1
          %s4877 = scalar_lea.sflag [#allocation4], %s4876
          %s4878 = sand.u32 %s706, 1
          %s4879 = smul.addr %s4878, 8
          %s4880 = scalar_lea.vmem [#allocation19], %s4879
          %4882 = dma.done %s4877, 128
        $region176: #{tpu_custom_call.1} parent=171 // pred_fallthru
          _
        // Predicated region
        $region177: #{tpu_custom_call.1} parent=171 // pred_check
          %p4883 = pneg %p747
        $region178: #{tpu_custom_call.1} parent=171 // pred_check_branch
          %4885 = sbr.rel (%p4883) target = $region180
        $region179: #{tpu_custom_call.1} parent=171 // pred_region
          %s4886 = sand.u32 %s732, 1
          %s4887 = scalar_lea.sflag [#allocation21], %s4886
          %s4888 = sand.u32 %s732, 1
          %s4889 = smul.addr %s4888, 32
          %s4890 = scalar_lea.vmem [#allocation20], %s4889
          %4892 = dma.done %s4887, 512
        $region180: #{tpu_custom_call.1} parent=171 // pred_fallthru
          _
      $region172: #{tpu_custom_call.1} parent=5 // pred_fallthru
        _
    $region6: #{tpu_custom_call.1} parent=1 // loop_footer
      %s60 = sadd.s32 1, %s56
    $region7: #{tpu_custom_call.1} parent=1 // loop_footer_branch
      %55 = sbr.rel target = $region3
    $region8: #{tpu_custom_call.1} parent=1 // loop_exit
      _
    %4893 = vsyncpa [#allocation3], 1
    %s4894 = scalar_lea.sflag [#allocation3], 1
    %4895 = vsyncpa %s4894, 1
    %4896 = vsyncpa [#allocation6], 1
    %s4897 = scalar_lea.sflag [#allocation6], 1
    %4898 = vsyncpa %s4897, 1
    %4899 = vsyncpa [#allocation9], 1
    %s4900 = scalar_lea.sflag [#allocation9], 1
    %4901 = vsyncpa %s4900, 1
    %4902 = vsyncpa [#allocation12], 1
    %s4903 = scalar_lea.sflag [#allocation12], 1
    %4904 = vsyncpa %s4903, 1
    %4905 = vsyncpa [#allocation15], 1
    %s4906 = scalar_lea.sflag [#allocation15], 1
    %4907 = vsyncpa %s4906, 1
    %4908 = vsyncpa [#allocation18], 1
    %s4909 = scalar_lea.sflag [#allocation18], 1
    %4910 = vsyncpa %s4909, 1
    %4911 = vsyncpa [#allocation4], 1
    %s4912 = scalar_lea.sflag [#allocation4], 1
    %4913 = vsyncpa %s4912, 1
    %4914 = vsyncpa [#allocation21], 1
    %s4915 = scalar_lea.sflag [#allocation21], 1
    %4916 = vsyncpa %s4915, 1

</llo_original>
